<compile_context>
chip_gen: v6e
topology: v6e:2x2x1
jax: 0.10.0
libtpu: 0.0.40
codegen_flags: <defaults>
</compile_context>

<pallas_src>
import functools

import jax
import jax.numpy as jnp
from jax.experimental import pallas as pl
from jax.experimental.pallas import tpu as pltpu


# ----------------------------- config (small, synthetic) ---------------------
HIDDEN = 128          # config.hidden_size == config.word_embed_proj_dim (lane-dense)
NUM_HEADS = 4         # config.num_attention_heads
HEAD_DIM = HIDDEN // NUM_HEADS
FFN_DIM = 4 * HIDDEN  # config.ffn_dim
NUM_LAYERS = 2        # config.num_hidden_layers
VOCAB = 100           # config.vocab_size
MAX_POS = 64          # config.max_position_embeddings
NUM_LABELS = 3        # config.num_labels
SEQ = 32              # tokens in this prefill
LN_EPS = 1e-5
POS_OFFSET = 2        # OPTLearnedPositionalEmbedding offset
LANE = 128            # lane-padded width for the tiny score-head output


# ----------------------------- kernel -----------------------------------------
def _layer_norm(x, g, b, eps=LN_EPS):
    mu = jnp.mean(x, axis=-1, keepdims=True)
    var = jnp.mean(jnp.square(x - mu), axis=-1, keepdims=True)
    return (x - mu) * jax.lax.rsqrt(var + eps) * g + b


def opt_layer_kernel(h0_ref,
                     ln1g_ref, ln1b_ref,
                     wqkv_ref, bqkv_ref,        # (H, 3H) bf16 / (1, 3H) f32 (per layer)
                     wo_ref, bo_ref,            # (H, H)  bf16 / (1, H)  f32
                     ln2g_ref, ln2b_ref,
                     wfc1_ref, bfc1_ref,        # (H, F)  bf16 / (1, F)  f32
                     wfc2_ref, bfc2_ref,        # (F, H)  bf16 / (1, H)  f32
                     flng_ref, flnb_ref,        # (1, H)  f32 (resident)
                     score_ref,                 # (H, LANE) bf16 (score.T, lane-padded)
                     h_out_ref, logits_ref,
                     h_scr,                     # (T, H) f32 scratch, carried across layers
                     *, num_heads, head_dim):
    l = pl.program_id(0)
    T, H = h0_ref.shape

    @pl.when(l == 0)
    def _():
        h_scr[...] = h0_ref[...]

    h = h_scr[...]                                              # (T, H) f32

    # Causal additive mask (f32; rebuilt per layer — two iotas, negligible).
    row = jax.lax.broadcasted_iota(jnp.int32, (T, T), 0)
    col = jax.lax.broadcasted_iota(jnp.int32, (T, T), 1)
    neg_mask = jnp.where(col <= row, 0.0, -1e30).astype(jnp.float32)

    # ---------------- self-attention block ----------------
    residual = h
    x = _layer_norm(h, ln1g_ref[...], ln1b_ref[...])
    qkv = jnp.dot(x.astype(jnp.bfloat16), wqkv_ref[...],
                  preferred_element_type=jnp.float32) + bqkv_ref[...]   # (T, 3H)
    q = qkv[:, 0:H]            # softmax scale already folded into Q weights/bias
    k = qkv[:, H:2 * H]
    v = qkv[:, 2 * H:3 * H]

    ctx_heads = []
    for hh in range(num_heads):                 # static unroll; tiny per-head matmuls
        sl = slice(hh * head_dim, (hh + 1) * head_dim)
        qi = q[:, sl].astype(jnp.bfloat16)      # (T, hd)
        ki = k[:, sl].astype(jnp.bfloat16)
        vi = v[:, sl].astype(jnp.bfloat16)
        si = jax.lax.dot_general(qi, ki, (((1,), (1,)), ((), ())),
                                 preferred_element_type=jnp.float32)    # (T, T)
        si = si + neg_mask
        si = si - jnp.max(si, axis=-1, keepdims=True)
        pi = jnp.exp(si)
        pi = pi * pl.reciprocal(jnp.sum(pi, axis=-1, keepdims=True), approx=True)
        ctx_heads.append(jnp.dot(pi.astype(jnp.bfloat16), vi,
                                 preferred_element_type=jnp.float32))   # (T, hd)

    # Lane-concatenate heads -> (T, H), then a single full-K output projection.
    ctx = jnp.concatenate(ctx_heads, axis=-1).astype(jnp.bfloat16)
    attn_out = jnp.dot(ctx, wo_ref[...],
                       preferred_element_type=jnp.float32) + bo_ref[...]
    h = residual + attn_out

    # ---------------- MLP block ----------------
    residual = h
    x = _layer_norm(h, ln2g_ref[...], ln2b_ref[...])
    f = jnp.dot(x.astype(jnp.bfloat16), wfc1_ref[...],
                preferred_element_type=jnp.float32) + bfc1_ref[...]
    f = jnp.maximum(f, 0.0)                    # OPT activation_function == "relu"
    f = jnp.dot(f.astype(jnp.bfloat16), wfc2_ref[...],
                preferred_element_type=jnp.float32) + bfc2_ref[...]
    h = residual + f

    h_scr[...] = h

    # ---------------- final LayerNorm + fused score head ----------------
    @pl.when(l == pl.num_programs(0) - 1)
    def _():
        hf = _layer_norm(h, flng_ref[...], flnb_ref[...])
        h_out_ref[...] = hf
        # TODO(synk): last non-pad token selection (here: no-padding prefill -> T-1).
        last = hf[T - 1:T, :].astype(jnp.bfloat16)
        logits_ref[...] = jnp.dot(last, score_ref[...],
                                  preferred_element_type=jnp.float32)


# ----------------------------- wrapper -----------------------------------------
def run_opt_stack(h0, stacked, final_ln_g, final_ln_b, score_t):
    H, F, HQ = HIDDEN, FFN_DIM, 3 * HIDDEN

    def layer_spec(*dims):   # stacked (L, ...) weight, streamed one layer per grid step
        n = len(dims)
        return pl.BlockSpec((None,) + dims, lambda l, _n=n: (l,) + (0,) * _n)

    def resident_spec(*dims):  # same block every step -> fetched once, stays in VMEM
        n = len(dims)
        return pl.BlockSpec(dims, lambda l, _n=n: (0,) * _n)

    in_specs = [
        resident_spec(SEQ, H),                       # h0
        layer_spec(1, H), layer_spec(1, H),          # ln1 g/b
        layer_spec(H, HQ), layer_spec(1, HQ),        # qkv w/b
        layer_spec(H, H), layer_spec(1, H),          # out-proj w/b
        layer_spec(1, H), layer_spec(1, H),          # ln2 g/b
        layer_spec(H, F), layer_spec(1, F),          # fc1 w/b
        layer_spec(F, H), layer_spec(1, H),          # fc2 w/b
        resident_spec(1, H), resident_spec(1, H),    # final LN g/b
        resident_spec(H, LANE),                      # score head (transposed, padded)
    ]
    out_specs = (resident_spec(SEQ, H), resident_spec(1, LANE))

    flops = 2 * NUM_LAYERS * (SEQ * H * HQ                       # qkv proj
                              + 2 * NUM_HEADS * SEQ * SEQ * HEAD_DIM  # scores + ctx
                              + SEQ * H * H                      # out proj
                              + 2 * SEQ * H * F)                 # fc1 + fc2
    flops += 2 * H * LANE                                        # score head
    transcendentals = NUM_LAYERS * NUM_HEADS * SEQ * SEQ + (2 * NUM_LAYERS + 1) * SEQ
    weight_bytes = sum(int(v.size) * v.dtype.itemsize for v in stacked.values())
    bytes_accessed = (weight_bytes
                      + int(h0.size) * 4
                      + SEQ * H * 4 + LANE * 4
                      + int(final_ln_g.size) * 4 + int(final_ln_b.size) * 4
                      + int(score_t.size) * 2)

    kernel = functools.partial(opt_layer_kernel,
                               num_heads=NUM_HEADS, head_dim=HEAD_DIM)

    return pl.pallas_call(
        kernel,
        out_shape=(jax.ShapeDtypeStruct((SEQ, H), jnp.float32),
                   jax.ShapeDtypeStruct((1, LANE), jnp.float32)),
        grid=(NUM_LAYERS,),
        in_specs=in_specs,
        out_specs=out_specs,
        scratch_shapes=[pltpu.VMEM((SEQ, H), jnp.float32)],      # hidden-state carry
        compiler_params=pltpu.CompilerParams(
            dimension_semantics=("arbitrary",),                  # layers are sequential
            vmem_limit_bytes=32 * 1024 * 1024),
        cost_estimate=pl.CostEstimate(flops=flops,
                                      transcendentals=transcendentals,
                                      bytes_accessed=bytes_accessed),
    )(h0,
      stacked["ln1_g"], stacked["ln1_b"],
      stacked["w_qkv"], stacked["b_qkv"],
      stacked["w_out"], stacked["b_out"],
      stacked["ln2_g"], stacked["ln2_b"],
      stacked["w_fc1"], stacked["b_fc1"],
      stacked["w_fc2"], stacked["b_fc2"],
      final_ln_g, final_ln_b, score_t)


# ----------------------------- parameter init -----------------------------------
def init_params(key):
    def nrm(k, shape, scale=0.02):
        return (scale * jax.random.normal(k, shape)).astype(jnp.float32)

    keys = jax.random.split(key, 3 + NUM_LAYERS)
    attn_scale = HEAD_DIM ** -0.5

    names = ("ln1_g", "ln1_b", "w_qkv", "b_qkv", "w_out", "b_out",
             "ln2_g", "ln2_b", "w_fc1", "b_fc1", "w_fc2", "b_fc2")
    per_layer = {n: [] for n in names}
    for li in range(NUM_LAYERS):
        lk = jax.random.split(keys[3 + li], 12)
        w_q, b_q = nrm(lk[0], (HIDDEN, HIDDEN)), nrm(lk[1], (HIDDEN,))
        w_k, b_k = nrm(lk[2], (HIDDEN, HIDDEN)), nrm(lk[3], (HIDDEN,))
        w_v, b_v = nrm(lk[4], (HIDDEN, HIDDEN)), nrm(lk[5], (HIDDEN,))
        # Single lane-dense QKV weight [in, 3*out]; softmax scale folded into Q.
        w_qkv = jnp.concatenate([w_q * attn_scale, w_k, w_v], axis=1)      # (H, 3H)
        b_qkv = jnp.concatenate([b_q * attn_scale, b_k, b_v])[None, :]     # (1, 3H)
        w_out = nrm(lk[6], (HIDDEN, HIDDEN))                               # [in, out]

        per_layer["ln1_g"].append(jnp.ones((1, HIDDEN), jnp.float32))
        per_layer["ln1_b"].append(jnp.zeros((1, HIDDEN), jnp.float32))
        per_layer["w_qkv"].append(w_qkv.astype(jnp.bfloat16))
        per_layer["b_qkv"].append(b_qkv)
        per_layer["w_out"].append(w_out.astype(jnp.bfloat16))
        per_layer["b_out"].append(nrm(lk[7], (1, HIDDEN)))
        per_layer["ln2_g"].append(jnp.ones((1, HIDDEN), jnp.float32))
        per_layer["ln2_b"].append(jnp.zeros((1, HIDDEN), jnp.float32))
        per_layer["w_fc1"].append(nrm(lk[8], (HIDDEN, FFN_DIM)).astype(jnp.bfloat16))
        per_layer["b_fc1"].append(nrm(lk[9], (1, FFN_DIM)))
        per_layer["w_fc2"].append(nrm(lk[10], (FFN_DIM, HIDDEN)).astype(jnp.bfloat16))
        per_layer["b_fc2"].append(nrm(lk[11], (1, HIDDEN)))
    stacked = {n: jnp.stack(v, axis=0) for n, v in per_layer.items()}

    # Classification head (self.score): (NUM_LABELS, H) embedding, stored
    # pre-transposed and lane-padded to 128 for a dense in-kernel matmul.
    score = nrm(keys[2], (NUM_LABELS, HIDDEN))
    score_t = jnp.zeros((HIDDEN, LANE), jnp.float32).at[:, :NUM_LABELS].set(score.T)

    return {
        "embed_tokens": nrm(keys[0], (VOCAB, HIDDEN)),
        "embed_positions": nrm(keys[1], (MAX_POS + POS_OFFSET, HIDDEN)),
        "final_ln_g": jnp.ones((1, HIDDEN), jnp.float32),
        "final_ln_b": jnp.zeros((1, HIDDEN), jnp.float32),
        "score_t": score_t.astype(jnp.bfloat16),
        "stacked": stacked,
    }


# ----------------------------- model forward ------------------------------------
@jax.jit
def opt_forward(params, input_ids, positions):
    # Embedding gathers: plain-JAX glue (not a Pallas hot path).
    # TODO(synk): could be fused via PrefetchScalarGridSpec + pl.Element row-gather.
    inputs_embeds = jnp.take(params["embed_tokens"], input_ids, axis=0)
    pos_embeds = jnp.take(params["embed_positions"], positions + POS_OFFSET, axis=0)
    hidden0 = (inputs_embeds + pos_embeds).astype(jnp.float32)

    hidden_states, logits_pad = run_opt_stack(
        hidden0, params["stacked"],
        params["final_ln_g"], params["final_ln_b"], params["score_t"])

    pred_scores = None  # no `predictor` attribute -> forward() returns None
    # compute_logits() equivalent for the last token, fused into the kernel.
    cls_logits = logits_pad[:, :NUM_LABELS]
    return hidden_states, pred_scores, cls_logits


# ----------------------------- main ----------------------------------------------
if __name__ == "__main__":
    key = jax.random.PRNGKey(0)
    pkey, ikey = jax.random.split(key)
    params = init_params(pkey)

    input_ids = jax.random.randint(ikey, (SEQ,), 0, VOCAB, dtype=jnp.int32)
    positions = jnp.arange(SEQ, dtype=jnp.int32)

    hidden_states, pred_scores, cls_logits = opt_forward(params, input_ids, positions)
    hidden_states = jax.block_until_ready(hidden_states)
    cls_logits = jax.block_until_ready(cls_logits)

    assert hidden_states.shape == (SEQ, HIDDEN)
    assert jnp.isfinite(hidden_states).all()
    assert cls_logits.shape == (1, NUM_LABELS)
    assert jnp.isfinite(cls_logits).all()
    assert pred_scores is None
    _ = jnp.argmax(cls_logits, axis=-1)  # compute_logits' argmax (demo only)
    print("KERNEL_OK")
</pallas_src>

<mosaic_0001>
module attributes {stable_mosaic.version = 11 : i64} {
  func.func @opt_layer_kernel(%arg0: i32, %arg1: memref<32x128xf32, #tpu.memory_space<vmem>>, %arg2: memref<1x1x128xf32, #tpu.memory_space<vmem>>, %arg3: memref<1x1x128xf32, #tpu.memory_space<vmem>>, %arg4: memref<1x128x384xbf16, #tpu.memory_space<vmem>>, %arg5: memref<1x1x384xf32, #tpu.memory_space<vmem>>, %arg6: memref<1x128x128xbf16, #tpu.memory_space<vmem>>, %arg7: memref<1x1x128xf32, #tpu.memory_space<vmem>>, %arg8: memref<1x1x128xf32, #tpu.memory_space<vmem>>, %arg9: memref<1x1x128xf32, #tpu.memory_space<vmem>>, %arg10: memref<1x128x512xbf16, #tpu.memory_space<vmem>>, %arg11: memref<1x1x512xf32, #tpu.memory_space<vmem>>, %arg12: memref<1x512x128xbf16, #tpu.memory_space<vmem>>, %arg13: memref<1x1x128xf32, #tpu.memory_space<vmem>>, %arg14: memref<1x128xf32, #tpu.memory_space<vmem>>, %arg15: memref<1x128xf32, #tpu.memory_space<vmem>>, %arg16: memref<128x128xbf16, #tpu.memory_space<vmem>>, %arg17: memref<32x128xf32, #tpu.memory_space<vmem>>, %arg18: memref<1x128xf32, #tpu.memory_space<vmem>>, %arg19: memref<32x128xf32, #tpu.memory_space<vmem>>) attributes {dimension_semantics = [#tpu.dimension_semantics<arbitrary>], iteration_bounds = array<i64: 2>, scalar_prefetch = 0 : i64, scratch_operands = 1 : i64, tpu.core_type = #tpu.core_type<tc>, window_params = [{pipeline_mode = #tpu.pipeline_mode<synchronous>, transform_indices = @transform_0, window_bounds = array<i64: 32, 128>}, {transform_indices = @transform_1, window_bounds = array<i64: 1, 1, 128>}, {transform_indices = @transform_2, window_bounds = array<i64: 1, 1, 128>}, {transform_indices = @transform_3, window_bounds = array<i64: 1, 128, 384>}, {transform_indices = @transform_4, window_bounds = array<i64: 1, 1, 384>}, {transform_indices = @transform_5, window_bounds = array<i64: 1, 128, 128>}, {transform_indices = @transform_6, window_bounds = array<i64: 1, 1, 128>}, {transform_indices = @transform_7, window_bounds = array<i64: 1, 1, 128>}, {transform_indices = @transform_8, window_bounds = array<i64: 1, 1, 128>}, {transform_indices = @transform_9, window_bounds = array<i64: 1, 128, 512>}, {transform_indices = @transform_10, window_bounds = array<i64: 1, 1, 512>}, {transform_indices = @transform_11, window_bounds = array<i64: 1, 512, 128>}, {transform_indices = @transform_12, window_bounds = array<i64: 1, 1, 128>}, {pipeline_mode = #tpu.pipeline_mode<synchronous>, transform_indices = @transform_13, window_bounds = array<i64: 1, 128>}, {pipeline_mode = #tpu.pipeline_mode<synchronous>, transform_indices = @transform_14, window_bounds = array<i64: 1, 128>}, {pipeline_mode = #tpu.pipeline_mode<synchronous>, transform_indices = @transform_15, window_bounds = array<i64: 128, 128>}, {pipeline_mode = #tpu.pipeline_mode<synchronous>, transform_indices = @transform_16, window_bounds = array<i64: 32, 128>}, {pipeline_mode = #tpu.pipeline_mode<synchronous>, transform_indices = @transform_17, window_bounds = array<i64: 1, 128>}]} {
    %c0_i32 = arith.constant 0 : i32
    %0 = arith.cmpi eq, %arg0, %c0_i32 : i32
    %1 = arith.extui %0 : i1 to i32
    %c0_i32_0 = arith.constant 0 : i32
    %2 = arith.cmpi ne, %1, %c0_i32_0 : i32
    scf.if %2 {
      %c0_73 = arith.constant 0 : index
      %c0_74 = arith.constant 0 : index
      %186 = vector.load %arg1[%c0_73, %c0_74] : memref<32x128xf32, #tpu.memory_space<vmem>>, vector<32x128xf32>
      %c0_75 = arith.constant 0 : index
      %c0_76 = arith.constant 0 : index
      %187 = vector.load %arg19[%c0_75, %c0_76] : memref<32x128xf32, #tpu.memory_space<vmem>>, vector<32x128xf32>
      tpu.vector_store %arg19[%c0_75, %c0_76], %186 {strides = array<i32>} : memref<32x128xf32, #tpu.memory_space<vmem>>, vector<32x128xf32>,
    } else {
    }
    %c0 = arith.constant 0 : index
    %c0_1 = arith.constant 0 : index
    %3 = vector.load %arg19[%c0, %c0_1] : memref<32x128xf32, #tpu.memory_space<vmem>>, vector<32x128xf32>
    %4 = tpu.iota {dimensions = array<i32: 0>} : vector<32x32xi32>
    %5 = tpu.iota {dimensions = array<i32: 1>} : vector<32x32xi32>
    %6 = arith.cmpi sle, %5, %4 : vector<32x32xi32>
    %cst = arith.constant 0.000000e+00 : f32
    %cst_2 = arith.constant -1.000000e+30 : f32
    %7 = vector.broadcast %cst : f32 to vector<32x32xf32>
    %8 = vector.broadcast %cst_2 : f32 to vector<32x32xf32>
    %9 = arith.select %6, %7, %8 : vector<32x32xi1>, vector<32x32xf32>
    %c0_3 = arith.constant 0 : index
    %c0_4 = arith.constant 0 : index
    %c0_5 = arith.constant 0 : index
    %10 = vector.load %arg2[%c0_3, %c0_4, %c0_5] : memref<1x1x128xf32, #tpu.memory_space<vmem>>, vector<1x1x128xf32>
    %11 = vector.shape_cast %10 : vector<1x1x128xf32> to vector<1x128xf32>
    %c0_6 = arith.constant 0 : index
    %c0_7 = arith.constant 0 : index
    %c0_8 = arith.constant 0 : index
    %12 = vector.load %arg3[%c0_6, %c0_7, %c0_8] : memref<1x1x128xf32, #tpu.memory_space<vmem>>, vector<1x1x128xf32>
    %13 = vector.shape_cast %12 : vector<1x1x128xf32> to vector<1x128xf32>
    %cst_9 = arith.constant dense<0.000000e+00> : vector<32xf32>
    %14 = vector.multi_reduction <add>, %3, %cst_9 [1] : vector<32x128xf32> to vector<32xf32>
    %15 = vector.shape_cast %14 : vector<32xf32> to vector<32x1xf32>
    %cst_10 = arith.constant 1.280000e+02 : f32
    %16 = vector.broadcast %cst_10 : f32 to vector<32x1xf32>
    %17 = arith.divf %15, %16 : vector<32x1xf32>
    %18 = vector.broadcast %17 : vector<32x1xf32> to vector<32x128xf32>
    %19 = arith.subf %3, %18 : vector<32x128xf32>
    %20 = arith.mulf %19, %19 : vector<32x128xf32>
    %cst_11 = arith.constant dense<0.000000e+00> : vector<32xf32>
    %21 = vector.multi_reduction <add>, %20, %cst_11 [1] : vector<32x128xf32> to vector<32xf32>
    %22 = vector.shape_cast %21 : vector<32xf32> to vector<32x1xf32>
    %cst_12 = arith.constant 1.280000e+02 : f32
    %23 = vector.broadcast %cst_12 : f32 to vector<32x1xf32>
    %24 = arith.divf %22, %23 : vector<32x1xf32>
    %25 = vector.broadcast %17 : vector<32x1xf32> to vector<32x128xf32>
    %26 = arith.subf %3, %25 : vector<32x128xf32>
    %cst_13 = arith.constant 9.99999974E-6 : f32
    %27 = vector.broadcast %cst_13 : f32 to vector<32x1xf32>
    %28 = arith.addf %24, %27 : vector<32x1xf32>
    %29 = math.rsqrt %28 : vector<32x1xf32>
    %30 = vector.broadcast %29 : vector<32x1xf32> to vector<32x128xf32>
    %31 = arith.mulf %26, %30 : vector<32x128xf32>
    %32 = vector.broadcast %11 : vector<1x128xf32> to vector<32x128xf32>
    %33 = arith.mulf %31, %32 : vector<32x128xf32>
    %34 = vector.broadcast %13 : vector<1x128xf32> to vector<32x128xf32>
    %35 = arith.addf %33, %34 : vector<32x128xf32>
    %36 = arith.truncf %35 : vector<32x128xf32> to vector<32x128xbf16>
    %c0_14 = arith.constant 0 : index
    %c0_15 = arith.constant 0 : index
    %c0_16 = arith.constant 0 : index
    %37 = vector.load %arg4[%c0_14, %c0_15, %c0_16] : memref<1x128x384xbf16, #tpu.memory_space<vmem>>, vector<1x128x384xbf16>
    %38 = vector.shape_cast %37 : vector<1x128x384xbf16> to vector<128x384xbf16>
    %cst_17 = arith.constant dense<0.000000e+00> : vector<32x384xf32>
    %39 = tpu.matmul %36, %38, %cst_17 {dimension_numbers = #tpu.dot_dimension_numbers<[1], [0], [0], [1], [0, 0, 1, 1], [], []>} : vector<32x128xbf16>, vector<128x384xbf16>, vector<32x384xf32> -> vector<32x384xf32>
    %c0_18 = arith.constant 0 : index
    %c0_19 = arith.constant 0 : index
    %c0_20 = arith.constant 0 : index
    %40 = vector.load %arg5[%c0_18, %c0_19, %c0_20] : memref<1x1x384xf32, #tpu.memory_space<vmem>>, vector<1x1x384xf32>
    %41 = vector.shape_cast %40 : vector<1x1x384xf32> to vector<1x384xf32>
    %42 = vector.broadcast %41 : vector<1x384xf32> to vector<32x384xf32>
    %43 = arith.addf %39, %42 : vector<32x384xf32>
    %44 = vector.extract_strided_slice %43 {offsets = [0, 0], sizes = [32, 128], strides = [1, 1]} : vector<32x384xf32> to vector<32x128xf32>
    %45 = vector.extract_strided_slice %43 {offsets = [0, 128], sizes = [32, 128], strides = [1, 1]} : vector<32x384xf32> to vector<32x128xf32>
    %46 = vector.extract_strided_slice %43 {offsets = [0, 256], sizes = [32, 128], strides = [1, 1]} : vector<32x384xf32> to vector<32x128xf32>
    %47 = vector.extract_strided_slice %44 {offsets = [0, 0], sizes = [32, 32], strides = [1, 1]} : vector<32x128xf32> to vector<32x32xf32>
    %48 = arith.truncf %47 : vector<32x32xf32> to vector<32x32xbf16>
    %49 = vector.extract_strided_slice %45 {offsets = [0, 0], sizes = [32, 32], strides = [1, 1]} : vector<32x128xf32> to vector<32x32xf32>
    %50 = arith.truncf %49 : vector<32x32xf32> to vector<32x32xbf16>
    %51 = vector.extract_strided_slice %46 {offsets = [0, 0], sizes = [32, 32], strides = [1, 1]} : vector<32x128xf32> to vector<32x32xf32>
    %52 = arith.truncf %51 : vector<32x32xf32> to vector<32x32xbf16>
    %cst_21 = arith.constant dense<0.000000e+00> : vector<32x32xf32>
    %53 = tpu.matmul %48, %50, %cst_21 {dimension_numbers = #tpu.dot_dimension_numbers<[1], [1], [0], [0], [0, 0, 1, 0], [], []>} : vector<32x32xbf16>, vector<32x32xbf16>, vector<32x32xf32> -> vector<32x32xf32>
    %54 = arith.addf %53, %9 : vector<32x32xf32>
    %cst_22 = arith.constant dense<0xFF800000> : vector<32xf32>
    %55 = vector.multi_reduction <maximumf>, %54, %cst_22 [1] : vector<32x32xf32> to vector<32xf32>
    %56 = vector.shape_cast %55 : vector<32xf32> to vector<32x1xf32>
    %57 = vector.broadcast %56 : vector<32x1xf32> to vector<32x32xf32>
    %58 = arith.subf %54, %57 : vector<32x32xf32>
    %59 = math.exp %58 : vector<32x32xf32>
    %cst_23 = arith.constant dense<0.000000e+00> : vector<32xf32>
    %60 = vector.multi_reduction <add>, %59, %cst_23 [1] : vector<32x32xf32> to vector<32xf32>
    %61 = vector.shape_cast %60 : vector<32xf32> to vector<32x1xf32>
    %62 = tpu.reciprocal %61 {approx = true} : vector<32x1xf32> -> vector<32x1xf32>
    %63 = vector.broadcast %62 : vector<32x1xf32> to vector<32x32xf32>
    %64 = arith.mulf %59, %63 : vector<32x32xf32>
    %65 = arith.truncf %64 : vector<32x32xf32> to vector<32x32xbf16>
    %cst_24 = arith.constant dense<0.000000e+00> : vector<32x32xf32>
    %66 = tpu.matmul %65, %52, %cst_24 {dimension_numbers = #tpu.dot_dimension_numbers<[1], [0], [0], [1], [0, 0, 1, 1], [], []>} : vector<32x32xbf16>, vector<32x32xbf16>, vector<32x32xf32> -> vector<32x32xf32>
    %67 = vector.extract_strided_slice %44 {offsets = [0, 32], sizes = [32, 32], strides = [1, 1]} : vector<32x128xf32> to vector<32x32xf32>
    %68 = arith.truncf %67 : vector<32x32xf32> to vector<32x32xbf16>
    %69 = vector.extract_strided_slice %45 {offsets = [0, 32], sizes = [32, 32], strides = [1, 1]} : vector<32x128xf32> to vector<32x32xf32>
    %70 = arith.truncf %69 : vector<32x32xf32> to vector<32x32xbf16>
    %71 = vector.extract_strided_slice %46 {offsets = [0, 32], sizes = [32, 32], strides = [1, 1]} : vector<32x128xf32> to vector<32x32xf32>
    %72 = arith.truncf %71 : vector<32x32xf32> to vector<32x32xbf16>
    %cst_25 = arith.constant dense<0.000000e+00> : vector<32x32xf32>
    %73 = tpu.matmul %68, %70, %cst_25 {dimension_numbers = #tpu.dot_dimension_numbers<[1], [1], [0], [0], [0, 0, 1, 0], [], []>} : vector<32x32xbf16>, vector<32x32xbf16>, vector<32x32xf32> -> vector<32x32xf32>
    %74 = arith.addf %73, %9 : vector<32x32xf32>
    %cst_26 = arith.constant dense<0xFF800000> : vector<32xf32>
    %75 = vector.multi_reduction <maximumf>, %74, %cst_26 [1] : vector<32x32xf32> to vector<32xf32>
    %76 = vector.shape_cast %75 : vector<32xf32> to vector<32x1xf32>
    %77 = vector.broadcast %76 : vector<32x1xf32> to vector<32x32xf32>
    %78 = arith.subf %74, %77 : vector<32x32xf32>
    %79 = math.exp %78 : vector<32x32xf32>
    %cst_27 = arith.constant dense<0.000000e+00> : vector<32xf32>
    %80 = vector.multi_reduction <add>, %79, %cst_27 [1] : vector<32x32xf32> to vector<32xf32>
    %81 = vector.shape_cast %80 : vector<32xf32> to vector<32x1xf32>
    %82 = tpu.reciprocal %81 {approx = true} : vector<32x1xf32> -> vector<32x1xf32>
    %83 = vector.broadcast %82 : vector<32x1xf32> to vector<32x32xf32>
    %84 = arith.mulf %79, %83 : vector<32x32xf32>
    %85 = arith.truncf %84 : vector<32x32xf32> to vector<32x32xbf16>
    %cst_28 = arith.constant dense<0.000000e+00> : vector<32x32xf32>
    %86 = tpu.matmul %85, %72, %cst_28 {dimension_numbers = #tpu.dot_dimension_numbers<[1], [0], [0], [1], [0, 0, 1, 1], [], []>} : vector<32x32xbf16>, vector<32x32xbf16>, vector<32x32xf32> -> vector<32x32xf32>
    %87 = vector.extract_strided_slice %44 {offsets = [0, 64], sizes = [32, 32], strides = [1, 1]} : vector<32x128xf32> to vector<32x32xf32>
    %88 = arith.truncf %87 : vector<32x32xf32> to vector<32x32xbf16>
    %89 = vector.extract_strided_slice %45 {offsets = [0, 64], sizes = [32, 32], strides = [1, 1]} : vector<32x128xf32> to vector<32x32xf32>
    %90 = arith.truncf %89 : vector<32x32xf32> to vector<32x32xbf16>
    %91 = vector.extract_strided_slice %46 {offsets = [0, 64], sizes = [32, 32], strides = [1, 1]} : vector<32x128xf32> to vector<32x32xf32>
    %92 = arith.truncf %91 : vector<32x32xf32> to vector<32x32xbf16>
    %cst_29 = arith.constant dense<0.000000e+00> : vector<32x32xf32>
    %93 = tpu.matmul %88, %90, %cst_29 {dimension_numbers = #tpu.dot_dimension_numbers<[1], [1], [0], [0], [0, 0, 1, 0], [], []>} : vector<32x32xbf16>, vector<32x32xbf16>, vector<32x32xf32> -> vector<32x32xf32>
    %94 = arith.addf %93, %9 : vector<32x32xf32>
    %cst_30 = arith.constant dense<0xFF800000> : vector<32xf32>
    %95 = vector.multi_reduction <maximumf>, %94, %cst_30 [1] : vector<32x32xf32> to vector<32xf32>
    %96 = vector.shape_cast %95 : vector<32xf32> to vector<32x1xf32>
    %97 = vector.broadcast %96 : vector<32x1xf32> to vector<32x32xf32>
    %98 = arith.subf %94, %97 : vector<32x32xf32>
    %99 = math.exp %98 : vector<32x32xf32>
    %cst_31 = arith.constant dense<0.000000e+00> : vector<32xf32>
    %100 = vector.multi_reduction <add>, %99, %cst_31 [1] : vector<32x32xf32> to vector<32xf32>
    %101 = vector.shape_cast %100 : vector<32xf32> to vector<32x1xf32>
    %102 = tpu.reciprocal %101 {approx = true} : vector<32x1xf32> -> vector<32x1xf32>
    %103 = vector.broadcast %102 : vector<32x1xf32> to vector<32x32xf32>
    %104 = arith.mulf %99, %103 : vector<32x32xf32>
    %105 = arith.truncf %104 : vector<32x32xf32> to vector<32x32xbf16>
    %cst_32 = arith.constant dense<0.000000e+00> : vector<32x32xf32>
    %106 = tpu.matmul %105, %92, %cst_32 {dimension_numbers = #tpu.dot_dimension_numbers<[1], [0], [0], [1], [0, 0, 1, 1], [], []>} : vector<32x32xbf16>, vector<32x32xbf16>, vector<32x32xf32> -> vector<32x32xf32>
    %107 = vector.extract_strided_slice %44 {offsets = [0, 96], sizes = [32, 32], strides = [1, 1]} : vector<32x128xf32> to vector<32x32xf32>
    %108 = arith.truncf %107 : vector<32x32xf32> to vector<32x32xbf16>
    %109 = vector.extract_strided_slice %45 {offsets = [0, 96], sizes = [32, 32], strides = [1, 1]} : vector<32x128xf32> to vector<32x32xf32>
    %110 = arith.truncf %109 : vector<32x32xf32> to vector<32x32xbf16>
    %111 = vector.extract_strided_slice %46 {offsets = [0, 96], sizes = [32, 32], strides = [1, 1]} : vector<32x128xf32> to vector<32x32xf32>
    %112 = arith.truncf %111 : vector<32x32xf32> to vector<32x32xbf16>
    %cst_33 = arith.constant dense<0.000000e+00> : vector<32x32xf32>
    %113 = tpu.matmul %108, %110, %cst_33 {dimension_numbers = #tpu.dot_dimension_numbers<[1], [1], [0], [0], [0, 0, 1, 0], [], []>} : vector<32x32xbf16>, vector<32x32xbf16>, vector<32x32xf32> -> vector<32x32xf32>
    %114 = arith.addf %113, %9 : vector<32x32xf32>
    %cst_34 = arith.constant dense<0xFF800000> : vector<32xf32>
    %115 = vector.multi_reduction <maximumf>, %114, %cst_34 [1] : vector<32x32xf32> to vector<32xf32>
    %116 = vector.shape_cast %115 : vector<32xf32> to vector<32x1xf32>
    %117 = vector.broadcast %116 : vector<32x1xf32> to vector<32x32xf32>
    %118 = arith.subf %114, %117 : vector<32x32xf32>
    %119 = math.exp %118 : vector<32x32xf32>
    %cst_35 = arith.constant dense<0.000000e+00> : vector<32xf32>
    %120 = vector.multi_reduction <add>, %119, %cst_35 [1] : vector<32x32xf32> to vector<32xf32>
    %121 = vector.shape_cast %120 : vector<32xf32> to vector<32x1xf32>
    %122 = tpu.reciprocal %121 {approx = true} : vector<32x1xf32> -> vector<32x1xf32>
    %123 = vector.broadcast %122 : vector<32x1xf32> to vector<32x32xf32>
    %124 = arith.mulf %119, %123 : vector<32x32xf32>
    %125 = arith.truncf %124 : vector<32x32xf32> to vector<32x32xbf16>
    %cst_36 = arith.constant dense<0.000000e+00> : vector<32x32xf32>
    %126 = tpu.matmul %125, %112, %cst_36 {dimension_numbers = #tpu.dot_dimension_numbers<[1], [0], [0], [1], [0, 0, 1, 1], [], []>} : vector<32x32xbf16>, vector<32x32xbf16>, vector<32x32xf32> -> vector<32x32xf32>
    %127 = tpu.concatenate %66, %86, %106, %126 in 1 : vector<32x32xf32>, vector<32x32xf32>, vector<32x32xf32>, vector<32x32xf32> -> vector<32x128xf32>
    %128 = arith.truncf %127 : vector<32x128xf32> to vector<32x128xbf16>
    %c0_37 = arith.constant 0 : index
    %c0_38 = arith.constant 0 : index
    %c0_39 = arith.constant 0 : index
    %129 = vector.load %arg6[%c0_37, %c0_38, %c0_39] : memref<1x128x128xbf16, #tpu.memory_space<vmem>>, vector<1x128x128xbf16>
    %130 = vector.shape_cast %129 : vector<1x128x128xbf16> to vector<128x128xbf16>
    %cst_40 = arith.constant dense<0.000000e+00> : vector<32x128xf32>
    %131 = tpu.matmul %128, %130, %cst_40 {dimension_numbers = #tpu.dot_dimension_numbers<[1], [0], [0], [1], [0, 0, 1, 1], [], []>} : vector<32x128xbf16>, vector<128x128xbf16>, vector<32x128xf32> -> vector<32x128xf32>
    %c0_41 = arith.constant 0 : index
    %c0_42 = arith.constant 0 : index
    %c0_43 = arith.constant 0 : index
    %132 = vector.load %arg7[%c0_41, %c0_42, %c0_43] : memref<1x1x128xf32, #tpu.memory_space<vmem>>, vector<1x1x128xf32>
    %133 = vector.shape_cast %132 : vector<1x1x128xf32> to vector<1x128xf32>
    %134 = vector.broadcast %133 : vector<1x128xf32> to vector<32x128xf32>
    %135 = arith.addf %131, %134 : vector<32x128xf32>
    %136 = arith.addf %3, %135 : vector<32x128xf32>
    %c0_44 = arith.constant 0 : index
    %c0_45 = arith.constant 0 : index
    %c0_46 = arith.constant 0 : index
    %137 = vector.load %arg8[%c0_44, %c0_45, %c0_46] : memref<1x1x128xf32, #tpu.memory_space<vmem>>, vector<1x1x128xf32>
    %138 = vector.shape_cast %137 : vector<1x1x128xf32> to vector<1x128xf32>
    %c0_47 = arith.constant 0 : index
    %c0_48 = arith.constant 0 : index
    %c0_49 = arith.constant 0 : index
    %139 = vector.load %arg9[%c0_47, %c0_48, %c0_49] : memref<1x1x128xf32, #tpu.memory_space<vmem>>, vector<1x1x128xf32>
    %140 = vector.shape_cast %139 : vector<1x1x128xf32> to vector<1x128xf32>
    %cst_50 = arith.constant dense<0.000000e+00> : vector<32xf32>
    %141 = vector.multi_reduction <add>, %136, %cst_50 [1] : vector<32x128xf32> to vector<32xf32>
    %142 = vector.shape_cast %141 : vector<32xf32> to vector<32x1xf32>
    %cst_51 = arith.constant 1.280000e+02 : f32
    %143 = vector.broadcast %cst_51 : f32 to vector<32x1xf32>
    %144 = arith.divf %142, %143 : vector<32x1xf32>
    %145 = vector.broadcast %144 : vector<32x1xf32> to vector<32x128xf32>
    %146 = arith.subf %136, %145 : vector<32x128xf32>
    %147 = arith.mulf %146, %146 : vector<32x128xf32>
    %cst_52 = arith.constant dense<0.000000e+00> : vector<32xf32>
    %148 = vector.multi_reduction <add>, %147, %cst_52 [1] : vector<32x128xf32> to vector<32xf32>
    %149 = vector.shape_cast %148 : vector<32xf32> to vector<32x1xf32>
    %cst_53 = arith.constant 1.280000e+02 : f32
    %150 = vector.broadcast %cst_53 : f32 to vector<32x1xf32>
    %151 = arith.divf %149, %150 : vector<32x1xf32>
    %152 = vector.broadcast %144 : vector<32x1xf32> to vector<32x128xf32>
    %153 = arith.subf %136, %152 : vector<32x128xf32>
    %cst_54 = arith.constant 9.99999974E-6 : f32
    %154 = vector.broadcast %cst_54 : f32 to vector<32x1xf32>
    %155 = arith.addf %151, %154 : vector<32x1xf32>
    %156 = math.rsqrt %155 : vector<32x1xf32>
    %157 = vector.broadcast %156 : vector<32x1xf32> to vector<32x128xf32>
    %158 = arith.mulf %153, %157 : vector<32x128xf32>
    %159 = vector.broadcast %138 : vector<1x128xf32> to vector<32x128xf32>
    %160 = arith.mulf %158, %159 : vector<32x128xf32>
    %161 = vector.broadcast %140 : vector<1x128xf32> to vector<32x128xf32>
    %162 = arith.addf %160, %161 : vector<32x128xf32>
    %163 = arith.truncf %162 : vector<32x128xf32> to vector<32x128xbf16>
    %c0_55 = arith.constant 0 : index
    %c0_56 = arith.constant 0 : index
    %c0_57 = arith.constant 0 : index
    %164 = vector.load %arg10[%c0_55, %c0_56, %c0_57] : memref<1x128x512xbf16, #tpu.memory_space<vmem>>, vector<1x128x512xbf16>
    %165 = vector.shape_cast %164 : vector<1x128x512xbf16> to vector<128x512xbf16>
    %cst_58 = arith.constant dense<0.000000e+00> : vector<32x512xf32>
    %166 = tpu.matmul %163, %165, %cst_58 {dimension_numbers = #tpu.dot_dimension_numbers<[1], [0], [0], [1], [0, 0, 1, 1], [], []>} : vector<32x128xbf16>, vector<128x512xbf16>, vector<32x512xf32> -> vector<32x512xf32>
    %c0_59 = arith.constant 0 : index
    %c0_60 = arith.constant 0 : index
    %c0_61 = arith.constant 0 : index
    %167 = vector.load %arg11[%c0_59, %c0_60, %c0_61] : memref<1x1x512xf32, #tpu.memory_space<vmem>>, vector<1x1x512xf32>
    %168 = vector.shape_cast %167 : vector<1x1x512xf32> to vector<1x512xf32>
    %169 = vector.broadcast %168 : vector<1x512xf32> to vector<32x512xf32>
    %170 = arith.addf %166, %169 : vector<32x512xf32>
    %cst_62 = arith.constant 0.000000e+00 : f32
    %171 = vector.broadcast %cst_62 : f32 to vector<32x512xf32>
    %172 = arith.maximumf %170, %171 : vector<32x512xf32>
    %173 = arith.truncf %172 : vector<32x512xf32> to vector<32x512xbf16>
    %c0_63 = arith.constant 0 : index
    %c0_64 = arith.constant 0 : index
    %c0_65 = arith.constant 0 : index
    %174 = vector.load %arg12[%c0_63, %c0_64, %c0_65] : memref<1x512x128xbf16, #tpu.memory_space<vmem>>, vector<1x512x128xbf16>
    %175 = vector.shape_cast %174 : vector<1x512x128xbf16> to vector<512x128xbf16>
    %cst_66 = arith.constant dense<0.000000e+00> : vector<32x128xf32>
    %176 = tpu.matmul %173, %175, %cst_66 {dimension_numbers = #tpu.dot_dimension_numbers<[1], [0], [0], [1], [0, 0, 1, 1], [], []>} : vector<32x512xbf16>, vector<512x128xbf16>, vector<32x128xf32> -> vector<32x128xf32>
    %c0_67 = arith.constant 0 : index
    %c0_68 = arith.constant 0 : index
    %c0_69 = arith.constant 0 : index
    %177 = vector.load %arg13[%c0_67, %c0_68, %c0_69] : memref<1x1x128xf32, #tpu.memory_space<vmem>>, vector<1x1x128xf32>
    %178 = vector.shape_cast %177 : vector<1x1x128xf32> to vector<1x128xf32>
    %179 = vector.broadcast %178 : vector<1x128xf32> to vector<32x128xf32>
    %180 = arith.addf %176, %179 : vector<32x128xf32>
    %181 = arith.addf %136, %180 : vector<32x128xf32>
    %c0_70 = arith.constant 0 : index
    %c0_71 = arith.constant 0 : index
    %182 = vector.load %arg19[%c0_70, %c0_71] : memref<32x128xf32, #tpu.memory_space<vmem>>, vector<32x128xf32>
    tpu.vector_store %arg19[%c0_70, %c0_71], %181 {strides = array<i32>} : memref<32x128xf32, #tpu.memory_space<vmem>>, vector<32x128xf32>,
    %c1_i32 = arith.constant 1 : i32
    %183 = arith.cmpi eq, %arg0, %c1_i32 : i32
    %184 = arith.extui %183 : i1 to i32
    %c0_i32_72 = arith.constant 0 : i32
    %185 = arith.cmpi ne, %184, %c0_i32_72 : i32
    scf.if %185 {
      %c0_73 = arith.constant 0 : index
      %c0_74 = arith.constant 0 : index
      %186 = vector.load %arg14[%c0_73, %c0_74] : memref<1x128xf32, #tpu.memory_space<vmem>>, vector<1x128xf32>
      %c0_75 = arith.constant 0 : index
      %c0_76 = arith.constant 0 : index
      %187 = vector.load %arg15[%c0_75, %c0_76] : memref<1x128xf32, #tpu.memory_space<vmem>>, vector<1x128xf32>
      %cst_77 = arith.constant dense<0.000000e+00> : vector<32xf32>
      %188 = vector.multi_reduction <add>, %181, %cst_77 [1] : vector<32x128xf32> to vector<32xf32>
      %189 = vector.shape_cast %188 : vector<32xf32> to vector<32x1xf32>
      %cst_78 = arith.constant 1.280000e+02 : f32
      %190 = vector.broadcast %cst_78 : f32 to vector<32x1xf32>
      %191 = arith.divf %189, %190 : vector<32x1xf32>
      %192 = vector.broadcast %191 : vector<32x1xf32> to vector<32x128xf32>
      %193 = arith.subf %181, %192 : vector<32x128xf32>
      %194 = arith.mulf %193, %193 : vector<32x128xf32>
      %cst_79 = arith.constant dense<0.000000e+00> : vector<32xf32>
      %195 = vector.multi_reduction <add>, %194, %cst_79 [1] : vector<32x128xf32> to vector<32xf32>
      %196 = vector.shape_cast %195 : vector<32xf32> to vector<32x1xf32>
      %cst_80 = arith.constant 1.280000e+02 : f32
      %197 = vector.broadcast %cst_80 : f32 to vector<32x1xf32>
      %198 = arith.divf %196, %197 : vector<32x1xf32>
      %199 = vector.broadcast %191 : vector<32x1xf32> to vector<32x128xf32>
      %200 = arith.subf %181, %199 : vector<32x128xf32>
      %cst_81 = arith.constant 9.99999974E-6 : f32
      %201 = vector.broadcast %cst_81 : f32 to vector<32x1xf32>
      %202 = arith.addf %198, %201 : vector<32x1xf32>
      %203 = math.rsqrt %202 : vector<32x1xf32>
      %204 = vector.broadcast %203 : vector<32x1xf32> to vector<32x128xf32>
      %205 = arith.mulf %200, %204 : vector<32x128xf32>
      %206 = vector.broadcast %186 : vector<1x128xf32> to vector<32x128xf32>
      %207 = arith.mulf %205, %206 : vector<32x128xf32>
      %208 = vector.broadcast %187 : vector<1x128xf32> to vector<32x128xf32>
      %209 = arith.addf %207, %208 : vector<32x128xf32>
      %c0_82 = arith.constant 0 : index
      %c0_83 = arith.constant 0 : index
      %210 = vector.load %arg17[%c0_82, %c0_83] : memref<32x128xf32, #tpu.memory_space<vmem>>, vector<32x128xf32>
      tpu.vector_store %arg17[%c0_82, %c0_83], %209 {strides = array<i32>} : memref<32x128xf32, #tpu.memory_space<vmem>>, vector<32x128xf32>,
      %211 = vector.extract_strided_slice %209 {offsets = [31, 0], sizes = [1, 128], strides = [1, 1]} : vector<32x128xf32> to vector<1x128xf32>
      %212 = arith.truncf %211 : vector<1x128xf32> to vector<1x128xbf16>
      %c0_84 = arith.constant 0 : index
      %c0_85 = arith.constant 0 : index
      %213 = vector.load %arg16[%c0_84, %c0_85] : memref<128x128xbf16, #tpu.memory_space<vmem>>, vector<128x128xbf16>
      %cst_86 = arith.constant dense<0.000000e+00> : vector<1x128xf32>
      %214 = tpu.matmul %212, %213, %cst_86 {dimension_numbers = #tpu.dot_dimension_numbers<[1], [0], [0], [1], [0, 0, 1, 1], [], []>} : vector<1x128xbf16>, vector<128x128xbf16>, vector<1x128xf32> -> vector<1x128xf32>
      %c0_87 = arith.constant 0 : index
      %c0_88 = arith.constant 0 : index
      %215 = vector.load %arg18[%c0_87, %c0_88] : memref<1x128xf32, #tpu.memory_space<vmem>>, vector<1x128xf32>
      tpu.vector_store %arg18[%c0_87, %c0_88], %214 {strides = array<i32>} : memref<1x128xf32, #tpu.memory_space<vmem>>, vector<1x128xf32>,
    } else {
    }
    return
  }
  func.func @transform_0(%arg0: i32) -> (i32, i32) {
    %c0_i32 = arith.constant 0 : i32
    %c0_i32_0 = arith.constant 0 : i32
    %c0_i32_1 = arith.constant 0 : i32
    return %c0_i32, %c0_i32_0 : i32, i32
  }
  func.func @transform_1(%arg0: i32) -> (i32, i32, i32) {
    %c0_i32 = arith.constant 0 : i32
    %c0_i32_0 = arith.constant 0 : i32
    %c0_i32_1 = arith.constant 0 : i32
    return %arg0, %c0_i32, %c0_i32_0 : i32, i32, i32
  }
  func.func @transform_2(%arg0: i32) -> (i32, i32, i32) {
    %c0_i32 = arith.constant 0 : i32
    %c0_i32_0 = arith.constant 0 : i32
    %c0_i32_1 = arith.constant 0 : i32
    return %arg0, %c0_i32, %c0_i32_0 : i32, i32, i32
  }
  func.func @transform_3(%arg0: i32) -> (i32, i32, i32) {
    %c0_i32 = arith.constant 0 : i32
    %c0_i32_0 = arith.constant 0 : i32
    %c0_i32_1 = arith.constant 0 : i32
    return %arg0, %c0_i32, %c0_i32_0 : i32, i32, i32
  }
  func.func @transform_4(%arg0: i32) -> (i32, i32, i32) {
    %c0_i32 = arith.constant 0 : i32
    %c0_i32_0 = arith.constant 0 : i32
    %c0_i32_1 = arith.constant 0 : i32
    return %arg0, %c0_i32, %c0_i32_0 : i32, i32, i32
  }
  func.func @transform_5(%arg0: i32) -> (i32, i32, i32) {
    %c0_i32 = arith.constant 0 : i32
    %c0_i32_0 = arith.constant 0 : i32
    %c0_i32_1 = arith.constant 0 : i32
    return %arg0, %c0_i32, %c0_i32_0 : i32, i32, i32
  }
  func.func @transform_6(%arg0: i32) -> (i32, i32, i32) {
    %c0_i32 = arith.constant 0 : i32
    %c0_i32_0 = arith.constant 0 : i32
    %c0_i32_1 = arith.constant 0 : i32
    return %arg0, %c0_i32, %c0_i32_0 : i32, i32, i32
  }
  func.func @transform_7(%arg0: i32) -> (i32, i32, i32) {
    %c0_i32 = arith.constant 0 : i32
    %c0_i32_0 = arith.constant 0 : i32
    %c0_i32_1 = arith.constant 0 : i32
    return %arg0, %c0_i32, %c0_i32_0 : i32, i32, i32
  }
  func.func @transform_8(%arg0: i32) -> (i32, i32, i32) {
    %c0_i32 = arith.constant 0 : i32
    %c0_i32_0 = arith.constant 0 : i32
    %c0_i32_1 = arith.constant 0 : i32
    return %arg0, %c0_i32, %c0_i32_0 : i32, i32, i32
  }
  func.func @transform_9(%arg0: i32) -> (i32, i32, i32) {
    %c0_i32 = arith.constant 0 : i32
    %c0_i32_0 = arith.constant 0 : i32
    %c0_i32_1 = arith.constant 0 : i32
    return %arg0, %c0_i32, %c0_i32_0 : i32, i32, i32
  }
  func.func @transform_10(%arg0: i32) -> (i32, i32, i32) {
    %c0_i32 = arith.constant 0 : i32
    %c0_i32_0 = arith.constant 0 : i32
    %c0_i32_1 = arith.constant 0 : i32
    return %arg0, %c0_i32, %c0_i32_0 : i32, i32, i32
  }
  func.func @transform_11(%arg0: i32) -> (i32, i32, i32) {
    %c0_i32 = arith.constant 0 : i32
    %c0_i32_0 = arith.constant 0 : i32
    %c0_i32_1 = arith.constant 0 : i32
    return %arg0, %c0_i32, %c0_i32_0 : i32, i32, i32
  }
  func.func @transform_12(%arg0: i32) -> (i32, i32, i32) {
    %c0_i32 = arith.constant 0 : i32
    %c0_i32_0 = arith.constant 0 : i32
    %c0_i32_1 = arith.constant 0 : i32
    return %arg0, %c0_i32, %c0_i32_0 : i32, i32, i32
  }
  func.func @transform_13(%arg0: i32) -> (i32, i32) {
    %c0_i32 = arith.constant 0 : i32
    %c0_i32_0 = arith.constant 0 : i32
    %c0_i32_1 = arith.constant 0 : i32
    return %c0_i32, %c0_i32_0 : i32, i32
  }
  func.func @transform_14(%arg0: i32) -> (i32, i32) {
    %c0_i32 = arith.constant 0 : i32
    %c0_i32_0 = arith.constant 0 : i32
    %c0_i32_1 = arith.constant 0 : i32
    return %c0_i32, %c0_i32_0 : i32, i32
  }
  func.func @transform_15(%arg0: i32) -> (i32, i32) {
    %c0_i32 = arith.constant 0 : i32
    %c0_i32_0 = arith.constant 0 : i32
    %c0_i32_1 = arith.constant 0 : i32
    return %c0_i32, %c0_i32_0 : i32, i32
  }
  func.func @transform_16(%arg0: i32) -> (i32, i32) {
    %c0_i32 = arith.constant 0 : i32
    %c0_i32_0 = arith.constant 0 : i32
    %c0_i32_1 = arith.constant 0 : i32
    return %c0_i32, %c0_i32_0 : i32, i32
  }
  func.func @transform_17(%arg0: i32) -> (i32, i32) {
    %c0_i32 = arith.constant 0 : i32
    %c0_i32_0 = arith.constant 0 : i32
    %c0_i32_1 = arith.constant 0 : i32
    return %c0_i32, %c0_i32_0 : i32, i32
  }
}

</mosaic_0001>

<llo_original>
// kernel: opt_forward.1
$region0: #{opt_forward.1}
  #allocation0 [shape = 'u32[]', space=smem, size = 0x4, offset = 0x4, fixed_abs, tag = 'smem constant byte address 0x4 - core index']
  #allocation1 [shape = 'u32[144,128]{1,0:T(1,128)}', space=vmem, size = 0x12000, scoped, tag = 'internal scratch']
  #allocation2 [shape = 'f32[32,128]{1,0:T(8,128)}', space=vmem, size = 0x4000, scoped, tag = 'scratch operand']
  %s0 = inlined_call_operand.vmem [shape: f32[32,128], index: 0, kind: input, shape index: {}]
  %s1 = inlined_call_operand.vmem [shape: f32[2,1,128], index: 1, kind: input, shape index: {}]
  %s2 = inlined_call_operand.vmem [shape: f32[2,1,128], index: 2, kind: input, shape index: {}]
  %s3 = inlined_call_operand.hbm [shape: bf16[2,128,384], index: 3, kind: input, shape index: {}]
  %s4 = inlined_call_operand.vmem [shape: f32[2,1,384], index: 4, kind: input, shape index: {}]
  %s5 = inlined_call_operand.vmem [shape: bf16[2,128,128], index: 5, kind: input, shape index: {}]
  %s6 = inlined_call_operand.hbm [shape: f32[2,1,128], index: 6, kind: input, shape index: {}]
  %s7 = inlined_call_operand.hbm [shape: f32[2,1,128], index: 7, kind: input, shape index: {}]
  %s8 = inlined_call_operand.hbm [shape: f32[2,1,128], index: 8, kind: input, shape index: {}]
  %s9 = inlined_call_operand.vmem [shape: bf16[2,128,512], index: 9, kind: input, shape index: {}]
  %s10 = inlined_call_operand.vmem [shape: f32[2,1,512], index: 10, kind: input, shape index: {}]
  %s11 = inlined_call_operand.hbm [shape: bf16[2,512,128], index: 11, kind: input, shape index: {}]
  %s12 = inlined_call_operand.hbm [shape: f32[2,1,128], index: 12, kind: input, shape index: {}]
  %s13 = inlined_call_operand.hbm [shape: f32[1,128], index: 13, kind: input, shape index: {}]
  %s14 = inlined_call_operand.hbm [shape: f32[1,128], index: 14, kind: input, shape index: {}]
  %s15 = inlined_call_operand.vmem [shape: bf16[128,128], index: 15, kind: input, shape index: {}]
  %s16 = inlined_call_operand.hbm [shape: f32[32,128], index: 16, kind: output, shape index: {0}]
  %s17 = inlined_call_operand.hbm [shape: f32[1,128], index: 17, kind: output, shape index: {1}]
  %18 = xla_tuple %s16, %s17
  %s19 = sld [smem:[#allocation0]]
  $region145: #{opt_forward.1} parent=0
    _
  %s21 = ssub.s32 1, %s19
  %s22 = scalar_select 0, %s21, %s19
  $region1: #{opt_forward.1} parent=0
    #allocation3 [shape = 'u8[196608]{0}', space=vmem, size = 0x30000, scoped, tag = 'input window, operand 3']
    #allocation4 [shape = 's32[2]{0}', space=sflag, size = 0x8, scoped, tag = 'scoped memory for opt_forward.1']
    #allocation5 [shape = 's32[2]{0}', space=sflag, size = 0x8, scoped, tag = 'scoped memory for opt_forward.1']
    #allocation6 [shape = 'u8[1024]{0}', space=vmem, size = 0x400, scoped, tag = 'input window, operand 6']
    #allocation7 [shape = 's32[2]{0}', space=sflag, size = 0x8, scoped, tag = 'scoped memory for opt_forward.1']
    #allocation8 [shape = 'u8[1024]{0}', space=vmem, size = 0x400, scoped, tag = 'input window, operand 7']
    #allocation9 [shape = 'u8[1024]{0}', space=vmem, size = 0x400, scoped, tag = 'input window, operand 8']
    #allocation10 [shape = 's32[2]{0}', space=sflag, size = 0x8, scoped, tag = 'scoped memory for opt_forward.1']
    #allocation11 [shape = 'u8[262144]{0}', space=vmem, size = 0x40000, scoped, tag = 'input window, operand 11']
    #allocation12 [shape = 'u8[1024]{0}', space=vmem, size = 0x400, scoped, tag = 'input window, operand 12']
    #allocation13 [shape = 's32[2]{0}', space=sflag, size = 0x8, scoped, tag = 'scoped memory for opt_forward.1']
    #allocation14 [shape = 'u8[512]{0}', space=vmem, size = 0x400, scoped, tag = 'input window, operand 13, single buffered']
    #allocation15 [shape = 'u8[512]{0}', space=vmem, size = 0x400, scoped, tag = 'input window, operand 14, single buffered']
    #allocation16 [shape = 's32[1]{0}', space=sflag, size = 0x4, scoped, tag = 'scoped memory for opt_forward.1']
    #allocation17 [shape = 'u8[16384]{0}', space=vmem, size = 0x4000, scoped, tag = 'output window, operand 0, single buffered']
    #allocation18 [shape = 'u8[512]{0}', space=vmem, size = 0x400, scoped, tag = 'output window, operand 1, single buffered']
    #allocation19 [shape = 's32[1]{0}', space=sflag, size = 0x4, scoped, tag = 'scoped memory for opt_forward.1']
    %23 = vsyncpa [#allocation4], 0
    %s24 = scalar_lea.sflag [#allocation4], 1
    %25 = vsyncpa %s24, 0
    %26 = vsyncpa [#allocation7], 0
    %s27 = scalar_lea.sflag [#allocation7], 1
    %28 = vsyncpa %s27, 0
    %29 = vsyncpa [#allocation10], 0
    %s30 = scalar_lea.sflag [#allocation10], 1
    %31 = vsyncpa %s30, 0
    %32 = vsyncpa [#allocation13], 0
    %s33 = scalar_lea.sflag [#allocation13], 1
    %34 = vsyncpa %s33, 0
    %35 = vsyncpa [#allocation16], 0
    %36 = vsyncpa [#allocation5], 0
    %37 = vsyncpa [#allocation19], 0
    loop: start=0, step=1, limit=4
    $region2: #{opt_forward.1} parent=1 // loop_pre_header
      _
    $region3: #{opt_forward.1} parent=1 // loop_header
      %s39 = sphi 0, %s43
      %p40 = scmp.ge.s32.totalorder %s39, 4
      %s47 = sphi 0, %s47
      %s49 = sphi 0, %s47
      %s50 = sphi 0, %s49
      %s64 = sphi 0, %s50
      %s70 = sphi 0, %s72
      %s73 = sphi 0, %s70
      %s74 = sphi 0, %s73
      %s90 = sphi 0, %s74
      %s96 = sphi 0, %s98
      %s99 = sphi 0, %s96
      %s100 = sphi 0, %s99
      %s116 = sphi 0, %s100
      %s122 = sphi 0, %s124
      %s125 = sphi 0, %s122
      %s126 = sphi 0, %s125
      %s142 = sphi 0, %s126
      %s148 = sphi 0, %s150
      %s151 = sphi 0, %s148
      %s152 = sphi 0, %s151
      %s168 = sphi 0, %s152
      %s174 = sphi 0, %s176
      %s177 = sphi 0, %s174
      %s178 = sphi 0, %s177
      %s194 = sphi 0, %s178
      %s200 = sphi 0, %s202
      %s203 = sphi 0, %s200
      %s204 = sphi 0, %s203
      %s220 = sphi 0, %s204
      %s226 = sphi 0, %s228
      %s229 = sphi 0, %s226
      %s230 = sphi 0, %s229
      %s246 = sphi 0, %s230
      %s252 = sphi 0, %s254
      %s255 = sphi 0, %s252
      %s256 = sphi 0, %s255
      %s272 = sphi 0, %s256
      %s278 = sphi 0, %s280
      %s281 = sphi 0, %s278
      %s282 = sphi 0, %s281
      %s298 = sphi 0, %s282
      %s304 = sphi 0, %s306
      %s307 = sphi 0, %s304
      %s308 = sphi 0, %s307
      %s324 = sphi 0, %s308
      %s330 = sphi 0, %s332
      %s333 = sphi 0, %s330
      %s334 = sphi 0, %s333
      %s350 = sphi 0, %s334
      %s356 = sphi 0, %s358
      %s359 = sphi 0, %s356
      %s360 = sphi 0, %s359
      %s376 = sphi 0, %s360
      %s380 = sphi 0, %s380
      %s382 = sphi 0, %s380
      %s383 = sphi 0, %s382
      %s397 = sphi 0, %s383
      %s401 = sphi 0, %s401
      %s403 = sphi 0, %s401
      %s404 = sphi 0, %s403
      %s418 = sphi 0, %s404
      %s422 = sphi 0, %s422
      %s424 = sphi 0, %s422
      %s425 = sphi 0, %s424
      %s439 = sphi 0, %s425
      %s443 = sphi 0, %s443
      %s445 = sphi 0, %s443
      %s446 = sphi 0, %s445
      %s460 = sphi 0, %s446
      %s464 = sphi 0, %s464
      %s466 = sphi 0, %s464
      %s467 = sphi 0, %s466
      %s481 = sphi 0, %s467
    $region4: #{opt_forward.1} parent=1 // loop_header_branch
      %42 = sbr.rel (%p40) target = $region8
    $region5: #{opt_forward.1} parent=1 // loop_body
      %s44 = ssub.s32 %s39, 1
      %s45 = ssub.s32 %s39, 2
      %s46 = sadd.s32 %s39, 1
      %s48 = sadd.s32 %s47, 1
      %p51 = scmp.eq.s32.totalorder %s39, 1
      %p52 = scmp.ne.s32.totalorder %s47, %s49
      %p53 = scmp.eq.s32.totalorder %s39, 0
      %p54 = por %p52, %p53
      %p55 = scmp.ne.s32.totalorder %s47, %s49
      %p56 = scmp.eq.s32.totalorder %s44, 1
      %p57 = por %p55, %p56
      %p58 = scmp.ne.s32.totalorder %s49, %s50
      %p59 = scmp.eq.s32.totalorder %s44, 0
      %p60 = por %p58, %p59
      %p61 = scmp.ne.s32.totalorder %s49, %s50
      %p62 = scmp.eq.s32.totalorder %s45, 1
      %p63 = por %p61, %p62
      %p65 = scmp.ne.s32.totalorder %s50, %s64
      %p66 = scmp.eq.s32.totalorder %s45, 0
      %p67 = por %p65, %p66
      %s68 = ssub.s32 %s39, %s46
      %p69 = scmp.eq.s32.totalorder %s68, 0
      %s71 = sadd.s32 %s70, 1
      %s72 = scalar_select %p69, %s70, %s71
      %p75 = pneg %p69
      %p76 = scmp.eq.s32.totalorder %s39, 1
      %p77 = por %p75, %p76
      %p78 = scmp.ne.s32.totalorder %s70, %s73
      %p79 = scmp.eq.s32.totalorder %s39, 0
      %p80 = por %p78, %p79
      %p81 = scmp.ne.s32.totalorder %s70, %s73
      %p82 = scmp.eq.s32.totalorder %s44, 1
      %p83 = por %p81, %p82
      %p84 = scmp.ne.s32.totalorder %s73, %s74
      %p85 = scmp.eq.s32.totalorder %s44, 0
      %p86 = por %p84, %p85
      %p87 = scmp.ne.s32.totalorder %s73, %s74
      %p88 = scmp.eq.s32.totalorder %s45, 1
      %p89 = por %p87, %p88
      %p91 = scmp.ne.s32.totalorder %s74, %s90
      %p92 = scmp.eq.s32.totalorder %s45, 0
      %p93 = por %p91, %p92
      %s94 = ssub.s32 %s39, %s46
      %p95 = scmp.eq.s32.totalorder %s94, 0
      %s97 = sadd.s32 %s96, 1
      %s98 = scalar_select %p95, %s96, %s97
      %p101 = pneg %p95
      %p102 = scmp.eq.s32.totalorder %s39, 1
      %p103 = por %p101, %p102
      %p104 = scmp.ne.s32.totalorder %s96, %s99
      %p105 = scmp.eq.s32.totalorder %s39, 0
      %p106 = por %p104, %p105
      %p107 = scmp.ne.s32.totalorder %s96, %s99
      %p108 = scmp.eq.s32.totalorder %s44, 1
      %p109 = por %p107, %p108
      %p110 = scmp.ne.s32.totalorder %s99, %s100
      %p111 = scmp.eq.s32.totalorder %s44, 0
      %p112 = por %p110, %p111
      %p113 = scmp.ne.s32.totalorder %s99, %s100
      %p114 = scmp.eq.s32.totalorder %s45, 1
      %p115 = por %p113, %p114
      %p117 = scmp.ne.s32.totalorder %s100, %s116
      %p118 = scmp.eq.s32.totalorder %s45, 0
      %p119 = por %p117, %p118
      %s120 = ssub.s32 %s39, %s46
      %p121 = scmp.eq.s32.totalorder %s120, 0
      %s123 = sadd.s32 %s122, 1
      %s124 = scalar_select %p121, %s122, %s123
      %p127 = pneg %p121
      %p128 = scmp.eq.s32.totalorder %s39, 1
      %p129 = por %p127, %p128
      %p130 = scmp.ne.s32.totalorder %s122, %s125
      %p131 = scmp.eq.s32.totalorder %s39, 0
      %p132 = por %p130, %p131
      %p133 = scmp.ne.s32.totalorder %s122, %s125
      %p134 = scmp.eq.s32.totalorder %s44, 1
      %p135 = por %p133, %p134
      %p136 = scmp.ne.s32.totalorder %s125, %s126
      %p137 = scmp.eq.s32.totalorder %s44, 0
      %p138 = por %p136, %p137
      %p139 = scmp.ne.s32.totalorder %s125, %s126
      %p140 = scmp.eq.s32.totalorder %s45, 1
      %p141 = por %p139, %p140
      %p143 = scmp.ne.s32.totalorder %s126, %s142
      %p144 = scmp.eq.s32.totalorder %s45, 0
      %p145 = por %p143, %p144
      %s146 = ssub.s32 %s39, %s46
      %p147 = scmp.eq.s32.totalorder %s146, 0
      %s149 = sadd.s32 %s148, 1
      %s150 = scalar_select %p147, %s148, %s149
      %p153 = pneg %p147
      %p154 = scmp.eq.s32.totalorder %s39, 1
      %p155 = por %p153, %p154
      %p156 = scmp.ne.s32.totalorder %s148, %s151
      %p157 = scmp.eq.s32.totalorder %s39, 0
      %p158 = por %p156, %p157
      %p159 = scmp.ne.s32.totalorder %s148, %s151
      %p160 = scmp.eq.s32.totalorder %s44, 1
      %p161 = por %p159, %p160
      %p162 = scmp.ne.s32.totalorder %s151, %s152
      %p163 = scmp.eq.s32.totalorder %s44, 0
      %p164 = por %p162, %p163
      %p165 = scmp.ne.s32.totalorder %s151, %s152
      %p166 = scmp.eq.s32.totalorder %s45, 1
      %p167 = por %p165, %p166
      %p169 = scmp.ne.s32.totalorder %s152, %s168
      %p170 = scmp.eq.s32.totalorder %s45, 0
      %p171 = por %p169, %p170
      %s172 = ssub.s32 %s39, %s46
      %p173 = scmp.eq.s32.totalorder %s172, 0
      %s175 = sadd.s32 %s174, 1
      %s176 = scalar_select %p173, %s174, %s175
      %p179 = pneg %p173
      %p180 = scmp.eq.s32.totalorder %s39, 1
      %p181 = por %p179, %p180
      %p182 = scmp.ne.s32.totalorder %s174, %s177
      %p183 = scmp.eq.s32.totalorder %s39, 0
      %p184 = por %p182, %p183
      %p185 = scmp.ne.s32.totalorder %s174, %s177
      %p186 = scmp.eq.s32.totalorder %s44, 1
      %p187 = por %p185, %p186
      %p188 = scmp.ne.s32.totalorder %s177, %s178
      %p189 = scmp.eq.s32.totalorder %s44, 0
      %p190 = por %p188, %p189
      %p191 = scmp.ne.s32.totalorder %s177, %s178
      %p192 = scmp.eq.s32.totalorder %s45, 1
      %p193 = por %p191, %p192
      %p195 = scmp.ne.s32.totalorder %s178, %s194
      %p196 = scmp.eq.s32.totalorder %s45, 0
      %p197 = por %p195, %p196
      %s198 = ssub.s32 %s39, %s46
      %p199 = scmp.eq.s32.totalorder %s198, 0
      %s201 = sadd.s32 %s200, 1
      %s202 = scalar_select %p199, %s200, %s201
      %p205 = pneg %p199
      %p206 = scmp.eq.s32.totalorder %s39, 1
      %p207 = por %p205, %p206
      %p208 = scmp.ne.s32.totalorder %s200, %s203
      %p209 = scmp.eq.s32.totalorder %s39, 0
      %p210 = por %p208, %p209
      %p211 = scmp.ne.s32.totalorder %s200, %s203
      %p212 = scmp.eq.s32.totalorder %s44, 1
      %p213 = por %p211, %p212
      %p214 = scmp.ne.s32.totalorder %s203, %s204
      %p215 = scmp.eq.s32.totalorder %s44, 0
      %p216 = por %p214, %p215
      %p217 = scmp.ne.s32.totalorder %s203, %s204
      %p218 = scmp.eq.s32.totalorder %s45, 1
      %p219 = por %p217, %p218
      %p221 = scmp.ne.s32.totalorder %s204, %s220
      %p222 = scmp.eq.s32.totalorder %s45, 0
      %p223 = por %p221, %p222
      %s224 = ssub.s32 %s39, %s46
      %p225 = scmp.eq.s32.totalorder %s224, 0
      %s227 = sadd.s32 %s226, 1
      %s228 = scalar_select %p225, %s226, %s227
      %p231 = pneg %p225
      %p232 = scmp.eq.s32.totalorder %s39, 1
      %p233 = por %p231, %p232
      %p234 = scmp.ne.s32.totalorder %s226, %s229
      %p235 = scmp.eq.s32.totalorder %s39, 0
      %p236 = por %p234, %p235
      %p237 = scmp.ne.s32.totalorder %s226, %s229
      %p238 = scmp.eq.s32.totalorder %s44, 1
      %p239 = por %p237, %p238
      %p240 = scmp.ne.s32.totalorder %s229, %s230
      %p241 = scmp.eq.s32.totalorder %s44, 0
      %p242 = por %p240, %p241
      %p243 = scmp.ne.s32.totalorder %s229, %s230
      %p244 = scmp.eq.s32.totalorder %s45, 1
      %p245 = por %p243, %p244
      %p247 = scmp.ne.s32.totalorder %s230, %s246
      %p248 = scmp.eq.s32.totalorder %s45, 0
      %p249 = por %p247, %p248
      %s250 = ssub.s32 %s39, %s46
      %p251 = scmp.eq.s32.totalorder %s250, 0
      %s253 = sadd.s32 %s252, 1
      %s254 = scalar_select %p251, %s252, %s253
      %p257 = pneg %p251
      %p258 = scmp.eq.s32.totalorder %s39, 1
      %p259 = por %p257, %p258
      %p260 = scmp.ne.s32.totalorder %s252, %s255
      %p261 = scmp.eq.s32.totalorder %s39, 0
      %p262 = por %p260, %p261
      %p263 = scmp.ne.s32.totalorder %s252, %s255
      %p264 = scmp.eq.s32.totalorder %s44, 1
      %p265 = por %p263, %p264
      %p266 = scmp.ne.s32.totalorder %s255, %s256
      %p267 = scmp.eq.s32.totalorder %s44, 0
      %p268 = por %p266, %p267
      %p269 = scmp.ne.s32.totalorder %s255, %s256
      %p270 = scmp.eq.s32.totalorder %s45, 1
      %p271 = por %p269, %p270
      %p273 = scmp.ne.s32.totalorder %s256, %s272
      %p274 = scmp.eq.s32.totalorder %s45, 0
      %p275 = por %p273, %p274
      %s276 = ssub.s32 %s39, %s46
      %p277 = scmp.eq.s32.totalorder %s276, 0
      %s279 = sadd.s32 %s278, 1
      %s280 = scalar_select %p277, %s278, %s279
      %p283 = pneg %p277
      %p284 = scmp.eq.s32.totalorder %s39, 1
      %p285 = por %p283, %p284
      %p286 = scmp.ne.s32.totalorder %s278, %s281
      %p287 = scmp.eq.s32.totalorder %s39, 0
      %p288 = por %p286, %p287
      %p289 = scmp.ne.s32.totalorder %s278, %s281
      %p290 = scmp.eq.s32.totalorder %s44, 1
      %p291 = por %p289, %p290
      %p292 = scmp.ne.s32.totalorder %s281, %s282
      %p293 = scmp.eq.s32.totalorder %s44, 0
      %p294 = por %p292, %p293
      %p295 = scmp.ne.s32.totalorder %s281, %s282
      %p296 = scmp.eq.s32.totalorder %s45, 1
      %p297 = por %p295, %p296
      %p299 = scmp.ne.s32.totalorder %s282, %s298
      %p300 = scmp.eq.s32.totalorder %s45, 0
      %p301 = por %p299, %p300
      %s302 = ssub.s32 %s39, %s46
      %p303 = scmp.eq.s32.totalorder %s302, 0
      %s305 = sadd.s32 %s304, 1
      %s306 = scalar_select %p303, %s304, %s305
      %p309 = pneg %p303
      %p310 = scmp.eq.s32.totalorder %s39, 1
      %p311 = por %p309, %p310
      %p312 = scmp.ne.s32.totalorder %s304, %s307
      %p313 = scmp.eq.s32.totalorder %s39, 0
      %p314 = por %p312, %p313
      %p315 = scmp.ne.s32.totalorder %s304, %s307
      %p316 = scmp.eq.s32.totalorder %s44, 1
      %p317 = por %p315, %p316
      %p318 = scmp.ne.s32.totalorder %s307, %s308
      %p319 = scmp.eq.s32.totalorder %s44, 0
      %p320 = por %p318, %p319
      %p321 = scmp.ne.s32.totalorder %s307, %s308
      %p322 = scmp.eq.s32.totalorder %s45, 1
      %p323 = por %p321, %p322
      %p325 = scmp.ne.s32.totalorder %s308, %s324
      %p326 = scmp.eq.s32.totalorder %s45, 0
      %p327 = por %p325, %p326
      %s328 = ssub.s32 %s39, %s46
      %p329 = scmp.eq.s32.totalorder %s328, 0
      %s331 = sadd.s32 %s330, 1
      %s332 = scalar_select %p329, %s330, %s331
      %p335 = pneg %p329
      %p336 = scmp.eq.s32.totalorder %s39, 1
      %p337 = por %p335, %p336
      %p338 = scmp.ne.s32.totalorder %s330, %s333
      %p339 = scmp.eq.s32.totalorder %s39, 0
      %p340 = por %p338, %p339
      %p341 = scmp.ne.s32.totalorder %s330, %s333
      %p342 = scmp.eq.s32.totalorder %s44, 1
      %p343 = por %p341, %p342
      %p344 = scmp.ne.s32.totalorder %s333, %s334
      %p345 = scmp.eq.s32.totalorder %s44, 0
      %p346 = por %p344, %p345
      %p347 = scmp.ne.s32.totalorder %s333, %s334
      %p348 = scmp.eq.s32.totalorder %s45, 1
      %p349 = por %p347, %p348
      %p351 = scmp.ne.s32.totalorder %s334, %s350
      %p352 = scmp.eq.s32.totalorder %s45, 0
      %p353 = por %p351, %p352
      %s354 = ssub.s32 %s39, %s46
      %p355 = scmp.eq.s32.totalorder %s354, 0
      %s357 = sadd.s32 %s356, 1
      %s358 = scalar_select %p355, %s356, %s357
      %p361 = pneg %p355
      %p362 = scmp.eq.s32.totalorder %s39, 1
      %p363 = por %p361, %p362
      %p364 = scmp.ne.s32.totalorder %s356, %s359
      %p365 = scmp.eq.s32.totalorder %s39, 0
      %p366 = por %p364, %p365
      %p367 = scmp.ne.s32.totalorder %s356, %s359
      %p368 = scmp.eq.s32.totalorder %s44, 1
      %p369 = por %p367, %p368
      %p370 = scmp.ne.s32.totalorder %s359, %s360
      %p371 = scmp.eq.s32.totalorder %s44, 0
      %p372 = por %p370, %p371
      %p373 = scmp.ne.s32.totalorder %s359, %s360
      %p374 = scmp.eq.s32.totalorder %s45, 1
      %p375 = por %p373, %p374
      %p377 = scmp.ne.s32.totalorder %s360, %s376
      %p378 = scmp.eq.s32.totalorder %s45, 0
      %p379 = por %p377, %p378
      %s381 = sadd.s32 %s380, 1
      %p384 = scmp.eq.s32.totalorder %s39, 1
      %p385 = scmp.ne.s32.totalorder %s380, %s382
      %p386 = scmp.eq.s32.totalorder %s39, 0
      %p387 = por %p385, %p386
      %p388 = scmp.ne.s32.totalorder %s380, %s382
      %p389 = scmp.eq.s32.totalorder %s44, 1
      %p390 = por %p388, %p389
      %p391 = scmp.ne.s32.totalorder %s382, %s383
      %p392 = scmp.eq.s32.totalorder %s44, 0
      %p393 = por %p391, %p392
      %p394 = scmp.ne.s32.totalorder %s382, %s383
      %p395 = scmp.eq.s32.totalorder %s45, 1
      %p396 = por %p394, %p395
      %p398 = scmp.ne.s32.totalorder %s383, %s397
      %p399 = scmp.eq.s32.totalorder %s45, 0
      %p400 = por %p398, %p399
      %s402 = sadd.s32 %s401, 1
      %p405 = scmp.eq.s32.totalorder %s39, 1
      %p406 = scmp.ne.s32.totalorder %s401, %s403
      %p407 = scmp.eq.s32.totalorder %s39, 0
      %p408 = por %p406, %p407
      %p409 = scmp.ne.s32.totalorder %s401, %s403
      %p410 = scmp.eq.s32.totalorder %s44, 1
      %p411 = por %p409, %p410
      %p412 = scmp.ne.s32.totalorder %s403, %s404
      %p413 = scmp.eq.s32.totalorder %s44, 0
      %p414 = por %p412, %p413
      %p415 = scmp.ne.s32.totalorder %s403, %s404
      %p416 = scmp.eq.s32.totalorder %s45, 1
      %p417 = por %p415, %p416
      %p419 = scmp.ne.s32.totalorder %s404, %s418
      %p420 = scmp.eq.s32.totalorder %s45, 0
      %p421 = por %p419, %p420
      %s423 = sadd.s32 %s422, 1
      %p426 = scmp.eq.s32.totalorder %s39, 1
      %p427 = scmp.ne.s32.totalorder %s422, %s424
      %p428 = scmp.eq.s32.totalorder %s39, 0
      %p429 = por %p427, %p428
      %p430 = scmp.ne.s32.totalorder %s422, %s424
      %p431 = scmp.eq.s32.totalorder %s44, 1
      %p432 = por %p430, %p431
      %p433 = scmp.ne.s32.totalorder %s424, %s425
      %p434 = scmp.eq.s32.totalorder %s44, 0
      %p435 = por %p433, %p434
      %p436 = scmp.ne.s32.totalorder %s424, %s425
      %p437 = scmp.eq.s32.totalorder %s45, 1
      %p438 = por %p436, %p437
      %p440 = scmp.ne.s32.totalorder %s425, %s439
      %p441 = scmp.eq.s32.totalorder %s45, 0
      %p442 = por %p440, %p441
      %s444 = sadd.s32 %s443, 1
      %p447 = scmp.eq.s32.totalorder %s39, 1
      %p448 = scmp.ne.s32.totalorder %s443, %s445
      %p449 = scmp.eq.s32.totalorder %s39, 0
      %p450 = por %p448, %p449
      %p451 = scmp.ne.s32.totalorder %s443, %s445
      %p452 = scmp.eq.s32.totalorder %s44, 1
      %p453 = por %p451, %p452
      %p454 = scmp.ne.s32.totalorder %s445, %s446
      %p455 = scmp.eq.s32.totalorder %s44, 0
      %p456 = por %p454, %p455
      %p457 = scmp.ne.s32.totalorder %s445, %s446
      %p458 = scmp.eq.s32.totalorder %s45, 1
      %p459 = por %p457, %p458
      %p461 = scmp.ne.s32.totalorder %s446, %s460
      %p462 = scmp.eq.s32.totalorder %s45, 0
      %p463 = por %p461, %p462
      %s465 = sadd.s32 %s464, 1
      %p468 = scmp.eq.s32.totalorder %s39, 1
      %p469 = scmp.ne.s32.totalorder %s464, %s466
      %p470 = scmp.eq.s32.totalorder %s39, 0
      %p471 = por %p469, %p470
      %p472 = scmp.ne.s32.totalorder %s464, %s466
      %p473 = scmp.eq.s32.totalorder %s44, 1
      %p474 = por %p472, %p473
      %p475 = scmp.ne.s32.totalorder %s466, %s467
      %p476 = scmp.eq.s32.totalorder %s44, 0
      %p477 = por %p475, %p476
      %p478 = scmp.ne.s32.totalorder %s466, %s467
      %p479 = scmp.eq.s32.totalorder %s45, 1
      %p480 = por %p478, %p479
      %p482 = scmp.ne.s32.totalorder %s467, %s481
      %p483 = scmp.eq.s32.totalorder %s45, 0
      %p484 = por %p482, %p483
      %p485 = scmp.le.s32.totalorder 1, %s39
      %p486 = scmp.lt.s32.totalorder %s39, 3
      %p487 = pnand %p485, %p486
      %p488 = pneg %p487
      // Predicated region
      $region9: #{opt_forward.1} parent=5 // pred_check
        _
      $region10: #{opt_forward.1} parent=5 // pred_check_branch
        %490 = sbr.rel (%p487) target = $region12
      $region11: #{opt_forward.1} parent=5 // pred_region
        %s491 = ssub.s32 %s39, 1
        // Predicated region
        $region13: #{opt_forward.1} parent=11 // pred_check
          %p492 = pneg %p60
        $region14: #{opt_forward.1} parent=11 // pred_check_branch
          %494 = sbr.rel (%p492) target = $region16
        $region15: #{opt_forward.1} parent=11 // pred_region
          _
        $region16: #{opt_forward.1} parent=11 // pred_fallthru
          _
        // Predicated region
        $region17: #{opt_forward.1} parent=11 // pred_check
          %p495 = pneg %p393
        $region18: #{opt_forward.1} parent=11 // pred_check_branch
          %497 = sbr.rel (%p495) target = $region20
        $region19: #{opt_forward.1} parent=11 // pred_region
          %s499 = ssub.s32 16, 16
          %500 = vsyncadd [#allocation13], %s499
          %s502 = sshll.u32 [#allocation14], 4
          %s503 = int_to_ptr.vmem [resolvable:$true] %s502
          %505 = dma.hbm_to_vmem [thread:$0]  %s13, 16, %s503, [#allocation13]
        $region20: #{opt_forward.1} parent=11 // pred_fallthru
          _
        // Predicated region
        $region21: #{opt_forward.1} parent=11 // pred_check
          %p506 = pneg %p414
        $region22: #{opt_forward.1} parent=11 // pred_check_branch
          %508 = sbr.rel (%p506) target = $region24
        $region23: #{opt_forward.1} parent=11 // pred_region
          %s510 = ssub.s32 16, 16
          %511 = vsyncadd [#allocation16], %s510
          %s513 = sshll.u32 [#allocation15], 4
          %s514 = int_to_ptr.vmem [resolvable:$true] %s513
          %516 = dma.hbm_to_vmem [thread:$0]  %s14, 16, %s514, [#allocation16]
        $region24: #{opt_forward.1} parent=11 // pred_fallthru
          _
        // Predicated region
        $region25: #{opt_forward.1} parent=11 // pred_check
          %p517 = pneg %p435
        $region26: #{opt_forward.1} parent=11 // pred_check_branch
          %519 = sbr.rel (%p517) target = $region28
        $region27: #{opt_forward.1} parent=11 // pred_region
          _
        $region28: #{opt_forward.1} parent=11 // pred_fallthru
          _
      $region12: #{opt_forward.1} parent=5 // pred_fallthru
        _
      %p520 = scmp.lt.s32.totalorder %s39, 2
      // Predicated region
      $region29: #{opt_forward.1} parent=5 // pred_check
        %p521 = pneg %p520
      $region30: #{opt_forward.1} parent=5 // pred_check_branch
        %523 = sbr.rel (%p521) target = $region32
      $region31: #{opt_forward.1} parent=5 // pred_region
        // Predicated region
        $region33: #{opt_forward.1} parent=31 // pred_check
          %p524 = pneg %p80
        $region34: #{opt_forward.1} parent=31 // pred_check_branch
          %526 = sbr.rel (%p524) target = $region36
        $region35: #{opt_forward.1} parent=31 // pred_region
          %p527 = scmp.lt.s32.totalorder %s39, 1
          %s528 = scalar_select %p527, %s39, 1
          %s529 = scalar_lea.vmem %s1, %s528
        $region36: #{opt_forward.1} parent=31 // pred_fallthru
          _
        // Predicated region
        $region37: #{opt_forward.1} parent=31 // pred_check
          %p530 = pneg %p106
        $region38: #{opt_forward.1} parent=31 // pred_check_branch
          %532 = sbr.rel (%p530) target = $region40
        $region39: #{opt_forward.1} parent=31 // pred_region
          %p533 = scmp.lt.s32.totalorder %s39, 1
          %s534 = scalar_select %p533, %s39, 1
          %s535 = scalar_lea.vmem %s2, %s534
        $region40: #{opt_forward.1} parent=31 // pred_fallthru
          _
        // Predicated region
        $region41: #{opt_forward.1} parent=31 // pred_check
          %p536 = pneg %p132
        $region42: #{opt_forward.1} parent=31 // pred_check_branch
          %538 = sbr.rel (%p536) target = $region44
        $region43: #{opt_forward.1} parent=31 // pred_region
          %s539 = sand.u32 %s122, 1
          %s540 = scalar_lea.sflag [#allocation4], %s539
          %s541 = sand.u32 %s122, 1
          %s542 = smul.addr %s541, 192
          %s543 = scalar_lea.vmem [#allocation3], %s542
          %s545 = ssub.s32 3072, 3072
          %546 = vsyncadd %s540, %s545
          %s547 = smul.addr %s39, 48
          %s548 = smul.addr %s547, 64
          %s549 = scalar_lea.hbm %s3, %s548
          %s550 = sshll.u32 %s543, 4
          %s551 = int_to_ptr.vmem [resolvable:$true] %s550
          %556 = dma.hbm_to_vmem [thread:$0]  %s549, 3072, %s551, %s540, 192, 192, 12
        $region44: #{opt_forward.1} parent=31 // pred_fallthru
          _
        // Predicated region
        $region45: #{opt_forward.1} parent=31 // pred_check
          %p557 = pneg %p158
        $region46: #{opt_forward.1} parent=31 // pred_check_branch
          %559 = sbr.rel (%p557) target = $region48
        $region47: #{opt_forward.1} parent=31 // pred_region
          %p560 = scmp.lt.s32.totalorder %s39, 1
          %s561 = scalar_select %p560, %s39, 1
          %s562 = smul.addr %s561, 3
          %s563 = scalar_lea.vmem %s4, %s562
        $region48: #{opt_forward.1} parent=31 // pred_fallthru
          _
        // Predicated region
        $region49: #{opt_forward.1} parent=31 // pred_check
          %p564 = pneg %p184
        $region50: #{opt_forward.1} parent=31 // pred_check_branch
          %566 = sbr.rel (%p564) target = $region52
        $region51: #{opt_forward.1} parent=31 // pred_region
          %p567 = scmp.lt.s32.totalorder %s39, 1
          %s568 = scalar_select %p567, %s39, 1
          %s569 = smul.addr %s568, 16
          %s570 = smul.addr %s569, 4
          %s571 = scalar_lea.vmem %s5, %s570
        $region52: #{opt_forward.1} parent=31 // pred_fallthru
          _
        // Predicated region
        $region53: #{opt_forward.1} parent=31 // pred_check
          %p572 = pneg %p210
        $region54: #{opt_forward.1} parent=31 // pred_check_branch
          %574 = sbr.rel (%p572) target = $region56
        $region55: #{opt_forward.1} parent=31 // pred_region
          %s575 = sand.u32 %s39, 1
          %s576 = scalar_lea.sflag [#allocation7], %s575
          %s577 = sand.u32 %s200, 1
          %s578 = scalar_lea.vmem [#allocation6], %s577
          %s580 = ssub.s32 16, 16
          %581 = vsyncadd %s576, %s580
          %s582 = smul.addr %s39, 16
          %s583 = scalar_lea.hbm %s6, %s582
          %s585 = sshll.u32 %s578, 4
          %s586 = int_to_ptr.vmem [resolvable:$true] %s585
          %588 = dma.hbm_to_vmem [thread:$0]  %s583, 16, %s586, %s576
        $region56: #{opt_forward.1} parent=31 // pred_fallthru
          _
        // Predicated region
        $region57: #{opt_forward.1} parent=31 // pred_check
          %p589 = pneg %p236
        $region58: #{opt_forward.1} parent=31 // pred_check_branch
          %591 = sbr.rel (%p589) target = $region60
        $region59: #{opt_forward.1} parent=31 // pred_region
          %s592 = sand.u32 %s39, 1
          %s593 = scalar_lea.sflag [#allocation7], %s592
          %s594 = sand.u32 %s226, 1
          %s595 = scalar_lea.vmem [#allocation8], %s594
          %s597 = ssub.s32 16, 16
          %598 = vsyncadd %s593, %s597
          %s599 = smul.addr %s39, 16
          %s600 = scalar_lea.hbm %s7, %s599
          %s602 = sshll.u32 %s595, 4
          %s603 = int_to_ptr.vmem [resolvable:$true] %s602
          %605 = dma.hbm_to_vmem [thread:$0]  %s600, 16, %s603, %s593
        $region60: #{opt_forward.1} parent=31 // pred_fallthru
          _
        // Predicated region
        $region61: #{opt_forward.1} parent=31 // pred_check
          %p606 = pneg %p262
        $region62: #{opt_forward.1} parent=31 // pred_check_branch
          %608 = sbr.rel (%p606) target = $region64
        $region63: #{opt_forward.1} parent=31 // pred_region
          %s609 = sand.u32 %s39, 1
          %s610 = scalar_lea.sflag [#allocation10], %s609
          %s611 = sand.u32 %s252, 1
          %s612 = scalar_lea.vmem [#allocation9], %s611
          %s614 = ssub.s32 16, 16
          %615 = vsyncadd %s610, %s614
          %s616 = smul.addr %s39, 16
          %s617 = scalar_lea.hbm %s8, %s616
          %s619 = sshll.u32 %s612, 4
          %s620 = int_to_ptr.vmem [resolvable:$true] %s619
          %622 = dma.hbm_to_vmem [thread:$0]  %s617, 16, %s620, %s610
        $region64: #{opt_forward.1} parent=31 // pred_fallthru
          _
        // Predicated region
        $region65: #{opt_forward.1} parent=31 // pred_check
          %p623 = pneg %p288
        $region66: #{opt_forward.1} parent=31 // pred_check_branch
          %625 = sbr.rel (%p623) target = $region68
        $region67: #{opt_forward.1} parent=31 // pred_region
          %p626 = scmp.lt.s32.totalorder %s39, 1
          %s627 = scalar_select %p626, %s39, 1
          %s628 = smul.addr %s627, 64
          %s629 = smul.addr %s628, 4
          %s630 = scalar_lea.vmem %s9, %s629
        $region68: #{opt_forward.1} parent=31 // pred_fallthru
          _
        // Predicated region
        $region69: #{opt_forward.1} parent=31 // pred_check
          %p631 = pneg %p314
        $region70: #{opt_forward.1} parent=31 // pred_check_branch
          %633 = sbr.rel (%p631) target = $region72
        $region71: #{opt_forward.1} parent=31 // pred_region
          %p634 = scmp.lt.s32.totalorder %s39, 1
          %s635 = scalar_select %p634, %s39, 1
          %s636 = smul.addr %s635, 4
          %s637 = scalar_lea.vmem %s10, %s636
        $region72: #{opt_forward.1} parent=31 // pred_fallthru
          _
        // Predicated region
        $region73: #{opt_forward.1} parent=31 // pred_check
          %p638 = pneg %p340
        $region74: #{opt_forward.1} parent=31 // pred_check_branch
          %640 = sbr.rel (%p638) target = $region76
        $region75: #{opt_forward.1} parent=31 // pred_region
          %s641 = sand.u32 %s39, 1
          %s642 = scalar_lea.sflag [#allocation10], %s641
          %s643 = sand.u32 %s330, 1
          %s644 = smul.addr %s643, 256
          %s645 = scalar_lea.vmem [#allocation11], %s644
          %s647 = ssub.s32 4096, 4096
          %648 = vsyncadd %s642, %s647
          %s649 = smul.addr %s39, 64
          %s650 = smul.addr %s649, 64
          %s651 = scalar_lea.hbm %s11, %s650
          %s652 = sshll.u32 %s645, 4
          %s653 = int_to_ptr.vmem [resolvable:$true] %s652
          %658 = dma.hbm_to_vmem [thread:$0]  %s651, 4096, %s653, %s642, 64, 64, 4
        $region76: #{opt_forward.1} parent=31 // pred_fallthru
          _
        // Predicated region
        $region77: #{opt_forward.1} parent=31 // pred_check
          %p659 = pneg %p366
        $region78: #{opt_forward.1} parent=31 // pred_check_branch
          %661 = sbr.rel (%p659) target = $region80
        $region79: #{opt_forward.1} parent=31 // pred_region
          %s662 = sand.u32 %s39, 1
          %s663 = scalar_lea.sflag [#allocation13], %s662
          %s664 = sand.u32 %s356, 1
          %s665 = scalar_lea.vmem [#allocation12], %s664
          %s667 = ssub.s32 16, 16
          %668 = vsyncadd %s663, %s667
          %s669 = smul.addr %s39, 16
          %s670 = scalar_lea.hbm %s12, %s669
          %s672 = sshll.u32 %s665, 4
          %s673 = int_to_ptr.vmem [resolvable:$true] %s672
          %675 = dma.hbm_to_vmem [thread:$0]  %s670, 16, %s673, %s663
        $region80: #{opt_forward.1} parent=31 // pred_fallthru
          _
      $region32: #{opt_forward.1} parent=5 // pred_fallthru
        _
      %p676 = scmp.le.s32.totalorder 1, %s39
      %p677 = scmp.lt.s32.totalorder %s39, 3
      %p678 = pnand %p676, %p677
      %p679 = pneg %p678
      // Predicated region
      $region81: #{opt_forward.1} parent=5 // pred_check
        _
      $region82: #{opt_forward.1} parent=5 // pred_check_branch
        %681 = sbr.rel (%p678) target = $region84
      $region83: #{opt_forward.1} parent=5 // pred_region
        %s682 = ssub.s32 %s39, 1
        %s683 = sand.u32 %s125, 1
        %s684 = scalar_lea.sflag [#allocation4], %s683
        %s685 = sand.u32 %s125, 1
        %s686 = smul.addr %s685, 192
        %s687 = scalar_lea.vmem [#allocation3], %s686
        // Predicated region
        $region85: #{opt_forward.1} parent=83 // pred_check
          %p688 = pneg %p138
        $region86: #{opt_forward.1} parent=83 // pred_check_branch
          %690 = sbr.rel (%p688) target = $region88
        $region87: #{opt_forward.1} parent=83 // pred_region
          %691 = dma.done %s684, 3072
        $region88: #{opt_forward.1} parent=83 // pred_fallthru
          _
        %s692 = sand.u32 %s44, 1
        %s693 = scalar_lea.sflag [#allocation7], %s692
        %s694 = sand.u32 %s203, 1
        %s695 = scalar_lea.vmem [#allocation6], %s694
        // Predicated region
        $region89: #{opt_forward.1} parent=83 // pred_check
          %p696 = pneg %p216
        $region90: #{opt_forward.1} parent=83 // pred_check_branch
          %698 = sbr.rel (%p696) target = $region92
        $region91: #{opt_forward.1} parent=83 // pred_region
          %699 = dma.done %s693, 16
        $region92: #{opt_forward.1} parent=83 // pred_fallthru
          _
        %s700 = sand.u32 %s44, 1
        %s701 = scalar_lea.sflag [#allocation7], %s700
        %s702 = sand.u32 %s229, 1
        %s703 = scalar_lea.vmem [#allocation8], %s702
        // Predicated region
        $region93: #{opt_forward.1} parent=83 // pred_check
          %p704 = pneg %p242
        $region94: #{opt_forward.1} parent=83 // pred_check_branch
          %706 = sbr.rel (%p704) target = $region96
        $region95: #{opt_forward.1} parent=83 // pred_region
          %707 = dma.done %s701, 16
        $region96: #{opt_forward.1} parent=83 // pred_fallthru
          _
        %s708 = sand.u32 %s44, 1
        %s709 = scalar_lea.sflag [#allocation10], %s708
        %s710 = sand.u32 %s255, 1
        %s711 = scalar_lea.vmem [#allocation9], %s710
        // Predicated region
        $region97: #{opt_forward.1} parent=83 // pred_check
          %p712 = pneg %p268
        $region98: #{opt_forward.1} parent=83 // pred_check_branch
          %714 = sbr.rel (%p712) target = $region100
        $region99: #{opt_forward.1} parent=83 // pred_region
          %715 = dma.done %s709, 16
        $region100: #{opt_forward.1} parent=83 // pred_fallthru
          _
        %s716 = sand.u32 %s44, 1
        %s717 = scalar_lea.sflag [#allocation10], %s716
        %s718 = sand.u32 %s333, 1
        %s719 = smul.addr %s718, 256
        %s720 = scalar_lea.vmem [#allocation11], %s719
        // Predicated region
        $region101: #{opt_forward.1} parent=83 // pred_check
          %p721 = pneg %p346
        $region102: #{opt_forward.1} parent=83 // pred_check_branch
          %723 = sbr.rel (%p721) target = $region104
        $region103: #{opt_forward.1} parent=83 // pred_region
          %724 = dma.done %s717, 4096
        $region104: #{opt_forward.1} parent=83 // pred_fallthru
          _
        %s725 = sand.u32 %s44, 1
        %s726 = scalar_lea.sflag [#allocation13], %s725
        %s727 = sand.u32 %s359, 1
        %s728 = scalar_lea.vmem [#allocation12], %s727
        // Predicated region
        $region105: #{opt_forward.1} parent=83 // pred_check
          %p729 = pneg %p372
        $region106: #{opt_forward.1} parent=83 // pred_check_branch
          %731 = sbr.rel (%p729) target = $region108
        $region107: #{opt_forward.1} parent=83 // pred_region
          %732 = dma.done %s726, 16
        $region108: #{opt_forward.1} parent=83 // pred_fallthru
          _
        // Predicated region
        $region109: #{opt_forward.1} parent=83 // pred_check
          %p733 = pneg %p393
        $region110: #{opt_forward.1} parent=83 // pred_check_branch
          %735 = sbr.rel (%p733) target = $region112
        $region111: #{opt_forward.1} parent=83 // pred_region
          %736 = dma.done [#allocation13], 16
        $region112: #{opt_forward.1} parent=83 // pred_fallthru
          _
        // Predicated region
        $region113: #{opt_forward.1} parent=83 // pred_check
          %p737 = pneg %p414
        $region114: #{opt_forward.1} parent=83 // pred_check_branch
          %739 = sbr.rel (%p737) target = $region116
        $region115: #{opt_forward.1} parent=83 // pred_region
          %740 = dma.done [#allocation16], 16
        $region116: #{opt_forward.1} parent=83 // pred_fallthru
          _
        %p741 = pneg %p60
        %p742 = pneg %p57
        %p743 = scmp.lt.s32.totalorder %s44, 1
        %s744 = scalar_select %p743, %s44, 1
        %s745 = scalar_lea.vmem %s1, %s744
        %p746 = pneg %p86
        %p747 = pneg %p83
        %p748 = scmp.lt.s32.totalorder %s44, 1
        %s749 = scalar_select %p748, %s44, 1
        %s750 = scalar_lea.vmem %s2, %s749
        %p751 = pneg %p112
        %p752 = pneg %p109
        %s753 = sand.u32 %s125, 1
        %s754 = scalar_lea.sflag [#allocation4], %s753
        %s755 = sand.u32 %s125, 1
        %s756 = smul.addr %s755, 192
        %s757 = scalar_lea.vmem [#allocation3], %s756
        %p758 = pneg %p138
        %p759 = pneg %p135
        %p760 = scmp.lt.s32.totalorder %s44, 1
        %s761 = scalar_select %p760, %s44, 1
        %s762 = smul.addr %s761, 3
        %s763 = scalar_lea.vmem %s4, %s762
        %p764 = pneg %p164
        %p765 = pneg %p161
        %p766 = scmp.lt.s32.totalorder %s44, 1
        %s767 = scalar_select %p766, %s44, 1
        %s768 = smul.addr %s767, 16
        %s769 = smul.addr %s768, 4
        %s770 = scalar_lea.vmem %s5, %s769
        %p771 = pneg %p190
        %p772 = pneg %p187
        %s773 = sand.u32 %s44, 1
        %s774 = scalar_lea.sflag [#allocation7], %s773
        %s775 = sand.u32 %s203, 1
        %s776 = scalar_lea.vmem [#allocation6], %s775
        %p777 = pneg %p216
        %p778 = pneg %p213
        %s779 = sand.u32 %s44, 1
        %s780 = scalar_lea.sflag [#allocation7], %s779
        %s781 = sand.u32 %s229, 1
        %s782 = scalar_lea.vmem [#allocation8], %s781
        %p783 = pneg %p242
        %p784 = pneg %p239
        %s785 = sand.u32 %s44, 1
        %s786 = scalar_lea.sflag [#allocation10], %s785
        %s787 = sand.u32 %s255, 1
        %s788 = scalar_lea.vmem [#allocation9], %s787
        %p789 = pneg %p268
        %p790 = pneg %p265
        %p791 = scmp.lt.s32.totalorder %s44, 1
        %s792 = scalar_select %p791, %s44, 1
        %s793 = smul.addr %s792, 64
        %s794 = smul.addr %s793, 4
        %s795 = scalar_lea.vmem %s9, %s794
        %p796 = pneg %p294
        %p797 = pneg %p291
        %p798 = scmp.lt.s32.totalorder %s44, 1
        %s799 = scalar_select %p798, %s44, 1
        %s800 = smul.addr %s799, 4
        %s801 = scalar_lea.vmem %s10, %s800
        %p802 = pneg %p320
        %p803 = pneg %p317
        %s804 = sand.u32 %s44, 1
        %s805 = scalar_lea.sflag [#allocation10], %s804
        %s806 = sand.u32 %s333, 1
        %s807 = smul.addr %s806, 256
        %s808 = scalar_lea.vmem [#allocation11], %s807
        %p809 = pneg %p346
        %p810 = pneg %p343
        %s811 = sand.u32 %s44, 1
        %s812 = scalar_lea.sflag [#allocation13], %s811
        %s813 = sand.u32 %s359, 1
        %s814 = scalar_lea.vmem [#allocation12], %s813
        %p815 = pneg %p372
        %p816 = pneg %p369
        %p817 = pneg %p393
        %p818 = pneg %p390
        %p819 = pneg %p414
        %p820 = pneg %p411
        %p821 = pneg %p435
        %p822 = pneg %p432
        %p823 = pneg %p456
        %p824 = pneg %p453
        %p825 = pneg %p477
        %p826 = pneg %p474
        %p827 = scmp.lt.s32.totalorder %s44, 1
        %s828 = scalar_select %p827, %s44, 1
        %s829 = scalar_lea.vmem %s1, %s828
        %p830 = scmp.lt.s32.totalorder %s44, 1
        %s831 = scalar_select %p830, %s44, 1
        %s832 = scalar_lea.vmem %s2, %s831
        %p833 = scmp.lt.s32.totalorder %s44, 1
        %s834 = scalar_select %p833, %s44, 1
        %s835 = smul.addr %s834, 3
        %s836 = scalar_lea.vmem %s4, %s835
        %p837 = scmp.lt.s32.totalorder %s44, 1
        %s838 = scalar_select %p837, %s44, 1
        %s839 = smul.addr %s838, 16
        %s840 = smul.addr %s839, 4
        %s841 = scalar_lea.vmem %s5, %s840
        %p842 = scmp.lt.s32.totalorder %s44, 1
        %s843 = scalar_select %p842, %s44, 1
        %s844 = smul.addr %s843, 64
        %s845 = smul.addr %s844, 4
        %s846 = scalar_lea.vmem %s9, %s845
        %p847 = scmp.lt.s32.totalorder %s44, 1
        %s848 = scalar_select %p847, %s44, 1
        %s849 = smul.addr %s848, 4
        %s850 = scalar_lea.vmem %s10, %s849
        %p852 = scmp.eq.s32.totalorder %s44, 0
        // Predicated region
        $region117: #{opt_forward.1} parent=83 // pred_check
          %p853 = pneg %p852
        $region118: #{opt_forward.1} parent=83 // pred_check_branch
          %855 = sbr.rel (%p853) target = $region120
        $region119: #{opt_forward.1} parent=83 // pred_region
          %v856 = vld [vmem:[%s0] sm:$0xff]
          %v857 = vld [vmem:[%s0 + $0x8] sm:$0xff]
          %v858 = vld [vmem:[%s0 + $0x10] sm:$0xff]
          %v859 = vld [vmem:[%s0 + $0x18] sm:$0xff]
          %860 = vst [vmem:[#allocation2] sm:$0xff] %v856
          %861 = vst [vmem:[#allocation2 + $0x8] sm:$0xff] %v857
          %862 = vst [vmem:[#allocation2 + $0x10] sm:$0xff] %v858
          %863 = vst [vmem:[#allocation2 + $0x18] sm:$0xff] %v859
        $region120: #{opt_forward.1} parent=83 // pred_fallthru
          _
        %v864 = vld [vmem:[#allocation2] sm:$0xff]
        %v865 = vld [vmem:[#allocation2 + $0x8] sm:$0xff]
        %v866 = vld [vmem:[#allocation2 + $0x10] sm:$0xff]
        %v867 = vld [vmem:[#allocation2 + $0x18] sm:$0xff]
        %v868 = vlaneseq
        %v869 = vshrl.u32 %v868, 7
        %v870 = vadd.s32 %v869, 8
        %v871 = vadd.s32 %v869, 16
        %v872 = vadd.s32 %v869, 24
        %v873 = vlaneseq
        %v874 = vand.u32 %v873, 127
        %vm875 = vcmp.le.s32.totalorder %v874, %v869
        %vm876 = vcmp.le.s32.totalorder %v874, %v870
        %vm877 = vcmp.le.s32.totalorder %v874, %v871
        %vm878 = vcmp.le.s32.totalorder %v874, %v872
        %v879 = vsel %vm875, 0.0, -1e+30
        %v880 = vsel %vm876, 0.0, -1e+30
        %v881 = vsel %vm877, 0.0, -1e+30
        %v882 = vsel %vm878, 0.0, -1e+30
        %v883 = vld [vmem:[%s829] sm:$0x1]
        %v884 = vld [vmem:[%s832] sm:$0x1]
        %885 = vadd.xlane.f32.xlu0 %v864
        %v886 = vpop.xlane.xlu0 %885
        %887 = vadd.xlane.f32.xlu0 %v865
        %v888 = vpop.xlane.xlu0 %887
        %889 = vadd.xlane.f32.xlu0 %v866
        %v890 = vpop.xlane.xlu0 %889
        %891 = vadd.xlane.f32.xlu0 %v867
        %v892 = vpop.xlane.xlu0 %891
        %v893 = vrcp.pop 128.0
        %v894 = vmul.f32 %v886, %v893
        %v895 = vmul.f32 %v888, %v893
        %v896 = vmul.f32 %v890, %v893
        %v897 = vmul.f32 %v892, %v893
        %v898 = vsub.f32 %v864, %v894
        %v899 = vsub.f32 %v865, %v895
        %v900 = vsub.f32 %v866, %v896
        %v901 = vsub.f32 %v867, %v897
        %v902 = vmul.f32 %v898, %v898
        %v903 = vmul.f32 %v899, %v899
        %v904 = vmul.f32 %v900, %v900
        %v905 = vmul.f32 %v901, %v901
        %906 = vadd.xlane.f32.xlu0 %v902
        %v907 = vpop.xlane.xlu0 %906
        %908 = vadd.xlane.f32.xlu0 %v903
        %v909 = vpop.xlane.xlu0 %908
        %910 = vadd.xlane.f32.xlu0 %v904
        %v911 = vpop.xlane.xlu0 %910
        %912 = vadd.xlane.f32.xlu0 %v905
        %v913 = vpop.xlane.xlu0 %912
        %v914 = vmul.f32 %v907, %v893
        %v915 = vmul.f32 %v909, %v893
        %v916 = vmul.f32 %v911, %v893
        %v917 = vmul.f32 %v913, %v893
        %v918 = vadd.f32 %v914, 1e-05
        %v919 = vadd.f32 %v915, 1e-05
        %v920 = vadd.f32 %v916, 1e-05
        %v921 = vadd.f32 %v917, 1e-05
        %v922 = vrsqrt.pop %v918
        %v923 = vrsqrt.pop %v919
        %v924 = vrsqrt.pop %v920
        %v925 = vrsqrt.pop %v921
        %v926 = vmul.f32 %v898, %v922
        %v927 = vmul.f32 %v899, %v923
        %v928 = vmul.f32 %v900, %v924
        %v929 = vmul.f32 %v901, %v925
        %v931 = vlaneseq
        %v932 = vshrl.u32 %v931, 7
        %v933 = vsub.s32 0, %v932
        %v934 = vrot.slane %v883, %v933
        %v936 = vmul.f32 %v926, %v934
        %v937 = vmul.f32 %v927, %v934
        %v938 = vmul.f32 %v928, %v934
        %v939 = vmul.f32 %v929, %v934
        %v941 = vlaneseq
        %v942 = vshrl.u32 %v941, 7
        %v943 = vsub.s32 0, %v942
        %v944 = vrot.slane %v884, %v943
        %v946 = vadd.f32 %v936, %v944
        %v947 = vadd.f32 %v937, %v944
        %v948 = vadd.f32 %v938, %v944
        %v949 = vadd.f32 %v939, %v944
        %v950 = vpack.c.bf16 %v947, %v946
        %v951 = vpack.c.bf16 %v949, %v948
        %v952 = vld [vmem:[%s687] sm:$0xff]
        %v953 = vld [vmem:[%s687 + $0x8] sm:$0xf]
        %v954 = vld [vmem:[%s687 + $0xc] sm:$0xff]
        %v955 = vld [vmem:[%s687 + $0x14] sm:$0xf]
        %v956 = vld [vmem:[%s687 + $0x18] sm:$0xff]
        %v957 = vld [vmem:[%s687 + $0x20] sm:$0xf]
        %v958 = vld [vmem:[%s687 + $0x24] sm:$0xff]
        %v959 = vld [vmem:[%s687 + $0x2c] sm:$0xf]
        %v960 = vld [vmem:[%s687 + $0x30] sm:$0xff]
        %v961 = vld [vmem:[%s687 + $0x38] sm:$0xf]
        %v962 = vld [vmem:[%s687 + $0x3c] sm:$0xff]
        %v963 = vld [vmem:[%s687 + $0x44] sm:$0xf]
        %v964 = vld [vmem:[%s687 + $0x48] sm:$0xff]
        %v965 = vld [vmem:[%s687 + $0x50] sm:$0xf]
        %v966 = vld [vmem:[%s687 + $0x54] sm:$0xff]
        %v967 = vld [vmem:[%s687 + $0x5c] sm:$0xf]
        %v968 = vld [vmem:[%s687 + $0x60] sm:$0xff]
        %v969 = vld [vmem:[%s687 + $0x68] sm:$0xf]
        %v970 = vld [vmem:[%s687 + $0x6c] sm:$0xff]
        %v971 = vld [vmem:[%s687 + $0x74] sm:$0xf]
        %v972 = vld [vmem:[%s687 + $0x78] sm:$0xff]
        %v973 = vld [vmem:[%s687 + $0x80] sm:$0xf]
        %v974 = vld [vmem:[%s687 + $0x84] sm:$0xff]
        %v975 = vld [vmem:[%s687 + $0x8c] sm:$0xf]
        %v976 = vld [vmem:[%s687 + $0x90] sm:$0xff]
        %v977 = vld [vmem:[%s687 + $0x98] sm:$0xf]
        %v978 = vld [vmem:[%s687 + $0x9c] sm:$0xff]
        %v979 = vld [vmem:[%s687 + $0xa4] sm:$0xf]
        %v980 = vld [vmem:[%s687 + $0xa8] sm:$0xff]
        %v981 = vld [vmem:[%s687 + $0xb0] sm:$0xf]
        %v982 = vld [vmem:[%s687 + $0xb4] sm:$0xff]
        %v983 = vld [vmem:[%s687 + $0xbc] sm:$0xf]
        %v984 = vld [vmem:[%s836] sm:$0x7]
        %v986 = vlaneseq
        %v987 = vshrl.u32 %v986, 7
        %v988 = vsub.s32 0, %v987
        %v989 = vrot.slane %v984, %v988
        %v990 = vlaneseq
        %v991 = vshrl.u32 %v990, 7
        %v992 = vsub.s32 1, %v991
        %v993 = vrot.slane %v984, %v992
        %v994 = vlaneseq
        %v995 = vshrl.u32 %v994, 7
        %v996 = vsub.s32 2, %v995
        %v997 = vrot.slane %v984, %v996
        %v1033 = vunpack.c.l.b16 %v952
        %v1034 = vunpack.c.h.b16 %v952
        %v1035 = vunpack.c.l.b16 %v953
        %v1036 = vunpack.c.l.b16 %v954
        %v1037 = vunpack.c.h.b16 %v954
        %v1038 = vunpack.c.l.b16 %v955
        %v1039 = vunpack.c.l.b16 %v956
        %v1040 = vunpack.c.h.b16 %v956
        %v1041 = vunpack.c.l.b16 %v957
        %v1042 = vunpack.c.l.b16 %v958
        %v1043 = vunpack.c.h.b16 %v958
        %v1044 = vunpack.c.l.b16 %v959
        %v1045 = vunpack.c.l.b16 %v960
        %v1046 = vunpack.c.h.b16 %v960
        %v1047 = vunpack.c.l.b16 %v961
        %v1048 = vunpack.c.l.b16 %v962
        %v1049 = vunpack.c.h.b16 %v962
        %v1050 = vunpack.c.l.b16 %v963
        %v1051 = vunpack.c.l.b16 %v964
        %v1052 = vunpack.c.h.b16 %v964
        %v1053 = vunpack.c.l.b16 %v965
        %v1054 = vunpack.c.l.b16 %v966
        %v1055 = vunpack.c.h.b16 %v966
        %v1056 = vunpack.c.l.b16 %v967
        %v1057 = vunpack.c.l.b16 %v968
        %v1058 = vunpack.c.h.b16 %v968
        %v1059 = vunpack.c.l.b16 %v969
        %v1060 = vunpack.c.l.b16 %v970
        %v1061 = vunpack.c.h.b16 %v970
        %v1062 = vunpack.c.l.b16 %v971
        %v1063 = vunpack.c.l.b16 %v972
        %v1064 = vunpack.c.h.b16 %v972
        %v1065 = vunpack.c.l.b16 %v973
        %v1066 = vunpack.c.l.b16 %v974
        %v1067 = vunpack.c.h.b16 %v974
        %v1068 = vunpack.c.l.b16 %v975
        %v1069 = vunpack.c.l.b16 %v976
        %v1070 = vunpack.c.h.b16 %v976
        %v1071 = vunpack.c.l.b16 %v977
        %v1072 = vunpack.c.l.b16 %v978
        %v1073 = vunpack.c.h.b16 %v978
        %v1074 = vunpack.c.l.b16 %v979
        %v1075 = vunpack.c.l.b16 %v980
        %v1076 = vunpack.c.h.b16 %v980
        %v1077 = vunpack.c.l.b16 %v981
        %v1078 = vunpack.c.l.b16 %v982
        %v1079 = vunpack.c.h.b16 %v982
        %v1080 = vunpack.c.l.b16 %v983
        %v1081 = vpack.c.b16 %v1036, %v1033
        %v1082 = vpack.c.b16 %v1037, %v1034
        %v1083 = vpack.c.b16 %v1038, %v1035
        %v1084 = vpack.c.b16 %v1042, %v1039
        %v1085 = vpack.c.b16 %v1043, %v1040
        %v1086 = vpack.c.b16 %v1044, %v1041
        %v1087 = vpack.c.b16 %v1048, %v1045
        %v1088 = vpack.c.b16 %v1049, %v1046
        %v1089 = vpack.c.b16 %v1050, %v1047
        %v1090 = vpack.c.b16 %v1054, %v1051
        %v1091 = vpack.c.b16 %v1055, %v1052
        %v1092 = vpack.c.b16 %v1056, %v1053
        %v1093 = vpack.c.b16 %v1060, %v1057
        %v1094 = vpack.c.b16 %v1061, %v1058
        %v1095 = vpack.c.b16 %v1062, %v1059
        %v1096 = vpack.c.b16 %v1066, %v1063
        %v1097 = vpack.c.b16 %v1067, %v1064
        %v1098 = vpack.c.b16 %v1068, %v1065
        %v1099 = vpack.c.b16 %v1072, %v1069
        %v1100 = vpack.c.b16 %v1073, %v1070
        %v1101 = vpack.c.b16 %v1074, %v1071
        %v1102 = vpack.c.b16 %v1078, %v1075
        %v1103 = vpack.c.b16 %v1079, %v1076
        %v1104 = vpack.c.b16 %v1080, %v1077
        %1129 = vmatprep.subr.bf16.mxu0 %v1103
        %1130 = vmatpush1.bf16.msra.mxu0 %v1102
        %1131 = vmatprep.subr.bf16.mxu0 %v1100
        %1132 = vmatpush1.bf16.msra.mxu0 %v1099
        %1133 = vmatprep.subr.bf16.mxu0 %v1097
        %1134 = vmatpush1.bf16.msra.mxu0 %v1096
        %1135 = vmatprep.subr.bf16.mxu0 %v1094
        %1136 = vmatpush1.bf16.msra.mxu0 %v1093
        %1137 = vmatprep.subr.bf16.mxu0 %v1091
        %1138 = vmatpush1.bf16.msra.mxu0 %v1090
        %1139 = vmatprep.subr.bf16.mxu0 %v1088
        %1140 = vmatpush1.bf16.msra.mxu0 %v1087
        %1141 = vmatprep.subr.bf16.mxu0 %v1085
        %1142 = vmatpush1.bf16.msra.mxu0 %v1084
        %1143 = vmatprep.subr.bf16.mxu0 %v1082
        %1144 = vmatpush1.bf16.msra.mxu0 %v1081
        %1145 = vmatprep.subr.bf16.mxu0 0
        %1146 = vmatpush2.bf16.msra.mxu0 0
        %1147 = vmatprep.subr.bf16.mxu0 0
        %1148 = vmatpush2.bf16.msra.mxu0 0
        %1149 = vmatprep.subr.bf16.mxu0 0
        %1150 = vmatpush2.bf16.msra.mxu0 0
        %1151 = vmatprep.subr.bf16.mxu0 0
        %1152 = vmatpush2.bf16.msra.mxu0 0
        %1153 = vmatprep.subr.bf16.mxu0 0
        %1154 = vmatpush2.bf16.msra.mxu0 0
        %1155 = vmatprep.subr.bf16.mxu0 0
        %1156 = vmatpush2.bf16.msra.mxu0 0
        %1157 = vmatprep.subr.bf16.mxu0 0
        %1158 = vmatpush2.bf16.msra.mxu0 0
        %1159 = vmatprep.subr.bf16.mxu0 0
        %1160 = vmatpush2.bf16.msra.mxu0 0
        %1161 = vmatprep.mubr.bf16.mxu0 0
        %1162 = vmatmul.mubr.bf16.gmra.mxu0 %v950
        %v1163 = vpop.f32.mrf.mxu0
        %v1164 = vadd.f32 %v989, %v1163
        %v1165 = vpop.f32.mrf.mxu0
        %v1166 = vadd.f32 %v993, %v1165
        %v1167 = vpop.f32.mrf.mxu0
        %v1168 = vadd.f32 %v989, %v1167
        %v1169 = vpop.f32.mrf.mxu0
        %v1170 = vadd.f32 %v993, %v1169
        %1171 = vmatprep.mubr.bf16.mxu0 0
        %1172 = vmatmul.mubr.bf16.gmra.mxu0 %v951
        %v1173 = vpop.f32.mrf.mxu0
        %v1174 = vadd.f32 %v989, %v1173
        %v1175 = vpop.f32.mrf.mxu0
        %v1176 = vadd.f32 %v993, %v1175
        %v1177 = vpop.f32.mrf.mxu0
        %v1178 = vadd.f32 %v989, %v1177
        %v1179 = vpop.f32.mrf.mxu0
        %v1180 = vadd.f32 %v993, %v1179
        %1181 = vdwg.mxu0
        %1182 = vmatprep.subr.bf16.mxu0 0
        %1183 = vmatpush1.bf16.msra.mxu0 %v1104
        %1184 = vmatprep.subr.bf16.mxu0 0
        %1185 = vmatpush1.bf16.msra.mxu0 %v1101
        %1186 = vmatprep.subr.bf16.mxu0 0
        %1187 = vmatpush1.bf16.msra.mxu0 %v1098
        %1188 = vmatprep.subr.bf16.mxu0 0
        %1189 = vmatpush1.bf16.msra.mxu0 %v1095
        %1190 = vmatprep.subr.bf16.mxu0 0
        %1191 = vmatpush1.bf16.msra.mxu0 %v1092
        %1192 = vmatprep.subr.bf16.mxu0 0
        %1193 = vmatpush1.bf16.msra.mxu0 %v1089
        %1194 = vmatprep.subr.bf16.mxu0 0
        %1195 = vmatpush1.bf16.msra.mxu0 %v1086
        %1196 = vmatprep.subr.bf16.mxu0 0
        %1197 = vmatpush1.bf16.msra.mxu0 %v1083
        %1198 = vmatprep.subr.bf16.mxu0 0
        %1199 = vmatpush2.bf16.msra.mxu0 0
        %1200 = vmatprep.subr.bf16.mxu0 0
        %1201 = vmatpush2.bf16.msra.mxu0 0
        %1202 = vmatprep.subr.bf16.mxu0 0
        %1203 = vmatpush2.bf16.msra.mxu0 0
        %1204 = vmatprep.subr.bf16.mxu0 0
        %1205 = vmatpush2.bf16.msra.mxu0 0
        %1206 = vmatprep.subr.bf16.mxu0 0
        %1207 = vmatpush2.bf16.msra.mxu0 0
        %1208 = vmatprep.subr.bf16.mxu0 0
        %1209 = vmatpush2.bf16.msra.mxu0 0
        %1210 = vmatprep.subr.bf16.mxu0 0
        %1211 = vmatpush2.bf16.msra.mxu0 0
        %1212 = vmatprep.subr.bf16.mxu0 0
        %1213 = vmatpush2.bf16.msra.mxu0 0
        %1214 = vmatprep.mubr.bf16.mxu0 0
        %1215 = vmatmul.mubr.bf16.gmra.mxu0 %v950
        %v1216 = vpop.f32.mrf.mxu0
        %v1217 = vadd.f32 %v997, %v1216
        %v1218 = vpop.f32.mrf.mxu0
        %v1219 = vpop.f32.mrf.mxu0
        %v1220 = vadd.f32 %v997, %v1219
        %v1221 = vpop.f32.mrf.mxu0
        %1222 = vmatprep.mubr.bf16.mxu0 0
        %1223 = vmatmul.mubr.bf16.gmra.mxu0 %v951
        %v1224 = vpop.f32.mrf.mxu0
        %v1225 = vadd.f32 %v997, %v1224
        %v1226 = vpop.f32.mrf.mxu0
        %v1227 = vpop.f32.mrf.mxu0
        %v1228 = vadd.f32 %v997, %v1227
        %v1229 = vpop.f32.mrf.mxu0
        %1230 = vdwg.mxu0
        %v1231 = vpack.c.bf16 %v1168, %v1164
        %v1232 = vpack.c.bf16 %v1178, %v1174
        %v1233 = vpack.c.bf16 %v1170, %v1166
        %v1234 = vpack.c.bf16 %v1180, %v1176
        %v1235 = vpack.c.bf16 %v1220, %v1217
        %v1236 = vpack.c.bf16 %v1228, %v1225
        %vm1237 = vcmask 261120
        %v1239 = vsel %vm1237, %v1231, 0
        %v1242 = vsel %vm1237, %v1232, 0
        %v1245 = vsel %vm1237, %v1233, 0
        %v1248 = vsel %vm1237, %v1234, 0
        %1250 = vmatprep.subr.bf16.mxu0 0
        %1251 = vmatpush1.bf16.xpose.msra.mxu0 0
        %1252 = vmatprep.subr.bf16.mxu0 0
        %1253 = vmatpush1.bf16.xpose.msra.mxu0 0
        %1254 = vmatprep.subr.bf16.mxu0 0
        %1255 = vmatpush1.bf16.xpose.msra.mxu0 0
        %1256 = vmatprep.subr.bf16.mxu0 0
        %1257 = vmatpush1.bf16.xpose.msra.mxu0 0
        %1258 = vmatprep.subr.bf16.mxu0 0
        %1259 = vmatpush1.bf16.xpose.msra.mxu0 0
        %1260 = vmatprep.subr.bf16.mxu0 0
        %1261 = vmatpush1.bf16.xpose.msra.mxu0 0
        %1262 = vmatprep.subr.bf16.mxu0 0
        %1263 = vmatpush1.bf16.xpose.msra.mxu0 %v1248
        %1264 = vmatprep.subr.bf16.mxu0 0
        %1265 = vmatpush1.bf16.xpose.msra.mxu0 %v1245
        %1266 = vmatprep.subr.bf16.mxu0 0
        %1267 = vmatpush2.bf16.xpose.msra.mxu0 0
        %1268 = vmatprep.subr.bf16.mxu0 0
        %1269 = vmatpush2.bf16.xpose.msra.mxu0 0
        %1270 = vmatprep.subr.bf16.mxu0 0
        %1271 = vmatpush2.bf16.xpose.msra.mxu0 0
        %1272 = vmatprep.subr.bf16.mxu0 0
        %1273 = vmatpush2.bf16.xpose.msra.mxu0 0
        %1274 = vmatprep.subr.bf16.mxu0 0
        %1275 = vmatpush2.bf16.xpose.msra.mxu0 0
        %1276 = vmatprep.subr.bf16.mxu0 0
        %1277 = vmatpush2.bf16.xpose.msra.mxu0 0
        %1278 = vmatprep.subr.bf16.mxu0 0
        %1279 = vmatpush2.bf16.xpose.msra.mxu0 0
        %1280 = vmatprep.subr.bf16.mxu0 0
        %1281 = vmatpush2.bf16.xpose.msra.mxu0 0
        %1282 = vmatprep.mubr.bf16.mxu0 0
        %1283 = vmatmul.mubr.bf16.gmra.mxu0 %v1239
        %v1284 = vpop.f32.mrf.mxu0
        %v1285 = vadd.f32 %v879, %v1284
        %v1286 = vpop.f32.mrf.mxu0
        %v1287 = vpop.f32.mrf.mxu0
        %v1288 = vadd.f32 %v880, %v1287
        %v1289 = vpop.f32.mrf.mxu0
        %1290 = vmatprep.mubr.bf16.mxu0 0
        %1291 = vmatmul.mubr.bf16.gmra.mxu0 %v1242
        %v1292 = vpop.f32.mrf.mxu0
        %v1293 = vadd.f32 %v881, %v1292
        %v1294 = vpop.f32.mrf.mxu0
        %v1295 = vpop.f32.mrf.mxu0
        %v1296 = vadd.f32 %v882, %v1295
        %v1297 = vpop.f32.mrf.mxu0
        %1298 = vdwg.mxu0
        %v1299 = vsel %vm1237, %v1285, -inf
        %1300 = vmax.xlane.f32.xlu0 %v1299
        %v1301 = vpop.xlane.xlu0 %1300
        %v1302 = vsel %vm1237, %v1288, -inf
        %1303 = vmax.xlane.f32.xlu0 %v1302
        %v1304 = vpop.xlane.xlu0 %1303
        %v1305 = vsel %vm1237, %v1293, -inf
        %1306 = vmax.xlane.f32.xlu0 %v1305
        %v1307 = vpop.xlane.xlu0 %1306
        %v1308 = vsel %vm1237, %v1296, -inf
        %1309 = vmax.xlane.f32.xlu0 %v1308
        %v1310 = vpop.xlane.xlu0 %1309
        %v1311 = vsub.f32 %v1285, %v1301
        %v1312 = vsub.f32 %v1288, %v1304
        %v1313 = vsub.f32 %v1293, %v1307
        %v1314 = vsub.f32 %v1296, %v1310
        %v1315 = vmul.f32 %v1311, 1.442695
        %v1316 = vpow.pop %v1315
        %v1317 = vmul.f32 %v1312, 1.442695
        %v1318 = vpow.pop %v1317
        %v1319 = vmul.f32 %v1313, 1.442695
        %v1320 = vpow.pop %v1319
        %v1321 = vmul.f32 %v1314, 1.442695
        %v1322 = vpow.pop %v1321
        %v1323 = vsel %vm1237, %v1316, 0.0
        %1324 = vadd.xlane.f32.xlu0 %v1323
        %v1325 = vpop.xlane.xlu0 %1324
        %v1326 = vsel %vm1237, %v1318, 0.0
        %1327 = vadd.xlane.f32.xlu0 %v1326
        %v1328 = vpop.xlane.xlu0 %1327
        %v1329 = vsel %vm1237, %v1320, 0.0
        %1330 = vadd.xlane.f32.xlu0 %v1329
        %v1331 = vpop.xlane.xlu0 %1330
        %v1332 = vsel %vm1237, %v1322, 0.0
        %1333 = vadd.xlane.f32.xlu0 %v1332
        %v1334 = vpop.xlane.xlu0 %1333
        %v1335 = vrcp.pop %v1325
        %v1336 = vrcp.pop %v1328
        %v1337 = vrcp.pop %v1331
        %v1338 = vrcp.pop %v1334
        %v1339 = vmul.f32 %v1316, %v1335
        %v1340 = vmul.f32 %v1318, %v1336
        %v1341 = vmul.f32 %v1320, %v1337
        %v1342 = vmul.f32 %v1322, %v1338
        %v1343 = vpack.c.bf16 %v1340, %v1339
        %v1344 = vpack.c.bf16 %v1342, %v1341
        %v1346 = vsel %vm1237, %v1343, 0
        %v1349 = vsel %vm1237, %v1344, 0
        %1351 = vmatprep.subr.bf16.mxu0 0
        %1352 = vmatpush1.bf16.msra.mxu0 0
        %1353 = vmatprep.subr.bf16.mxu0 0
        %1354 = vmatpush1.bf16.msra.mxu0 0
        %1355 = vmatprep.subr.bf16.mxu0 0
        %1356 = vmatpush1.bf16.msra.mxu0 0
        %1357 = vmatprep.subr.bf16.mxu0 0
        %1358 = vmatpush1.bf16.msra.mxu0 0
        %1359 = vmatprep.subr.bf16.mxu0 0
        %1360 = vmatpush1.bf16.msra.mxu0 0
        %1361 = vmatprep.subr.bf16.mxu0 0
        %1362 = vmatpush1.bf16.msra.mxu0 0
        %1363 = vmatprep.subr.bf16.mxu0 0
        %1364 = vmatpush1.bf16.msra.mxu0 %v1236
        %1365 = vmatprep.subr.bf16.mxu0 0
        %1366 = vmatpush1.bf16.msra.mxu0 %v1235
        %1367 = vmatprep.subr.bf16.mxu0 0
        %1368 = vmatpush2.bf16.msra.mxu0 0
        %1369 = vmatprep.subr.bf16.mxu0 0
        %1370 = vmatpush2.bf16.msra.mxu0 0
        %1371 = vmatprep.subr.bf16.mxu0 0
        %1372 = vmatpush2.bf16.msra.mxu0 0
        %1373 = vmatprep.subr.bf16.mxu0 0
        %1374 = vmatpush2.bf16.msra.mxu0 0
        %1375 = vmatprep.subr.bf16.mxu0 0
        %1376 = vmatpush2.bf16.msra.mxu0 0
        %1377 = vmatprep.subr.bf16.mxu0 0
        %1378 = vmatpush2.bf16.msra.mxu0 0
        %1379 = vmatprep.subr.bf16.mxu0 0
        %1380 = vmatpush2.bf16.msra.mxu0 0
        %1381 = vmatprep.subr.bf16.mxu0 0
        %1382 = vmatpush2.bf16.msra.mxu0 0
        %1383 = vmatprep.mubr.bf16.mxu0 0
        %1384 = vmatmul.mubr.bf16.gmra.mxu0 %v1346
        %v1385 = vpop.f32.mrf.mxu0
        %v1386 = vadd.f32 0.0, %v1385
        %v1387 = vpop.f32.mrf.mxu0
        %v1388 = vpop.f32.mrf.mxu0
        %v1389 = vadd.f32 0.0, %v1388
        %v1390 = vpop.f32.mrf.mxu0
        %1391 = vmatprep.mubr.bf16.mxu0 0
        %1392 = vmatmul.mubr.bf16.gmra.mxu0 %v1349
        %v1393 = vpop.f32.mrf.mxu0
        %v1394 = vadd.f32 0.0, %v1393
        %v1395 = vpop.f32.mrf.mxu0
        %v1396 = vpop.f32.mrf.mxu0
        %v1397 = vadd.f32 0.0, %v1396
        %v1398 = vpop.f32.mrf.mxu0
        %1399 = vdwg.mxu0
        %1402 = vrot.lane.b32.xlu0 %v1231, 96
        %v1403 = vpop.permute.xlu0 %1402
        %1404 = vrot.lane.b32.xlu0 %v1232, 96
        %v1405 = vpop.permute.xlu0 %1404
        %1408 = vrot.lane.b32.xlu0 %v1233, 96
        %v1409 = vpop.permute.xlu0 %1408
        %1410 = vrot.lane.b32.xlu0 %v1234, 96
        %v1411 = vpop.permute.xlu0 %1410
        %v1413 = vsel %vm1237, %v1403, 0
        %v1416 = vsel %vm1237, %v1405, 0
        %v1419 = vsel %vm1237, %v1409, 0
        %v1422 = vsel %vm1237, %v1411, 0
        %1424 = vmatprep.subr.bf16.mxu0 0
        %1425 = vmatpush1.bf16.xpose.msra.mxu0 0
        %1426 = vmatprep.subr.bf16.mxu0 0
        %1427 = vmatpush1.bf16.xpose.msra.mxu0 0
        %1428 = vmatprep.subr.bf16.mxu0 0
        %1429 = vmatpush1.bf16.xpose.msra.mxu0 0
        %1430 = vmatprep.subr.bf16.mxu0 0
        %1431 = vmatpush1.bf16.xpose.msra.mxu0 0
        %1432 = vmatprep.subr.bf16.mxu0 0
        %1433 = vmatpush1.bf16.xpose.msra.mxu0 0
        %1434 = vmatprep.subr.bf16.mxu0 0
        %1435 = vmatpush1.bf16.xpose.msra.mxu0 0
        %1436 = vmatprep.subr.bf16.mxu0 0
        %1437 = vmatpush1.bf16.xpose.msra.mxu0 %v1422
        %1438 = vmatprep.subr.bf16.mxu0 0
        %1439 = vmatpush1.bf16.xpose.msra.mxu0 %v1419
        %1440 = vmatprep.subr.bf16.mxu0 0
        %1441 = vmatpush2.bf16.xpose.msra.mxu0 0
        %1442 = vmatprep.subr.bf16.mxu0 0
        %1443 = vmatpush2.bf16.xpose.msra.mxu0 0
        %1444 = vmatprep.subr.bf16.mxu0 0
        %1445 = vmatpush2.bf16.xpose.msra.mxu0 0
        %1446 = vmatprep.subr.bf16.mxu0 0
        %1447 = vmatpush2.bf16.xpose.msra.mxu0 0
        %1448 = vmatprep.subr.bf16.mxu0 0
        %1449 = vmatpush2.bf16.xpose.msra.mxu0 0
        %1450 = vmatprep.subr.bf16.mxu0 0
        %1451 = vmatpush2.bf16.xpose.msra.mxu0 0
        %1452 = vmatprep.subr.bf16.mxu0 0
        %1453 = vmatpush2.bf16.xpose.msra.mxu0 0
        %1454 = vmatprep.subr.bf16.mxu0 0
        %1455 = vmatpush2.bf16.xpose.msra.mxu0 0
        %1456 = vmatprep.mubr.bf16.mxu0 0
        %1457 = vmatmul.mubr.bf16.gmra.mxu0 %v1413
        %v1458 = vpop.f32.mrf.mxu0
        %v1459 = vadd.f32 %v879, %v1458
        %v1460 = vpop.f32.mrf.mxu0
        %v1461 = vpop.f32.mrf.mxu0
        %v1462 = vadd.f32 %v880, %v1461
        %v1463 = vpop.f32.mrf.mxu0
        %1464 = vmatprep.mubr.bf16.mxu0 0
        %1465 = vmatmul.mubr.bf16.gmra.mxu0 %v1416
        %v1466 = vpop.f32.mrf.mxu0
        %v1467 = vadd.f32 %v881, %v1466
        %v1468 = vpop.f32.mrf.mxu0
        %v1469 = vpop.f32.mrf.mxu0
        %v1470 = vadd.f32 %v882, %v1469
        %v1471 = vpop.f32.mrf.mxu0
        %1472 = vdwg.mxu0
        %v1473 = vsel %vm1237, %v1459, -inf
        %1474 = vmax.xlane.f32.xlu0 %v1473
        %v1475 = vpop.xlane.xlu0 %1474
        %v1476 = vsel %vm1237, %v1462, -inf
        %1477 = vmax.xlane.f32.xlu0 %v1476
        %v1478 = vpop.xlane.xlu0 %1477
        %v1479 = vsel %vm1237, %v1467, -inf
        %1480 = vmax.xlane.f32.xlu0 %v1479
        %v1481 = vpop.xlane.xlu0 %1480
        %v1482 = vsel %vm1237, %v1470, -inf
        %1483 = vmax.xlane.f32.xlu0 %v1482
        %v1484 = vpop.xlane.xlu0 %1483
        %v1485 = vsub.f32 %v1459, %v1475
        %v1486 = vsub.f32 %v1462, %v1478
        %v1487 = vsub.f32 %v1467, %v1481
        %v1488 = vsub.f32 %v1470, %v1484
        %v1489 = vmul.f32 %v1485, 1.442695
        %v1490 = vpow.pop %v1489
        %v1491 = vmul.f32 %v1486, 1.442695
        %v1492 = vpow.pop %v1491
        %v1493 = vmul.f32 %v1487, 1.442695
        %v1494 = vpow.pop %v1493
        %v1495 = vmul.f32 %v1488, 1.442695
        %v1496 = vpow.pop %v1495
        %v1497 = vsel %vm1237, %v1490, 0.0
        %1498 = vadd.xlane.f32.xlu0 %v1497
        %v1499 = vpop.xlane.xlu0 %1498
        %v1500 = vsel %vm1237, %v1492, 0.0
        %1501 = vadd.xlane.f32.xlu0 %v1500
        %v1502 = vpop.xlane.xlu0 %1501
        %v1503 = vsel %vm1237, %v1494, 0.0
        %1504 = vadd.xlane.f32.xlu0 %v1503
        %v1505 = vpop.xlane.xlu0 %1504
        %v1506 = vsel %vm1237, %v1496, 0.0
        %1507 = vadd.xlane.f32.xlu0 %v1506
        %v1508 = vpop.xlane.xlu0 %1507
        %v1509 = vrcp.pop %v1499
        %v1510 = vrcp.pop %v1502
        %v1511 = vrcp.pop %v1505
        %v1512 = vrcp.pop %v1508
        %v1513 = vmul.f32 %v1490, %v1509
        %v1514 = vmul.f32 %v1492, %v1510
        %v1515 = vmul.f32 %v1494, %v1511
        %v1516 = vmul.f32 %v1496, %v1512
        %v1517 = vpack.c.bf16 %v1514, %v1513
        %v1518 = vpack.c.bf16 %v1516, %v1515
        %1521 = vrot.lane.b32.xlu0 %v1235, 96
        %v1522 = vpop.permute.xlu0 %1521
        %1523 = vrot.lane.b32.xlu0 %v1236, 96
        %v1524 = vpop.permute.xlu0 %1523
        %v1528 = vsel %vm1237, %v1517, 0
        %v1531 = vsel %vm1237, %v1518, 0
        %1533 = vmatprep.subr.bf16.mxu0 0
        %1534 = vmatpush1.bf16.msra.mxu0 0
        %1535 = vmatprep.subr.bf16.mxu0 0
        %1536 = vmatpush1.bf16.msra.mxu0 0
        %1537 = vmatprep.subr.bf16.mxu0 0
        %1538 = vmatpush1.bf16.msra.mxu0 0
        %1539 = vmatprep.subr.bf16.mxu0 0
        %1540 = vmatpush1.bf16.msra.mxu0 0
        %1541 = vmatprep.subr.bf16.mxu0 0
        %1542 = vmatpush1.bf16.msra.mxu0 0
        %1543 = vmatprep.subr.bf16.mxu0 0
        %1544 = vmatpush1.bf16.msra.mxu0 0
        %1545 = vmatprep.subr.bf16.mxu0 0
        %1546 = vmatpush1.bf16.msra.mxu0 %v1524
        %1547 = vmatprep.subr.bf16.mxu0 0
        %1548 = vmatpush1.bf16.msra.mxu0 %v1522
        %1549 = vmatprep.subr.bf16.mxu0 0
        %1550 = vmatpush2.bf16.msra.mxu0 0
        %1551 = vmatprep.subr.bf16.mxu0 0
        %1552 = vmatpush2.bf16.msra.mxu0 0
        %1553 = vmatprep.subr.bf16.mxu0 0
        %1554 = vmatpush2.bf16.msra.mxu0 0
        %1555 = vmatprep.subr.bf16.mxu0 0
        %1556 = vmatpush2.bf16.msra.mxu0 0
        %1557 = vmatprep.subr.bf16.mxu0 0
        %1558 = vmatpush2.bf16.msra.mxu0 0
        %1559 = vmatprep.subr.bf16.mxu0 0
        %1560 = vmatpush2.bf16.msra.mxu0 0
        %1561 = vmatprep.subr.bf16.mxu0 0
        %1562 = vmatpush2.bf16.msra.mxu0 0
        %1563 = vmatprep.subr.bf16.mxu0 0
        %1564 = vmatpush2.bf16.msra.mxu0 0
        %1565 = vmatprep.mubr.bf16.mxu0 0
        %1566 = vmatmul.mubr.bf16.gmra.mxu0 %v1528
        %v1567 = vpop.f32.mrf.mxu0
        %v1568 = vadd.f32 0.0, %v1567
        %v1569 = vpop.f32.mrf.mxu0
        %v1570 = vpop.f32.mrf.mxu0
        %v1571 = vadd.f32 0.0, %v1570
        %v1572 = vpop.f32.mrf.mxu0
        %1573 = vmatprep.mubr.bf16.mxu0 0
        %1574 = vmatmul.mubr.bf16.gmra.mxu0 %v1531
        %v1575 = vpop.f32.mrf.mxu0
        %v1576 = vadd.f32 0.0, %v1575
        %v1577 = vpop.f32.mrf.mxu0
        %v1578 = vpop.f32.mrf.mxu0
        %v1579 = vadd.f32 0.0, %v1578
        %v1580 = vpop.f32.mrf.mxu0
        %1581 = vdwg.mxu0
        %1582 = vrot.lane.b32.xlu0 %v1231, 64
        %v1583 = vpop.permute.xlu0 %1582
        %1584 = vrot.lane.b32.xlu0 %v1232, 64
        %v1585 = vpop.permute.xlu0 %1584
        %1586 = vrot.lane.b32.xlu0 %v1233, 64
        %v1587 = vpop.permute.xlu0 %1586
        %1588 = vrot.lane.b32.xlu0 %v1234, 64
        %v1589 = vpop.permute.xlu0 %1588
        %v1591 = vsel %vm1237, %v1583, 0
        %v1594 = vsel %vm1237, %v1585, 0
        %v1597 = vsel %vm1237, %v1587, 0
        %v1600 = vsel %vm1237, %v1589, 0
        %1602 = vmatprep.subr.bf16.mxu0 0
        %1603 = vmatpush1.bf16.xpose.msra.mxu0 0
        %1604 = vmatprep.subr.bf16.mxu0 0
        %1605 = vmatpush1.bf16.xpose.msra.mxu0 0
        %1606 = vmatprep.subr.bf16.mxu0 0
        %1607 = vmatpush1.bf16.xpose.msra.mxu0 0
        %1608 = vmatprep.subr.bf16.mxu0 0
        %1609 = vmatpush1.bf16.xpose.msra.mxu0 0
        %1610 = vmatprep.subr.bf16.mxu0 0
        %1611 = vmatpush1.bf16.xpose.msra.mxu0 0
        %1612 = vmatprep.subr.bf16.mxu0 0
        %1613 = vmatpush1.bf16.xpose.msra.mxu0 0
        %1614 = vmatprep.subr.bf16.mxu0 0
        %1615 = vmatpush1.bf16.xpose.msra.mxu0 %v1600
        %1616 = vmatprep.subr.bf16.mxu0 0
        %1617 = vmatpush1.bf16.xpose.msra.mxu0 %v1597
        %1618 = vmatprep.subr.bf16.mxu0 0
        %1619 = vmatpush2.bf16.xpose.msra.mxu0 0
        %1620 = vmatprep.subr.bf16.mxu0 0
        %1621 = vmatpush2.bf16.xpose.msra.mxu0 0
        %1622 = vmatprep.subr.bf16.mxu0 0
        %1623 = vmatpush2.bf16.xpose.msra.mxu0 0
        %1624 = vmatprep.subr.bf16.mxu0 0
        %1625 = vmatpush2.bf16.xpose.msra.mxu0 0
        %1626 = vmatprep.subr.bf16.mxu0 0
        %1627 = vmatpush2.bf16.xpose.msra.mxu0 0
        %1628 = vmatprep.subr.bf16.mxu0 0
        %1629 = vmatpush2.bf16.xpose.msra.mxu0 0
        %1630 = vmatprep.subr.bf16.mxu0 0
        %1631 = vmatpush2.bf16.xpose.msra.mxu0 0
        %1632 = vmatprep.subr.bf16.mxu0 0
        %1633 = vmatpush2.bf16.xpose.msra.mxu0 0
        %1634 = vmatprep.mubr.bf16.mxu0 0
        %1635 = vmatmul.mubr.bf16.gmra.mxu0 %v1591
        %v1636 = vpop.f32.mrf.mxu0
        %v1637 = vadd.f32 %v879, %v1636
        %v1638 = vpop.f32.mrf.mxu0
        %v1639 = vpop.f32.mrf.mxu0
        %v1640 = vadd.f32 %v880, %v1639
        %v1641 = vpop.f32.mrf.mxu0
        %1642 = vmatprep.mubr.bf16.mxu0 0
        %1643 = vmatmul.mubr.bf16.gmra.mxu0 %v1594
        %v1644 = vpop.f32.mrf.mxu0
        %v1645 = vadd.f32 %v881, %v1644
        %v1646 = vpop.f32.mrf.mxu0
        %v1647 = vpop.f32.mrf.mxu0
        %v1648 = vadd.f32 %v882, %v1647
        %v1649 = vpop.f32.mrf.mxu0
        %1650 = vdwg.mxu0
        %v1651 = vsel %vm1237, %v1637, -inf
        %1652 = vmax.xlane.f32.xlu0 %v1651
        %v1653 = vpop.xlane.xlu0 %1652
        %v1654 = vsel %vm1237, %v1640, -inf
        %1655 = vmax.xlane.f32.xlu0 %v1654
        %v1656 = vpop.xlane.xlu0 %1655
        %v1657 = vsel %vm1237, %v1645, -inf
        %1658 = vmax.xlane.f32.xlu0 %v1657
        %v1659 = vpop.xlane.xlu0 %1658
        %v1660 = vsel %vm1237, %v1648, -inf
        %1661 = vmax.xlane.f32.xlu0 %v1660
        %v1662 = vpop.xlane.xlu0 %1661
        %v1663 = vsub.f32 %v1637, %v1653
        %v1664 = vsub.f32 %v1640, %v1656
        %v1665 = vsub.f32 %v1645, %v1659
        %v1666 = vsub.f32 %v1648, %v1662
        %v1667 = vmul.f32 %v1663, 1.442695
        %v1668 = vpow.pop %v1667
        %v1669 = vmul.f32 %v1664, 1.442695
        %v1670 = vpow.pop %v1669
        %v1671 = vmul.f32 %v1665, 1.442695
        %v1672 = vpow.pop %v1671
        %v1673 = vmul.f32 %v1666, 1.442695
        %v1674 = vpow.pop %v1673
        %v1675 = vsel %vm1237, %v1668, 0.0
        %1676 = vadd.xlane.f32.xlu0 %v1675
        %v1677 = vpop.xlane.xlu0 %1676
        %v1678 = vsel %vm1237, %v1670, 0.0
        %1679 = vadd.xlane.f32.xlu0 %v1678
        %v1680 = vpop.xlane.xlu0 %1679
        %v1681 = vsel %vm1237, %v1672, 0.0
        %1682 = vadd.xlane.f32.xlu0 %v1681
        %v1683 = vpop.xlane.xlu0 %1682
        %v1684 = vsel %vm1237, %v1674, 0.0
        %1685 = vadd.xlane.f32.xlu0 %v1684
        %v1686 = vpop.xlane.xlu0 %1685
        %v1687 = vrcp.pop %v1677
        %v1688 = vrcp.pop %v1680
        %v1689 = vrcp.pop %v1683
        %v1690 = vrcp.pop %v1686
        %v1691 = vmul.f32 %v1668, %v1687
        %v1692 = vmul.f32 %v1670, %v1688
        %v1693 = vmul.f32 %v1672, %v1689
        %v1694 = vmul.f32 %v1674, %v1690
        %v1695 = vpack.c.bf16 %v1692, %v1691
        %v1696 = vpack.c.bf16 %v1694, %v1693
        %1697 = vrot.lane.b32.xlu0 %v1235, 64
        %v1698 = vpop.permute.xlu0 %1697
        %1699 = vrot.lane.b32.xlu0 %v1236, 64
        %v1700 = vpop.permute.xlu0 %1699
        %v1704 = vsel %vm1237, %v1695, 0
        %v1707 = vsel %vm1237, %v1696, 0
        %1709 = vmatprep.subr.bf16.mxu0 0
        %1710 = vmatpush1.bf16.msra.mxu0 0
        %1711 = vmatprep.subr.bf16.mxu0 0
        %1712 = vmatpush1.bf16.msra.mxu0 0
        %1713 = vmatprep.subr.bf16.mxu0 0
        %1714 = vmatpush1.bf16.msra.mxu0 0
        %1715 = vmatprep.subr.bf16.mxu0 0
        %1716 = vmatpush1.bf16.msra.mxu0 0
        %1717 = vmatprep.subr.bf16.mxu0 0
        %1718 = vmatpush1.bf16.msra.mxu0 0
        %1719 = vmatprep.subr.bf16.mxu0 0
        %1720 = vmatpush1.bf16.msra.mxu0 0
        %1721 = vmatprep.subr.bf16.mxu0 0
        %1722 = vmatpush1.bf16.msra.mxu0 %v1700
        %1723 = vmatprep.subr.bf16.mxu0 0
        %1724 = vmatpush1.bf16.msra.mxu0 %v1698
        %1725 = vmatprep.subr.bf16.mxu0 0
        %1726 = vmatpush2.bf16.msra.mxu0 0
        %1727 = vmatprep.subr.bf16.mxu0 0
        %1728 = vmatpush2.bf16.msra.mxu0 0
        %1729 = vmatprep.subr.bf16.mxu0 0
        %1730 = vmatpush2.bf16.msra.mxu0 0
        %1731 = vmatprep.subr.bf16.mxu0 0
        %1732 = vmatpush2.bf16.msra.mxu0 0
        %1733 = vmatprep.subr.bf16.mxu0 0
        %1734 = vmatpush2.bf16.msra.mxu0 0
        %1735 = vmatprep.subr.bf16.mxu0 0
        %1736 = vmatpush2.bf16.msra.mxu0 0
        %1737 = vmatprep.subr.bf16.mxu0 0
        %1738 = vmatpush2.bf16.msra.mxu0 0
        %1739 = vmatprep.subr.bf16.mxu0 0
        %1740 = vmatpush2.bf16.msra.mxu0 0
        %1741 = vmatprep.mubr.bf16.mxu0 0
        %1742 = vmatmul.mubr.bf16.gmra.mxu0 %v1704
        %v1743 = vpop.f32.mrf.mxu0
        %v1744 = vadd.f32 0.0, %v1743
        %v1745 = vpop.f32.mrf.mxu0
        %v1746 = vpop.f32.mrf.mxu0
        %v1747 = vadd.f32 0.0, %v1746
        %v1748 = vpop.f32.mrf.mxu0
        %1749 = vmatprep.mubr.bf16.mxu0 0
        %1750 = vmatmul.mubr.bf16.gmra.mxu0 %v1707
        %v1751 = vpop.f32.mrf.mxu0
        %v1752 = vadd.f32 0.0, %v1751
        %v1753 = vpop.f32.mrf.mxu0
        %v1754 = vpop.f32.mrf.mxu0
        %v1755 = vadd.f32 0.0, %v1754
        %v1756 = vpop.f32.mrf.mxu0
        %1757 = vdwg.mxu0
        %1758 = vrot.lane.b32.xlu0 %v1231, 32
        %v1759 = vpop.permute.xlu0 %1758
        %1760 = vrot.lane.b32.xlu0 %v1232, 32
        %v1761 = vpop.permute.xlu0 %1760
        %1762 = vrot.lane.b32.xlu0 %v1233, 32
        %v1763 = vpop.permute.xlu0 %1762
        %1764 = vrot.lane.b32.xlu0 %v1234, 32
        %v1765 = vpop.permute.xlu0 %1764
        %v1767 = vsel %vm1237, %v1759, 0
        %v1770 = vsel %vm1237, %v1761, 0
        %v1773 = vsel %vm1237, %v1763, 0
        %v1776 = vsel %vm1237, %v1765, 0
        %1778 = vmatprep.subr.bf16.mxu0 0
        %1779 = vmatpush1.bf16.xpose.msra.mxu0 0
        %1780 = vmatprep.subr.bf16.mxu0 0
        %1781 = vmatpush1.bf16.xpose.msra.mxu0 0
        %1782 = vmatprep.subr.bf16.mxu0 0
        %1783 = vmatpush1.bf16.xpose.msra.mxu0 0
        %1784 = vmatprep.subr.bf16.mxu0 0
        %1785 = vmatpush1.bf16.xpose.msra.mxu0 0
        %1786 = vmatprep.subr.bf16.mxu0 0
        %1787 = vmatpush1.bf16.xpose.msra.mxu0 0
        %1788 = vmatprep.subr.bf16.mxu0 0
        %1789 = vmatpush1.bf16.xpose.msra.mxu0 0
        %1790 = vmatprep.subr.bf16.mxu0 0
        %1791 = vmatpush1.bf16.xpose.msra.mxu0 %v1776
        %1792 = vmatprep.subr.bf16.mxu0 0
        %1793 = vmatpush1.bf16.xpose.msra.mxu0 %v1773
        %1794 = vmatprep.subr.bf16.mxu0 0
        %1795 = vmatpush2.bf16.xpose.msra.mxu0 0
        %1796 = vmatprep.subr.bf16.mxu0 0
        %1797 = vmatpush2.bf16.xpose.msra.mxu0 0
        %1798 = vmatprep.subr.bf16.mxu0 0
        %1799 = vmatpush2.bf16.xpose.msra.mxu0 0
        %1800 = vmatprep.subr.bf16.mxu0 0
        %1801 = vmatpush2.bf16.xpose.msra.mxu0 0
        %1802 = vmatprep.subr.bf16.mxu0 0
        %1803 = vmatpush2.bf16.xpose.msra.mxu0 0
        %1804 = vmatprep.subr.bf16.mxu0 0
        %1805 = vmatpush2.bf16.xpose.msra.mxu0 0
        %1806 = vmatprep.subr.bf16.mxu0 0
        %1807 = vmatpush2.bf16.xpose.msra.mxu0 0
        %1808 = vmatprep.subr.bf16.mxu0 0
        %1809 = vmatpush2.bf16.xpose.msra.mxu0 0
        %1810 = vmatprep.mubr.bf16.mxu0 0
        %1811 = vmatmul.mubr.bf16.gmra.mxu0 %v1767
        %v1812 = vpop.f32.mrf.mxu0
        %v1813 = vadd.f32 %v879, %v1812
        %v1814 = vpop.f32.mrf.mxu0
        %v1815 = vpop.f32.mrf.mxu0
        %v1816 = vadd.f32 %v880, %v1815
        %v1817 = vpop.f32.mrf.mxu0
        %1818 = vmatprep.mubr.bf16.mxu0 0
        %1819 = vmatmul.mubr.bf16.gmra.mxu0 %v1770
        %v1820 = vpop.f32.mrf.mxu0
        %v1821 = vadd.f32 %v881, %v1820
        %v1822 = vpop.f32.mrf.mxu0
        %v1823 = vpop.f32.mrf.mxu0
        %v1824 = vadd.f32 %v882, %v1823
        %v1825 = vpop.f32.mrf.mxu0
        %1826 = vdwg.mxu0
        %v1827 = vsel %vm1237, %v1813, -inf
        %1828 = vmax.xlane.f32.xlu0 %v1827
        %v1829 = vpop.xlane.xlu0 %1828
        %v1830 = vsel %vm1237, %v1816, -inf
        %1831 = vmax.xlane.f32.xlu0 %v1830
        %v1832 = vpop.xlane.xlu0 %1831
        %v1833 = vsel %vm1237, %v1821, -inf
        %1834 = vmax.xlane.f32.xlu0 %v1833
        %v1835 = vpop.xlane.xlu0 %1834
        %v1836 = vsel %vm1237, %v1824, -inf
        %1837 = vmax.xlane.f32.xlu0 %v1836
        %v1838 = vpop.xlane.xlu0 %1837
        %v1839 = vsub.f32 %v1813, %v1829
        %v1840 = vsub.f32 %v1816, %v1832
        %v1841 = vsub.f32 %v1821, %v1835
        %v1842 = vsub.f32 %v1824, %v1838
        %v1843 = vmul.f32 %v1839, 1.442695
        %v1844 = vpow.pop %v1843
        %v1845 = vmul.f32 %v1840, 1.442695
        %v1846 = vpow.pop %v1845
        %v1847 = vmul.f32 %v1841, 1.442695
        %v1848 = vpow.pop %v1847
        %v1849 = vmul.f32 %v1842, 1.442695
        %v1850 = vpow.pop %v1849
        %v1851 = vsel %vm1237, %v1844, 0.0
        %1852 = vadd.xlane.f32.xlu0 %v1851
        %v1853 = vpop.xlane.xlu0 %1852
        %v1854 = vsel %vm1237, %v1846, 0.0
        %1855 = vadd.xlane.f32.xlu0 %v1854
        %v1856 = vpop.xlane.xlu0 %1855
        %v1857 = vsel %vm1237, %v1848, 0.0
        %1858 = vadd.xlane.f32.xlu0 %v1857
        %v1859 = vpop.xlane.xlu0 %1858
        %v1860 = vsel %vm1237, %v1850, 0.0
        %1861 = vadd.xlane.f32.xlu0 %v1860
        %v1862 = vpop.xlane.xlu0 %1861
        %v1863 = vrcp.pop %v1853
        %v1864 = vrcp.pop %v1856
        %v1865 = vrcp.pop %v1859
        %v1866 = vrcp.pop %v1862
        %v1867 = vmul.f32 %v1844, %v1863
        %v1868 = vmul.f32 %v1846, %v1864
        %v1869 = vmul.f32 %v1848, %v1865
        %v1870 = vmul.f32 %v1850, %v1866
        %v1871 = vpack.c.bf16 %v1868, %v1867
        %v1872 = vpack.c.bf16 %v1870, %v1869
        %1873 = vrot.lane.b32.xlu0 %v1235, 32
        %v1874 = vpop.permute.xlu0 %1873
        %1875 = vrot.lane.b32.xlu0 %v1236, 32
        %v1876 = vpop.permute.xlu0 %1875
        %v1880 = vsel %vm1237, %v1871, 0
        %v1883 = vsel %vm1237, %v1872, 0
        %1885 = vmatprep.subr.bf16.mxu0 0
        %1886 = vmatpush1.bf16.msra.mxu0 0
        %1887 = vmatprep.subr.bf16.mxu0 0
        %1888 = vmatpush1.bf16.msra.mxu0 0
        %1889 = vmatprep.subr.bf16.mxu0 0
        %1890 = vmatpush1.bf16.msra.mxu0 0
        %1891 = vmatprep.subr.bf16.mxu0 0
        %1892 = vmatpush1.bf16.msra.mxu0 0
        %1893 = vmatprep.subr.bf16.mxu0 0
        %1894 = vmatpush1.bf16.msra.mxu0 0
        %1895 = vmatprep.subr.bf16.mxu0 0
        %1896 = vmatpush1.bf16.msra.mxu0 0
        %1897 = vmatprep.subr.bf16.mxu0 0
        %1898 = vmatpush1.bf16.msra.mxu0 %v1876
        %1899 = vmatprep.subr.bf16.mxu0 0
        %1900 = vmatpush1.bf16.msra.mxu0 %v1874
        %1901 = vmatprep.subr.bf16.mxu0 0
        %1902 = vmatpush2.bf16.msra.mxu0 0
        %1903 = vmatprep.subr.bf16.mxu0 0
        %1904 = vmatpush2.bf16.msra.mxu0 0
        %1905 = vmatprep.subr.bf16.mxu0 0
        %1906 = vmatpush2.bf16.msra.mxu0 0
        %1907 = vmatprep.subr.bf16.mxu0 0
        %1908 = vmatpush2.bf16.msra.mxu0 0
        %1909 = vmatprep.subr.bf16.mxu0 0
        %1910 = vmatpush2.bf16.msra.mxu0 0
        %1911 = vmatprep.subr.bf16.mxu0 0
        %1912 = vmatpush2.bf16.msra.mxu0 0
        %1913 = vmatprep.subr.bf16.mxu0 0
        %1914 = vmatpush2.bf16.msra.mxu0 0
        %1915 = vmatprep.subr.bf16.mxu0 0
        %1916 = vmatpush2.bf16.msra.mxu0 0
        %1917 = vmatprep.mubr.bf16.mxu0 0
        %1918 = vmatmul.mubr.bf16.gmra.mxu0 %v1880
        %v1919 = vpop.f32.mrf.mxu0
        %v1920 = vadd.f32 0.0, %v1919
        %v1921 = vpop.f32.mrf.mxu0
        %v1922 = vpop.f32.mrf.mxu0
        %v1923 = vadd.f32 0.0, %v1922
        %v1924 = vpop.f32.mrf.mxu0
        %1925 = vmatprep.mubr.bf16.mxu0 0
        %1926 = vmatmul.mubr.bf16.gmra.mxu0 %v1883
        %v1927 = vpop.f32.mrf.mxu0
        %v1928 = vadd.f32 0.0, %v1927
        %v1929 = vpop.f32.mrf.mxu0
        %v1930 = vpop.f32.mrf.mxu0
        %v1931 = vadd.f32 0.0, %v1930
        %v1932 = vpop.f32.mrf.mxu0
        %1933 = vdwg.mxu0
        %1938 = vrot.lane.b32.xlu0 %v1568, 32
        %v1939 = vpop.permute.xlu0 %1938
        %1940 = vrot.lane.b32.xlu0 %v1571, 32
        %v1941 = vpop.permute.xlu0 %1940
        %1942 = vrot.lane.b32.xlu0 %v1576, 32
        %v1943 = vpop.permute.xlu0 %1942
        %1944 = vrot.lane.b32.xlu0 %v1579, 32
        %v1945 = vpop.permute.xlu0 %1944
        %1954 = vrot.lane.b32.xlu0 %v1744, 64
        %v1955 = vpop.permute.xlu0 %1954
        %1956 = vrot.lane.b32.xlu0 %v1747, 64
        %v1957 = vpop.permute.xlu0 %1956
        %1958 = vrot.lane.b32.xlu0 %v1752, 64
        %v1959 = vpop.permute.xlu0 %1958
        %1960 = vrot.lane.b32.xlu0 %v1755, 64
        %v1961 = vpop.permute.xlu0 %1960
        %1970 = vrot.lane.b32.xlu0 %v1920, 96
        %v1971 = vpop.permute.xlu0 %1970
        %1972 = vrot.lane.b32.xlu0 %v1923, 96
        %v1973 = vpop.permute.xlu0 %1972
        %1974 = vrot.lane.b32.xlu0 %v1928, 96
        %v1975 = vpop.permute.xlu0 %1974
        %1976 = vrot.lane.b32.xlu0 %v1931, 96
        %v1977 = vpop.permute.xlu0 %1976
        %v1982 = vsel %vm1237, %v1386, %v1939
        %v1983 = vsel %vm1237, %v1389, %v1941
        %v1984 = vsel %vm1237, %v1394, %v1943
        %v1985 = vsel %vm1237, %v1397, %v1945
        %vm1986 = vcmask 523264
        %v1987 = vsel %vm1986, %v1982, %v1955
        %v1988 = vsel %vm1986, %v1983, %v1957
        %v1989 = vsel %vm1986, %v1984, %v1959
        %v1990 = vsel %vm1986, %v1985, %v1961
        %vm1991 = vcmask 785408
        %v1992 = vsel %vm1991, %v1987, %v1971
        %v1993 = vsel %vm1991, %v1988, %v1973
        %v1994 = vsel %vm1991, %v1989, %v1975
        %v1995 = vsel %vm1991, %v1990, %v1977
        %v1996 = vpack.c.bf16 %v1993, %v1992
        %v1997 = vpack.c.bf16 %v1995, %v1994
        %v1998 = vld [vmem:[%s841] sm:$0xf]
        %v1999 = vld [vmem:[%s841 + $0x4] sm:$0xf]
        %v2000 = vld [vmem:[%s841 + $0x8] sm:$0xf]
        %v2001 = vld [vmem:[%s841 + $0xc] sm:$0xf]
        %v2002 = vld [vmem:[%s841 + $0x10] sm:$0xf]
        %v2003 = vld [vmem:[%s841 + $0x14] sm:$0xf]
        %v2004 = vld [vmem:[%s841 + $0x18] sm:$0xf]
        %v2005 = vld [vmem:[%s841 + $0x1c] sm:$0xf]
        %v2006 = vld [vmem:[%s841 + $0x20] sm:$0xf]
        %v2007 = vld [vmem:[%s841 + $0x24] sm:$0xf]
        %v2008 = vld [vmem:[%s841 + $0x28] sm:$0xf]
        %v2009 = vld [vmem:[%s841 + $0x2c] sm:$0xf]
        %v2010 = vld [vmem:[%s841 + $0x30] sm:$0xf]
        %v2011 = vld [vmem:[%s841 + $0x34] sm:$0xf]
        %v2012 = vld [vmem:[%s841 + $0x38] sm:$0xf]
        %v2013 = vld [vmem:[%s841 + $0x3c] sm:$0xf]
        %v2014 = vld [vmem:[%s695] sm:$0x1]
        %v2016 = vlaneseq
        %v2017 = vshrl.u32 %v2016, 7
        %v2018 = vsub.s32 0, %v2017
        %v2019 = vrot.slane %v2014, %v2018
        %v2037 = vunpack.c.l.b16 %v1998
        %v2038 = vunpack.c.l.b16 %v1999
        %v2039 = vunpack.c.l.b16 %v2000
        %v2040 = vunpack.c.l.b16 %v2001
        %v2041 = vunpack.c.l.b16 %v2002
        %v2042 = vunpack.c.l.b16 %v2003
        %v2043 = vunpack.c.l.b16 %v2004
        %v2044 = vunpack.c.l.b16 %v2005
        %v2045 = vunpack.c.l.b16 %v2006
        %v2046 = vunpack.c.l.b16 %v2007
        %v2047 = vunpack.c.l.b16 %v2008
        %v2048 = vunpack.c.l.b16 %v2009
        %v2049 = vunpack.c.l.b16 %v2010
        %v2050 = vunpack.c.l.b16 %v2011
        %v2051 = vunpack.c.l.b16 %v2012
        %v2052 = vunpack.c.l.b16 %v2013
        %v2053 = vpack.c.b16 %v2038, %v2037
        %v2054 = vpack.c.b16 %v2040, %v2039
        %v2055 = vpack.c.b16 %v2042, %v2041
        %v2056 = vpack.c.b16 %v2044, %v2043
        %v2057 = vpack.c.b16 %v2046, %v2045
        %v2058 = vpack.c.b16 %v2048, %v2047
        %v2059 = vpack.c.b16 %v2050, %v2049
        %v2060 = vpack.c.b16 %v2052, %v2051
        %2069 = vmatprep.subr.bf16.mxu0 0
        %2070 = vmatpush1.bf16.msra.mxu0 %v2060
        %2071 = vmatprep.subr.bf16.mxu0 0
        %2072 = vmatpush1.bf16.msra.mxu0 %v2059
        %2073 = vmatprep.subr.bf16.mxu0 0
        %2074 = vmatpush1.bf16.msra.mxu0 %v2058
        %2075 = vmatprep.subr.bf16.mxu0 0
        %2076 = vmatpush1.bf16.msra.mxu0 %v2057
        %2077 = vmatprep.subr.bf16.mxu0 0
        %2078 = vmatpush1.bf16.msra.mxu0 %v2056
        %2079 = vmatprep.subr.bf16.mxu0 0
        %2080 = vmatpush1.bf16.msra.mxu0 %v2055
        %2081 = vmatprep.subr.bf16.mxu0 0
        %2082 = vmatpush1.bf16.msra.mxu0 %v2054
        %2083 = vmatprep.subr.bf16.mxu0 0
        %2084 = vmatpush1.bf16.msra.mxu0 %v2053
        %2085 = vmatprep.subr.bf16.mxu0 0
        %2086 = vmatpush2.bf16.msra.mxu0 0
        %2087 = vmatprep.subr.bf16.mxu0 0
        %2088 = vmatpush2.bf16.msra.mxu0 0
        %2089 = vmatprep.subr.bf16.mxu0 0
        %2090 = vmatpush2.bf16.msra.mxu0 0
        %2091 = vmatprep.subr.bf16.mxu0 0
        %2092 = vmatpush2.bf16.msra.mxu0 0
        %2093 = vmatprep.subr.bf16.mxu0 0
        %2094 = vmatpush2.bf16.msra.mxu0 0
        %2095 = vmatprep.subr.bf16.mxu0 0
        %2096 = vmatpush2.bf16.msra.mxu0 0
        %2097 = vmatprep.subr.bf16.mxu0 0
        %2098 = vmatpush2.bf16.msra.mxu0 0
        %2099 = vmatprep.subr.bf16.mxu0 0
        %2100 = vmatpush2.bf16.msra.mxu0 0
        %2101 = vmatprep.mubr.bf16.mxu0 0
        %2102 = vmatmul.mubr.bf16.gmra.mxu0 %v1996
        %v2103 = vpop.f32.mrf.mxu0
        %v2104 = vadd.f32 %v2019, %v2103
        %v2105 = vpop.f32.mrf.mxu0
        %v2106 = vpop.f32.mrf.mxu0
        %v2107 = vadd.f32 %v2019, %v2106
        %v2108 = vpop.f32.mrf.mxu0
        %2109 = vmatprep.mubr.bf16.mxu0 0
        %2110 = vmatmul.mubr.bf16.gmra.mxu0 %v1997
        %v2111 = vpop.f32.mrf.mxu0
        %v2112 = vadd.f32 %v2019, %v2111
        %v2113 = vpop.f32.mrf.mxu0
        %v2114 = vpop.f32.mrf.mxu0
        %v2115 = vadd.f32 %v2019, %v2114
        %v2116 = vpop.f32.mrf.mxu0
        %2117 = vdwg.mxu0
        %v2118 = vadd.f32 %v864, %v2104
        %v2119 = vadd.f32 %v865, %v2107
        %v2120 = vadd.f32 %v866, %v2112
        %v2121 = vadd.f32 %v867, %v2115
        %v2122 = vld [vmem:[%s703] sm:$0x1]
        %v2123 = vld [vmem:[%s711] sm:$0x1]
        %2124 = vadd.xlane.f32.xlu0 %v2118
        %v2125 = vpop.xlane.xlu0 %2124
        %2126 = vadd.xlane.f32.xlu0 %v2119
        %v2127 = vpop.xlane.xlu0 %2126
        %2128 = vadd.xlane.f32.xlu0 %v2120
        %v2129 = vpop.xlane.xlu0 %2128
        %2130 = vadd.xlane.f32.xlu0 %v2121
        %v2131 = vpop.xlane.xlu0 %2130
        %v2132 = vmul.f32 %v2125, %v893
        %v2133 = vmul.f32 %v2127, %v893
        %v2134 = vmul.f32 %v2129, %v893
        %v2135 = vmul.f32 %v2131, %v893
        %v2136 = vsub.f32 %v2118, %v2132
        %v2137 = vsub.f32 %v2119, %v2133
        %v2138 = vsub.f32 %v2120, %v2134
        %v2139 = vsub.f32 %v2121, %v2135
        %v2140 = vmul.f32 %v2136, %v2136
        %v2141 = vmul.f32 %v2137, %v2137
        %v2142 = vmul.f32 %v2138, %v2138
        %v2143 = vmul.f32 %v2139, %v2139
        %2144 = vadd.xlane.f32.xlu0 %v2140
        %v2145 = vpop.xlane.xlu0 %2144
        %2146 = vadd.xlane.f32.xlu0 %v2141
        %v2147 = vpop.xlane.xlu0 %2146
        %2148 = vadd.xlane.f32.xlu0 %v2142
        %v2149 = vpop.xlane.xlu0 %2148
        %2150 = vadd.xlane.f32.xlu0 %v2143
        %v2151 = vpop.xlane.xlu0 %2150
        %v2152 = vmul.f32 %v2145, %v893
        %v2153 = vmul.f32 %v2147, %v893
        %v2154 = vmul.f32 %v2149, %v893
        %v2155 = vmul.f32 %v2151, %v893
        %v2156 = vadd.f32 %v2152, 1e-05
        %v2157 = vadd.f32 %v2153, 1e-05
        %v2158 = vadd.f32 %v2154, 1e-05
        %v2159 = vadd.f32 %v2155, 1e-05
        %v2160 = vrsqrt.pop %v2156
        %v2161 = vrsqrt.pop %v2157
        %v2162 = vrsqrt.pop %v2158
        %v2163 = vrsqrt.pop %v2159
        %v2164 = vmul.f32 %v2136, %v2160
        %v2165 = vmul.f32 %v2137, %v2161
        %v2166 = vmul.f32 %v2138, %v2162
        %v2167 = vmul.f32 %v2139, %v2163
        %v2169 = vlaneseq
        %v2170 = vshrl.u32 %v2169, 7
        %v2171 = vsub.s32 0, %v2170
        %v2172 = vrot.slane %v2122, %v2171
        %v2174 = vmul.f32 %v2164, %v2172
        %v2175 = vmul.f32 %v2165, %v2172
        %v2176 = vmul.f32 %v2166, %v2172
        %v2177 = vmul.f32 %v2167, %v2172
        %v2179 = vlaneseq
        %v2180 = vshrl.u32 %v2179, 7
        %v2181 = vsub.s32 0, %v2180
        %v2182 = vrot.slane %v2123, %v2181
        %v2184 = vadd.f32 %v2174, %v2182
        %v2185 = vadd.f32 %v2175, %v2182
        %v2186 = vadd.f32 %v2176, %v2182
        %v2187 = vadd.f32 %v2177, %v2182
        %v2188 = vpack.c.bf16 %v2185, %v2184
        %v2189 = vpack.c.bf16 %v2187, %v2186
        %v2190 = vld [vmem:[%s846] sm:$0xff]
        %v2191 = vld [vmem:[%s846 + $0x8] sm:$0xff]
        %v2192 = vld [vmem:[%s846 + $0x10] sm:$0xff]
        %v2193 = vld [vmem:[%s846 + $0x18] sm:$0xff]
        %v2194 = vld [vmem:[%s846 + $0x20] sm:$0xff]
        %v2195 = vld [vmem:[%s846 + $0x28] sm:$0xff]
        %v2196 = vld [vmem:[%s846 + $0x30] sm:$0xff]
        %v2197 = vld [vmem:[%s846 + $0x38] sm:$0xff]
        %v2198 = vld [vmem:[%s846 + $0x40] sm:$0xff]
        %v2199 = vld [vmem:[%s846 + $0x48] sm:$0xff]
        %v2200 = vld [vmem:[%s846 + $0x50] sm:$0xff]
        %v2201 = vld [vmem:[%s846 + $0x58] sm:$0xff]
        %v2202 = vld [vmem:[%s846 + $0x60] sm:$0xff]
        %v2203 = vld [vmem:[%s846 + $0x68] sm:$0xff]
        %v2204 = vld [vmem:[%s846 + $0x70] sm:$0xff]
        %v2205 = vld [vmem:[%s846 + $0x78] sm:$0xff]
        %v2206 = vld [vmem:[%s846 + $0x80] sm:$0xff]
        %v2207 = vld [vmem:[%s846 + $0x88] sm:$0xff]
        %v2208 = vld [vmem:[%s846 + $0x90] sm:$0xff]
        %v2209 = vld [vmem:[%s846 + $0x98] sm:$0xff]
        %v2210 = vld [vmem:[%s846 + $0xa0] sm:$0xff]
        %v2211 = vld [vmem:[%s846 + $0xa8] sm:$0xff]
        %v2212 = vld [vmem:[%s846 + $0xb0] sm:$0xff]
        %v2213 = vld [vmem:[%s846 + $0xb8] sm:$0xff]
        %v2214 = vld [vmem:[%s846 + $0xc0] sm:$0xff]
        %v2215 = vld [vmem:[%s846 + $0xc8] sm:$0xff]
        %v2216 = vld [vmem:[%s846 + $0xd0] sm:$0xff]
        %v2217 = vld [vmem:[%s846 + $0xd8] sm:$0xff]
        %v2218 = vld [vmem:[%s846 + $0xe0] sm:$0xff]
        %v2219 = vld [vmem:[%s846 + $0xe8] sm:$0xff]
        %v2220 = vld [vmem:[%s846 + $0xf0] sm:$0xff]
        %v2221 = vld [vmem:[%s846 + $0xf8] sm:$0xff]
        %v2222 = vld [vmem:[%s850] sm:$0xf]
        %v2224 = vlaneseq
        %v2225 = vshrl.u32 %v2224, 7
        %v2226 = vsub.s32 0, %v2225
        %v2227 = vrot.slane %v2222, %v2226
        %v2228 = vlaneseq
        %v2229 = vshrl.u32 %v2228, 7
        %v2230 = vsub.s32 1, %v2229
        %v2231 = vrot.slane %v2222, %v2230
        %v2232 = vlaneseq
        %v2233 = vshrl.u32 %v2232, 7
        %v2234 = vsub.s32 2, %v2233
        %v2235 = vrot.slane %v2222, %v2234
        %v2236 = vlaneseq
        %v2237 = vshrl.u32 %v2236, 7
        %v2238 = vsub.s32 3, %v2237
        %v2239 = vrot.slane %v2222, %v2238
        %v2276 = vunpack.c.l.b16 %v2190
        %v2277 = vunpack.c.h.b16 %v2190
        %v2278 = vunpack.c.l.b16 %v2191
        %v2279 = vunpack.c.h.b16 %v2191
        %v2280 = vunpack.c.l.b16 %v2192
        %v2281 = vunpack.c.h.b16 %v2192
        %v2282 = vunpack.c.l.b16 %v2193
        %v2283 = vunpack.c.h.b16 %v2193
        %v2284 = vunpack.c.l.b16 %v2194
        %v2285 = vunpack.c.h.b16 %v2194
        %v2286 = vunpack.c.l.b16 %v2195
        %v2287 = vunpack.c.h.b16 %v2195
        %v2288 = vunpack.c.l.b16 %v2196
        %v2289 = vunpack.c.h.b16 %v2196
        %v2290 = vunpack.c.l.b16 %v2197
        %v2291 = vunpack.c.h.b16 %v2197
        %v2292 = vunpack.c.l.b16 %v2198
        %v2293 = vunpack.c.h.b16 %v2198
        %v2294 = vunpack.c.l.b16 %v2199
        %v2295 = vunpack.c.h.b16 %v2199
        %v2296 = vunpack.c.l.b16 %v2200
        %v2297 = vunpack.c.h.b16 %v2200
        %v2298 = vunpack.c.l.b16 %v2201
        %v2299 = vunpack.c.h.b16 %v2201
        %v2300 = vunpack.c.l.b16 %v2202
        %v2301 = vunpack.c.h.b16 %v2202
        %v2302 = vunpack.c.l.b16 %v2203
        %v2303 = vunpack.c.h.b16 %v2203
        %v2304 = vunpack.c.l.b16 %v2204
        %v2305 = vunpack.c.h.b16 %v2204
        %v2306 = vunpack.c.l.b16 %v2205
        %v2307 = vunpack.c.h.b16 %v2205
        %v2308 = vunpack.c.l.b16 %v2206
        %v2309 = vunpack.c.h.b16 %v2206
        %v2310 = vunpack.c.l.b16 %v2207
        %v2311 = vunpack.c.h.b16 %v2207
        %v2312 = vunpack.c.l.b16 %v2208
        %v2313 = vunpack.c.h.b16 %v2208
        %v2314 = vunpack.c.l.b16 %v2209
        %v2315 = vunpack.c.h.b16 %v2209
        %v2316 = vunpack.c.l.b16 %v2210
        %v2317 = vunpack.c.h.b16 %v2210
        %v2318 = vunpack.c.l.b16 %v2211
        %v2319 = vunpack.c.h.b16 %v2211
        %v2320 = vunpack.c.l.b16 %v2212
        %v2321 = vunpack.c.h.b16 %v2212
        %v2322 = vunpack.c.l.b16 %v2213
        %v2323 = vunpack.c.h.b16 %v2213
        %v2324 = vunpack.c.l.b16 %v2214
        %v2325 = vunpack.c.h.b16 %v2214
        %v2326 = vunpack.c.l.b16 %v2215
        %v2327 = vunpack.c.h.b16 %v2215
        %v2328 = vunpack.c.l.b16 %v2216
        %v2329 = vunpack.c.h.b16 %v2216
        %v2330 = vunpack.c.l.b16 %v2217
        %v2331 = vunpack.c.h.b16 %v2217
        %v2332 = vunpack.c.l.b16 %v2218
        %v2333 = vunpack.c.h.b16 %v2218
        %v2334 = vunpack.c.l.b16 %v2219
        %v2335 = vunpack.c.h.b16 %v2219
        %v2336 = vunpack.c.l.b16 %v2220
        %v2337 = vunpack.c.h.b16 %v2220
        %v2338 = vunpack.c.l.b16 %v2221
        %v2339 = vunpack.c.h.b16 %v2221
        %v2340 = vpack.c.b16 %v2280, %v2276
        %v2341 = vpack.c.b16 %v2281, %v2277
        %v2342 = vpack.c.b16 %v2282, %v2278
        %v2343 = vpack.c.b16 %v2283, %v2279
        %v2344 = vpack.c.b16 %v2288, %v2284
        %v2345 = vpack.c.b16 %v2289, %v2285
        %v2346 = vpack.c.b16 %v2290, %v2286
        %v2347 = vpack.c.b16 %v2291, %v2287
        %v2348 = vpack.c.b16 %v2296, %v2292
        %v2349 = vpack.c.b16 %v2297, %v2293
        %v2350 = vpack.c.b16 %v2298, %v2294
        %v2351 = vpack.c.b16 %v2299, %v2295
        %v2352 = vpack.c.b16 %v2304, %v2300
        %v2353 = vpack.c.b16 %v2305, %v2301
        %v2354 = vpack.c.b16 %v2306, %v2302
        %v2355 = vpack.c.b16 %v2307, %v2303
        %v2356 = vpack.c.b16 %v2312, %v2308
        %v2357 = vpack.c.b16 %v2313, %v2309
        %v2358 = vpack.c.b16 %v2314, %v2310
        %v2359 = vpack.c.b16 %v2315, %v2311
        %v2360 = vpack.c.b16 %v2320, %v2316
        %v2361 = vpack.c.b16 %v2321, %v2317
        %v2362 = vpack.c.b16 %v2322, %v2318
        %v2363 = vpack.c.b16 %v2323, %v2319
        %v2364 = vpack.c.b16 %v2328, %v2324
        %v2365 = vpack.c.b16 %v2329, %v2325
        %v2366 = vpack.c.b16 %v2330, %v2326
        %v2367 = vpack.c.b16 %v2331, %v2327
        %v2368 = vpack.c.b16 %v2336, %v2332
        %v2369 = vpack.c.b16 %v2337, %v2333
        %v2370 = vpack.c.b16 %v2338, %v2334
        %v2371 = vpack.c.b16 %v2339, %v2335
        %2404 = vmatprep.subr.bf16.mxu0 %v2369
        %2405 = vmatpush1.bf16.msra.mxu0 %v2368
        %2406 = vmatprep.subr.bf16.mxu0 %v2365
        %2407 = vmatpush1.bf16.msra.mxu0 %v2364
        %2408 = vmatprep.subr.bf16.mxu0 %v2361
        %2409 = vmatpush1.bf16.msra.mxu0 %v2360
        %2410 = vmatprep.subr.bf16.mxu0 %v2357
        %2411 = vmatpush1.bf16.msra.mxu0 %v2356
        %2412 = vmatprep.subr.bf16.mxu0 %v2353
        %2413 = vmatpush1.bf16.msra.mxu0 %v2352
        %2414 = vmatprep.subr.bf16.mxu0 %v2349
        %2415 = vmatpush1.bf16.msra.mxu0 %v2348
        %2416 = vmatprep.subr.bf16.mxu0 %v2345
        %2417 = vmatpush1.bf16.msra.mxu0 %v2344
        %2418 = vmatprep.subr.bf16.mxu0 %v2341
        %2419 = vmatpush1.bf16.msra.mxu0 %v2340
        %2420 = vmatprep.subr.bf16.mxu0 0
        %2421 = vmatpush2.bf16.msra.mxu0 0
        %2422 = vmatprep.subr.bf16.mxu0 0
        %2423 = vmatpush2.bf16.msra.mxu0 0
        %2424 = vmatprep.subr.bf16.mxu0 0
        %2425 = vmatpush2.bf16.msra.mxu0 0
        %2426 = vmatprep.subr.bf16.mxu0 0
        %2427 = vmatpush2.bf16.msra.mxu0 0
        %2428 = vmatprep.subr.bf16.mxu0 0
        %2429 = vmatpush2.bf16.msra.mxu0 0
        %2430 = vmatprep.subr.bf16.mxu0 0
        %2431 = vmatpush2.bf16.msra.mxu0 0
        %2432 = vmatprep.subr.bf16.mxu0 0
        %2433 = vmatpush2.bf16.msra.mxu0 0
        %2434 = vmatprep.subr.bf16.mxu0 0
        %2435 = vmatpush2.bf16.msra.mxu0 0
        %2436 = vmatprep.mubr.bf16.mxu0 0
        %2437 = vmatmul.mubr.bf16.gmra.mxu0 %v2188
        %v2438 = vpop.f32.mrf.mxu0
        %v2439 = vadd.f32 %v2227, %v2438
        %v2440 = vpop.f32.mrf.mxu0
        %v2441 = vadd.f32 %v2231, %v2440
        %v2442 = vpop.f32.mrf.mxu0
        %v2443 = vadd.f32 %v2227, %v2442
        %v2444 = vpop.f32.mrf.mxu0
        %v2445 = vadd.f32 %v2231, %v2444
        %2446 = vmatprep.mubr.bf16.mxu0 0
        %2447 = vmatmul.mubr.bf16.gmra.mxu0 %v2189
        %v2448 = vpop.f32.mrf.mxu0
        %v2449 = vadd.f32 %v2227, %v2448
        %v2450 = vpop.f32.mrf.mxu0
        %v2451 = vadd.f32 %v2231, %v2450
        %v2452 = vpop.f32.mrf.mxu0
        %v2453 = vadd.f32 %v2227, %v2452
        %v2454 = vpop.f32.mrf.mxu0
        %v2455 = vadd.f32 %v2231, %v2454
        %2456 = vdwg.mxu0
        %2457 = vmatprep.subr.bf16.mxu0 %v2371
        %2458 = vmatpush1.bf16.msra.mxu0 %v2370
        %2459 = vmatprep.subr.bf16.mxu0 %v2367
        %2460 = vmatpush1.bf16.msra.mxu0 %v2366
        %2461 = vmatprep.subr.bf16.mxu0 %v2363
        %2462 = vmatpush1.bf16.msra.mxu0 %v2362
        %2463 = vmatprep.subr.bf16.mxu0 %v2359
        %2464 = vmatpush1.bf16.msra.mxu0 %v2358
        %2465 = vmatprep.subr.bf16.mxu0 %v2355
        %2466 = vmatpush1.bf16.msra.mxu0 %v2354
        %2467 = vmatprep.subr.bf16.mxu0 %v2351
        %2468 = vmatpush1.bf16.msra.mxu0 %v2350
        %2469 = vmatprep.subr.bf16.mxu0 %v2347
        %2470 = vmatpush1.bf16.msra.mxu0 %v2346
        %2471 = vmatprep.subr.bf16.mxu0 %v2343
        %2472 = vmatpush1.bf16.msra.mxu0 %v2342
        %2473 = vmatprep.subr.bf16.mxu0 0
        %2474 = vmatpush2.bf16.msra.mxu0 0
        %2475 = vmatprep.subr.bf16.mxu0 0
        %2476 = vmatpush2.bf16.msra.mxu0 0
        %2477 = vmatprep.subr.bf16.mxu0 0
        %2478 = vmatpush2.bf16.msra.mxu0 0
        %2479 = vmatprep.subr.bf16.mxu0 0
        %2480 = vmatpush2.bf16.msra.mxu0 0
        %2481 = vmatprep.subr.bf16.mxu0 0
        %2482 = vmatpush2.bf16.msra.mxu0 0
        %2483 = vmatprep.subr.bf16.mxu0 0
        %2484 = vmatpush2.bf16.msra.mxu0 0
        %2485 = vmatprep.subr.bf16.mxu0 0
        %2486 = vmatpush2.bf16.msra.mxu0 0
        %2487 = vmatprep.subr.bf16.mxu0 0
        %2488 = vmatpush2.bf16.msra.mxu0 0
        %2489 = vmatprep.mubr.bf16.mxu0 0
        %2490 = vmatmul.mubr.bf16.gmra.mxu0 %v2188
        %v2491 = vpop.f32.mrf.mxu0
        %v2492 = vadd.f32 %v2235, %v2491
        %v2493 = vpop.f32.mrf.mxu0
        %v2494 = vadd.f32 %v2239, %v2493
        %v2495 = vpop.f32.mrf.mxu0
        %v2496 = vadd.f32 %v2235, %v2495
        %v2497 = vpop.f32.mrf.mxu0
        %v2498 = vadd.f32 %v2239, %v2497
        %2499 = vmatprep.mubr.bf16.mxu0 0
        %2500 = vmatmul.mubr.bf16.gmra.mxu0 %v2189
        %v2501 = vpop.f32.mrf.mxu0
        %v2502 = vadd.f32 %v2235, %v2501
        %v2503 = vpop.f32.mrf.mxu0
        %v2504 = vadd.f32 %v2239, %v2503
        %v2505 = vpop.f32.mrf.mxu0
        %v2506 = vadd.f32 %v2235, %v2505
        %v2507 = vpop.f32.mrf.mxu0
        %v2508 = vadd.f32 %v2239, %v2507
        %2509 = vdwg.mxu0
        %v2510 = vmax.f32 %v2439, 0.0
        %v2511 = vmax.f32 %v2441, 0.0
        %v2512 = vmax.f32 %v2492, 0.0
        %v2513 = vmax.f32 %v2494, 0.0
        %v2514 = vmax.f32 %v2443, 0.0
        %v2515 = vmax.f32 %v2445, 0.0
        %v2516 = vmax.f32 %v2496, 0.0
        %v2517 = vmax.f32 %v2498, 0.0
        %v2518 = vmax.f32 %v2449, 0.0
        %v2519 = vmax.f32 %v2451, 0.0
        %v2520 = vmax.f32 %v2502, 0.0
        %v2521 = vmax.f32 %v2504, 0.0
        %v2522 = vmax.f32 %v2453, 0.0
        %v2523 = vmax.f32 %v2455, 0.0
        %v2524 = vmax.f32 %v2506, 0.0
        %v2525 = vmax.f32 %v2508, 0.0
        %v2526 = vpack.c.bf16 %v2514, %v2510
        %v2527 = vpack.c.bf16 %v2515, %v2511
        %v2528 = vpack.c.bf16 %v2516, %v2512
        %v2529 = vpack.c.bf16 %v2517, %v2513
        %v2530 = vpack.c.bf16 %v2522, %v2518
        %v2531 = vpack.c.bf16 %v2523, %v2519
        %v2532 = vpack.c.bf16 %v2524, %v2520
        %v2533 = vpack.c.bf16 %v2525, %v2521
        %v2534 = vld [vmem:[%s720] sm:$0xf]
        %v2535 = vld [vmem:[%s720 + $0x4] sm:$0xf]
        %v2536 = vld [vmem:[%s720 + $0x8] sm:$0xf]
        %v2537 = vld [vmem:[%s720 + $0xc] sm:$0xf]
        %v2538 = vld [vmem:[%s720 + $0x10] sm:$0xf]
        %v2539 = vld [vmem:[%s720 + $0x14] sm:$0xf]
        %v2540 = vld [vmem:[%s720 + $0x18] sm:$0xf]
        %v2541 = vld [vmem:[%s720 + $0x1c] sm:$0xf]
        %v2542 = vld [vmem:[%s720 + $0x20] sm:$0xf]
        %v2543 = vld [vmem:[%s720 + $0x24] sm:$0xf]
        %v2544 = vld [vmem:[%s720 + $0x28] sm:$0xf]
        %v2545 = vld [vmem:[%s720 + $0x2c] sm:$0xf]
        %v2546 = vld [vmem:[%s720 + $0x30] sm:$0xf]
        %v2547 = vld [vmem:[%s720 + $0x34] sm:$0xf]
        %v2548 = vld [vmem:[%s720 + $0x38] sm:$0xf]
        %v2549 = vld [vmem:[%s720 + $0x3c] sm:$0xf]
        %v2550 = vld [vmem:[%s720 + $0x40] sm:$0xf]
        %v2551 = vld [vmem:[%s720 + $0x44] sm:$0xf]
        %v2552 = vld [vmem:[%s720 + $0x48] sm:$0xf]
        %v2553 = vld [vmem:[%s720 + $0x4c] sm:$0xf]
        %v2554 = vld [vmem:[%s720 + $0x50] sm:$0xf]
        %v2555 = vld [vmem:[%s720 + $0x54] sm:$0xf]
        %v2556 = vld [vmem:[%s720 + $0x58] sm:$0xf]
        %v2557 = vld [vmem:[%s720 + $0x5c] sm:$0xf]
        %v2558 = vld [vmem:[%s720 + $0x60] sm:$0xf]
        %v2559 = vld [vmem:[%s720 + $0x64] sm:$0xf]
        %v2560 = vld [vmem:[%s720 + $0x68] sm:$0xf]
        %v2561 = vld [vmem:[%s720 + $0x6c] sm:$0xf]
        %v2562 = vld [vmem:[%s720 + $0x70] sm:$0xf]
        %v2563 = vld [vmem:[%s720 + $0x74] sm:$0xf]
        %v2564 = vld [vmem:[%s720 + $0x78] sm:$0xf]
        %v2565 = vld [vmem:[%s720 + $0x7c] sm:$0xf]
        %v2566 = vld [vmem:[%s720 + $0x80] sm:$0xf]
        %v2567 = vld [vmem:[%s720 + $0x84] sm:$0xf]
        %v2568 = vld [vmem:[%s720 + $0x88] sm:$0xf]
        %v2569 = vld [vmem:[%s720 + $0x8c] sm:$0xf]
        %v2570 = vld [vmem:[%s720 + $0x90] sm:$0xf]
        %v2571 = vld [vmem:[%s720 + $0x94] sm:$0xf]
        %v2572 = vld [vmem:[%s720 + $0x98] sm:$0xf]
        %v2573 = vld [vmem:[%s720 + $0x9c] sm:$0xf]
        %v2574 = vld [vmem:[%s720 + $0xa0] sm:$0xf]
        %v2575 = vld [vmem:[%s720 + $0xa4] sm:$0xf]
        %v2576 = vld [vmem:[%s720 + $0xa8] sm:$0xf]
        %v2577 = vld [vmem:[%s720 + $0xac] sm:$0xf]
        %v2578 = vld [vmem:[%s720 + $0xb0] sm:$0xf]
        %v2579 = vld [vmem:[%s720 + $0xb4] sm:$0xf]
        %v2580 = vld [vmem:[%s720 + $0xb8] sm:$0xf]
        %v2581 = vld [vmem:[%s720 + $0xbc] sm:$0xf]
        %v2582 = vld [vmem:[%s720 + $0xc0] sm:$0xf]
        %v2583 = vld [vmem:[%s720 + $0xc4] sm:$0xf]
        %v2584 = vld [vmem:[%s720 + $0xc8] sm:$0xf]
        %v2585 = vld [vmem:[%s720 + $0xcc] sm:$0xf]
        %v2586 = vld [vmem:[%s720 + $0xd0] sm:$0xf]
        %v2587 = vld [vmem:[%s720 + $0xd4] sm:$0xf]
        %v2588 = vld [vmem:[%s720 + $0xd8] sm:$0xf]
        %v2589 = vld [vmem:[%s720 + $0xdc] sm:$0xf]
        %v2590 = vld [vmem:[%s720 + $0xe0] sm:$0xf]
        %v2591 = vld [vmem:[%s720 + $0xe4] sm:$0xf]
        %v2592 = vld [vmem:[%s720 + $0xe8] sm:$0xf]
        %v2593 = vld [vmem:[%s720 + $0xec] sm:$0xf]
        %v2594 = vld [vmem:[%s720 + $0xf0] sm:$0xf]
        %v2595 = vld [vmem:[%s720 + $0xf4] sm:$0xf]
        %v2596 = vld [vmem:[%s720 + $0xf8] sm:$0xf]
        %v2597 = vld [vmem:[%s720 + $0xfc] sm:$0xf]
        %v2598 = vld [vmem:[%s728] sm:$0x1]
        %v2600 = vlaneseq
        %v2601 = vshrl.u32 %v2600, 7
        %v2602 = vsub.s32 0, %v2601
        %v2603 = vrot.slane %v2598, %v2602
        %v2669 = vunpack.c.l.b16 %v2534
        %v2670 = vunpack.c.l.b16 %v2535
        %v2671 = vunpack.c.l.b16 %v2536
        %v2672 = vunpack.c.l.b16 %v2537
        %v2673 = vunpack.c.l.b16 %v2538
        %v2674 = vunpack.c.l.b16 %v2539
        %v2675 = vunpack.c.l.b16 %v2540
        %v2676 = vunpack.c.l.b16 %v2541
        %v2677 = vunpack.c.l.b16 %v2542
        %v2678 = vunpack.c.l.b16 %v2543
        %v2679 = vunpack.c.l.b16 %v2544
        %v2680 = vunpack.c.l.b16 %v2545
        %v2681 = vunpack.c.l.b16 %v2546
        %v2682 = vunpack.c.l.b16 %v2547
        %v2683 = vunpack.c.l.b16 %v2548
        %v2684 = vunpack.c.l.b16 %v2549
        %v2685 = vunpack.c.l.b16 %v2550
        %v2686 = vunpack.c.l.b16 %v2551
        %v2687 = vunpack.c.l.b16 %v2552
        %v2688 = vunpack.c.l.b16 %v2553
        %v2689 = vunpack.c.l.b16 %v2554
        %v2690 = vunpack.c.l.b16 %v2555
        %v2691 = vunpack.c.l.b16 %v2556
        %v2692 = vunpack.c.l.b16 %v2557
        %v2693 = vunpack.c.l.b16 %v2558
        %v2694 = vunpack.c.l.b16 %v2559
        %v2695 = vunpack.c.l.b16 %v2560
        %v2696 = vunpack.c.l.b16 %v2561
        %v2697 = vunpack.c.l.b16 %v2562
        %v2698 = vunpack.c.l.b16 %v2563
        %v2699 = vunpack.c.l.b16 %v2564
        %v2700 = vunpack.c.l.b16 %v2565
        %v2701 = vunpack.c.l.b16 %v2566
        %v2702 = vunpack.c.l.b16 %v2567
        %v2703 = vunpack.c.l.b16 %v2568
        %v2704 = vunpack.c.l.b16 %v2569
        %v2705 = vunpack.c.l.b16 %v2570
        %v2706 = vunpack.c.l.b16 %v2571
        %v2707 = vunpack.c.l.b16 %v2572
        %v2708 = vunpack.c.l.b16 %v2573
        %v2709 = vunpack.c.l.b16 %v2574
        %v2710 = vunpack.c.l.b16 %v2575
        %v2711 = vunpack.c.l.b16 %v2576
        %v2712 = vunpack.c.l.b16 %v2577
        %v2713 = vunpack.c.l.b16 %v2578
        %v2714 = vunpack.c.l.b16 %v2579
        %v2715 = vunpack.c.l.b16 %v2580
        %v2716 = vunpack.c.l.b16 %v2581
        %v2717 = vunpack.c.l.b16 %v2582
        %v2718 = vunpack.c.l.b16 %v2583
        %v2719 = vunpack.c.l.b16 %v2584
        %v2720 = vunpack.c.l.b16 %v2585
        %v2721 = vunpack.c.l.b16 %v2586
        %v2722 = vunpack.c.l.b16 %v2587
        %v2723 = vunpack.c.l.b16 %v2588
        %v2724 = vunpack.c.l.b16 %v2589
        %v2725 = vunpack.c.l.b16 %v2590
        %v2726 = vunpack.c.l.b16 %v2591
        %v2727 = vunpack.c.l.b16 %v2592
        %v2728 = vunpack.c.l.b16 %v2593
        %v2729 = vunpack.c.l.b16 %v2594
        %v2730 = vunpack.c.l.b16 %v2595
        %v2731 = vunpack.c.l.b16 %v2596
        %v2732 = vunpack.c.l.b16 %v2597
        %v2733 = vpack.c.b16 %v2670, %v2669
        %v2734 = vpack.c.b16 %v2672, %v2671
        %v2735 = vpack.c.b16 %v2674, %v2673
        %v2736 = vpack.c.b16 %v2676, %v2675
        %v2737 = vpack.c.b16 %v2678, %v2677
        %v2738 = vpack.c.b16 %v2680, %v2679
        %v2739 = vpack.c.b16 %v2682, %v2681
        %v2740 = vpack.c.b16 %v2684, %v2683
        %v2741 = vpack.c.b16 %v2686, %v2685
        %v2742 = vpack.c.b16 %v2688, %v2687
        %v2743 = vpack.c.b16 %v2690, %v2689
        %v2744 = vpack.c.b16 %v2692, %v2691
        %v2745 = vpack.c.b16 %v2694, %v2693
        %v2746 = vpack.c.b16 %v2696, %v2695
        %v2747 = vpack.c.b16 %v2698, %v2697
        %v2748 = vpack.c.b16 %v2700, %v2699
        %v2749 = vpack.c.b16 %v2702, %v2701
        %v2750 = vpack.c.b16 %v2704, %v2703
        %v2751 = vpack.c.b16 %v2706, %v2705
        %v2752 = vpack.c.b16 %v2708, %v2707
        %v2753 = vpack.c.b16 %v2710, %v2709
        %v2754 = vpack.c.b16 %v2712, %v2711
        %v2755 = vpack.c.b16 %v2714, %v2713
        %v2756 = vpack.c.b16 %v2716, %v2715
        %v2757 = vpack.c.b16 %v2718, %v2717
        %v2758 = vpack.c.b16 %v2720, %v2719
        %v2759 = vpack.c.b16 %v2722, %v2721
        %v2760 = vpack.c.b16 %v2724, %v2723
        %v2761 = vpack.c.b16 %v2726, %v2725
        %v2762 = vpack.c.b16 %v2728, %v2727
        %v2763 = vpack.c.b16 %v2730, %v2729
        %v2764 = vpack.c.b16 %v2732, %v2731
        %2797 = vmatprep.subr.bf16.mxu0 0
        %2798 = vmatpush1.bf16.msra.mxu0 %v2740
        %2799 = vmatprep.subr.bf16.mxu0 0
        %2800 = vmatpush1.bf16.msra.mxu0 %v2739
        %2801 = vmatprep.subr.bf16.mxu0 0
        %2802 = vmatpush1.bf16.msra.mxu0 %v2738
        %2803 = vmatprep.subr.bf16.mxu0 0
        %2804 = vmatpush1.bf16.msra.mxu0 %v2737
        %2805 = vmatprep.subr.bf16.mxu0 0
        %2806 = vmatpush1.bf16.msra.mxu0 %v2736
        %2807 = vmatprep.subr.bf16.mxu0 0
        %2808 = vmatpush1.bf16.msra.mxu0 %v2735
        %2809 = vmatprep.subr.bf16.mxu0 0
        %2810 = vmatpush1.bf16.msra.mxu0 %v2734
        %2811 = vmatprep.subr.bf16.mxu0 0
        %2812 = vmatpush1.bf16.msra.mxu0 %v2733
        %2813 = vmatprep.subr.bf16.mxu0 0
        %2814 = vmatpush2.bf16.msra.mxu0 %v2748
        %2815 = vmatprep.subr.bf16.mxu0 0
        %2816 = vmatpush2.bf16.msra.mxu0 %v2747
        %2817 = vmatprep.subr.bf16.mxu0 0
        %2818 = vmatpush2.bf16.msra.mxu0 %v2746
        %2819 = vmatprep.subr.bf16.mxu0 0
        %2820 = vmatpush2.bf16.msra.mxu0 %v2745
        %2821 = vmatprep.subr.bf16.mxu0 0
        %2822 = vmatpush2.bf16.msra.mxu0 %v2744
        %2823 = vmatprep.subr.bf16.mxu0 0
        %2824 = vmatpush2.bf16.msra.mxu0 %v2743
        %2825 = vmatprep.subr.bf16.mxu0 0
        %2826 = vmatpush2.bf16.msra.mxu0 %v2742
        %2827 = vmatprep.subr.bf16.mxu0 0
        %2828 = vmatpush2.bf16.msra.mxu0 %v2741
        %2829 = vmatprep.mubr.bf16.mxu0 %v2527
        %2830 = vmatmul.mubr.bf16.gmra.mxu0 %v2526
        %v2831 = vpop.f32.mrf.mxu0
        %v2832 = vadd.f32 %v2603, %v2831
        %v2833 = vpop.f32.mrf.mxu0
        %v2834 = vpop.f32.mrf.mxu0
        %v2835 = vadd.f32 %v2603, %v2834
        %v2836 = vpop.f32.mrf.mxu0
        %2837 = vmatprep.mubr.bf16.mxu0 %v2531
        %2838 = vmatmul.mubr.bf16.gmra.mxu0 %v2530
        %v2839 = vpop.f32.mrf.mxu0
        %v2840 = vadd.f32 %v2603, %v2839
        %v2841 = vpop.f32.mrf.mxu0
        %v2842 = vpop.f32.mrf.mxu0
        %v2843 = vadd.f32 %v2603, %v2842
        %v2844 = vpop.f32.mrf.mxu0
        %2845 = vdwg.mxu0
        %2846 = vmatprep.subr.bf16.mxu0 0
        %2847 = vmatpush1.bf16.msra.mxu0 %v2756
        %2848 = vmatprep.subr.bf16.mxu0 0
        %2849 = vmatpush1.bf16.msra.mxu0 %v2755
        %2850 = vmatprep.subr.bf16.mxu0 0
        %2851 = vmatpush1.bf16.msra.mxu0 %v2754
        %2852 = vmatprep.subr.bf16.mxu0 0
        %2853 = vmatpush1.bf16.msra.mxu0 %v2753
        %2854 = vmatprep.subr.bf16.mxu0 0
        %2855 = vmatpush1.bf16.msra.mxu0 %v2752
        %2856 = vmatprep.subr.bf16.mxu0 0
        %2857 = vmatpush1.bf16.msra.mxu0 %v2751
        %2858 = vmatprep.subr.bf16.mxu0 0
        %2859 = vmatpush1.bf16.msra.mxu0 %v2750
        %2860 = vmatprep.subr.bf16.mxu0 0
        %2861 = vmatpush1.bf16.msra.mxu0 %v2749
        %2862 = vmatprep.subr.bf16.mxu0 0
        %2863 = vmatpush2.bf16.msra.mxu0 %v2764
        %2864 = vmatprep.subr.bf16.mxu0 0
        %2865 = vmatpush2.bf16.msra.mxu0 %v2763
        %2866 = vmatprep.subr.bf16.mxu0 0
        %2867 = vmatpush2.bf16.msra.mxu0 %v2762
        %2868 = vmatprep.subr.bf16.mxu0 0
        %2869 = vmatpush2.bf16.msra.mxu0 %v2761
        %2870 = vmatprep.subr.bf16.mxu0 0
        %2871 = vmatpush2.bf16.msra.mxu0 %v2760
        %2872 = vmatprep.subr.bf16.mxu0 0
        %2873 = vmatpush2.bf16.msra.mxu0 %v2759
        %2874 = vmatprep.subr.bf16.mxu0 0
        %2875 = vmatpush2.bf16.msra.mxu0 %v2758
        %2876 = vmatprep.subr.bf16.mxu0 0
        %2877 = vmatpush2.bf16.msra.mxu0 %v2757
        %2878 = vmatprep.mubr.bf16.mxu0 %v2529
        %2879 = vmatmul.mubr.bf16.gmra.mxu0 %v2528
        %v2880 = vpop.f32.mrf.mxu0
        %v2881 = vadd.f32 %v2832, %v2880
        %v2882 = vpop.f32.mrf.mxu0
        %v2883 = vpop.f32.mrf.mxu0
        %v2884 = vadd.f32 %v2835, %v2883
        %v2885 = vpop.f32.mrf.mxu0
        %2886 = vmatprep.mubr.bf16.mxu0 %v2533
        %2887 = vmatmul.mubr.bf16.gmra.mxu0 %v2532
        %v2888 = vpop.f32.mrf.mxu0
        %v2889 = vadd.f32 %v2840, %v2888
        %v2890 = vpop.f32.mrf.mxu0
        %v2891 = vpop.f32.mrf.mxu0
        %v2892 = vadd.f32 %v2843, %v2891
        %v2893 = vpop.f32.mrf.mxu0
        %2894 = vdwg.mxu0
        %v2895 = vadd.f32 %v2118, %v2881
        %v2896 = vadd.f32 %v2119, %v2884
        %v2897 = vadd.f32 %v2120, %v2889
        %v2898 = vadd.f32 %v2121, %v2892
        %2899 = vst [vmem:[#allocation2] sm:$0xff] %v2895
        %2900 = vst [vmem:[#allocation2 + $0x8] sm:$0xff] %v2896
        %2901 = vst [vmem:[#allocation2 + $0x10] sm:$0xff] %v2897
        %2902 = vst [vmem:[#allocation2 + $0x18] sm:$0xff] %v2898
        %p2903 = scmp.eq.s32.totalorder %s44, 1
        // Predicated region
        $region121: #{opt_forward.1} parent=83 // pred_check
          %p2904 = pneg %p2903
        $region122: #{opt_forward.1} parent=83 // pred_check_branch
          %2906 = sbr.rel (%p2904) target = $region124
        $region123: #{opt_forward.1} parent=83 // pred_region
          %v2907 = vld [vmem:[#allocation14] sm:$0x1]
          %v2908 = vld [vmem:[#allocation15] sm:$0x1]
          %2909 = vadd.xlane.f32.xlu0 %v2895
          %v2910 = vpop.xlane.xlu0 %2909
          %2911 = vadd.xlane.f32.xlu0 %v2896
          %v2912 = vpop.xlane.xlu0 %2911
          %2913 = vadd.xlane.f32.xlu0 %v2897
          %v2914 = vpop.xlane.xlu0 %2913
          %2915 = vadd.xlane.f32.xlu0 %v2898
          %v2916 = vpop.xlane.xlu0 %2915
          %v2917 = vmul.f32 %v2910, %v893
          %v2918 = vmul.f32 %v2912, %v893
          %v2919 = vmul.f32 %v2914, %v893
          %v2920 = vmul.f32 %v2916, %v893
          %v2921 = vsub.f32 %v2895, %v2917
          %v2922 = vsub.f32 %v2896, %v2918
          %v2923 = vsub.f32 %v2897, %v2919
          %v2924 = vsub.f32 %v2898, %v2920
          %v2925 = vmul.f32 %v2921, %v2921
          %v2926 = vmul.f32 %v2922, %v2922
          %v2927 = vmul.f32 %v2923, %v2923
          %v2928 = vmul.f32 %v2924, %v2924
          %2929 = vadd.xlane.f32.xlu0 %v2925
          %v2930 = vpop.xlane.xlu0 %2929
          %2931 = vadd.xlane.f32.xlu0 %v2926
          %v2932 = vpop.xlane.xlu0 %2931
          %2933 = vadd.xlane.f32.xlu0 %v2927
          %v2934 = vpop.xlane.xlu0 %2933
          %2935 = vadd.xlane.f32.xlu0 %v2928
          %v2936 = vpop.xlane.xlu0 %2935
          %v2937 = vmul.f32 %v2930, %v893
          %v2938 = vmul.f32 %v2932, %v893
          %v2939 = vmul.f32 %v2934, %v893
          %v2940 = vmul.f32 %v2936, %v893
          %v2941 = vadd.f32 %v2937, 1e-05
          %v2942 = vadd.f32 %v2938, 1e-05
          %v2943 = vadd.f32 %v2939, 1e-05
          %v2944 = vadd.f32 %v2940, 1e-05
          %v2945 = vrsqrt.pop %v2941
          %v2946 = vrsqrt.pop %v2942
          %v2947 = vrsqrt.pop %v2943
          %v2948 = vrsqrt.pop %v2944
          %v2949 = vmul.f32 %v2921, %v2945
          %v2950 = vmul.f32 %v2922, %v2946
          %v2951 = vmul.f32 %v2923, %v2947
          %v2952 = vmul.f32 %v2924, %v2948
          %v2954 = vlaneseq
          %v2955 = vshrl.u32 %v2954, 7
          %v2956 = vsub.s32 0, %v2955
          %v2957 = vrot.slane %v2907, %v2956
          %v2959 = vmul.f32 %v2949, %v2957
          %v2960 = vmul.f32 %v2950, %v2957
          %v2961 = vmul.f32 %v2951, %v2957
          %v2962 = vmul.f32 %v2952, %v2957
          %v2964 = vlaneseq
          %v2965 = vshrl.u32 %v2964, 7
          %v2966 = vsub.s32 0, %v2965
          %v2967 = vrot.slane %v2908, %v2966
          %v2969 = vadd.f32 %v2959, %v2967
          %v2970 = vadd.f32 %v2960, %v2967
          %v2971 = vadd.f32 %v2961, %v2967
          %v2972 = vadd.f32 %v2962, %v2967
          %2973 = vst [vmem:[#allocation17] sm:$0xff] %v2969
          %2974 = vst [vmem:[#allocation17 + $0x8] sm:$0xff] %v2970
          %2975 = vst [vmem:[#allocation17 + $0x10] sm:$0xff] %v2971
          %2976 = vst [vmem:[#allocation17 + $0x18] sm:$0xff] %v2972
          %v2977 = vpack.c.bf16 %v2972, %v2972
          %v2978 = vld [vmem:[%s15] sm:$0xf]
          %v2979 = vld [vmem:[%s15 + $0x4] sm:$0xf]
          %v2980 = vld [vmem:[%s15 + $0x8] sm:$0xf]
          %v2981 = vld [vmem:[%s15 + $0xc] sm:$0xf]
          %v2982 = vld [vmem:[%s15 + $0x10] sm:$0xf]
          %v2983 = vld [vmem:[%s15 + $0x14] sm:$0xf]
          %v2984 = vld [vmem:[%s15 + $0x18] sm:$0xf]
          %v2985 = vld [vmem:[%s15 + $0x1c] sm:$0xf]
          %v2986 = vld [vmem:[%s15 + $0x20] sm:$0xf]
          %v2987 = vld [vmem:[%s15 + $0x24] sm:$0xf]
          %v2988 = vld [vmem:[%s15 + $0x28] sm:$0xf]
          %v2989 = vld [vmem:[%s15 + $0x2c] sm:$0xf]
          %v2990 = vld [vmem:[%s15 + $0x30] sm:$0xf]
          %v2991 = vld [vmem:[%s15 + $0x34] sm:$0xf]
          %v2992 = vld [vmem:[%s15 + $0x38] sm:$0xf]
          %v2993 = vld [vmem:[%s15 + $0x3c] sm:$0xf]
          %v2995 = vshrl.u32 %v2977, 16
          %v2997 = vrot.slane %v2995, 3
          %v3015 = vunpack.c.l.b16 %v2978
          %v3016 = vunpack.c.l.b16 %v2979
          %v3017 = vunpack.c.l.b16 %v2980
          %v3018 = vunpack.c.l.b16 %v2981
          %v3019 = vunpack.c.l.b16 %v2982
          %v3020 = vunpack.c.l.b16 %v2983
          %v3021 = vunpack.c.l.b16 %v2984
          %v3022 = vunpack.c.l.b16 %v2985
          %v3023 = vunpack.c.l.b16 %v2986
          %v3024 = vunpack.c.l.b16 %v2987
          %v3025 = vunpack.c.l.b16 %v2988
          %v3026 = vunpack.c.l.b16 %v2989
          %v3027 = vunpack.c.l.b16 %v2990
          %v3028 = vunpack.c.l.b16 %v2991
          %v3029 = vunpack.c.l.b16 %v2992
          %v3030 = vunpack.c.l.b16 %v2993
          %v3031 = vpack.c.b16 %v3016, %v3015
          %v3032 = vpack.c.b16 %v3018, %v3017
          %v3033 = vpack.c.b16 %v3020, %v3019
          %v3034 = vpack.c.b16 %v3022, %v3021
          %v3035 = vpack.c.b16 %v3024, %v3023
          %v3036 = vpack.c.b16 %v3026, %v3025
          %v3037 = vpack.c.b16 %v3028, %v3027
          %v3038 = vpack.c.b16 %v3030, %v3029
          %3047 = vmatprep.subr.bf16.mxu0 0
          %3048 = vmatpush1.bf16.msra.mxu0 %v3038
          %3049 = vmatprep.subr.bf16.mxu0 0
          %3050 = vmatpush1.bf16.msra.mxu0 %v3037
          %3051 = vmatprep.subr.bf16.mxu0 0
          %3052 = vmatpush1.bf16.msra.mxu0 %v3036
          %3053 = vmatprep.subr.bf16.mxu0 0
          %3054 = vmatpush1.bf16.msra.mxu0 %v3035
          %3055 = vmatprep.subr.bf16.mxu0 0
          %3056 = vmatpush1.bf16.msra.mxu0 %v3034
          %3057 = vmatprep.subr.bf16.mxu0 0
          %3058 = vmatpush1.bf16.msra.mxu0 %v3033
          %3059 = vmatprep.subr.bf16.mxu0 0
          %3060 = vmatpush1.bf16.msra.mxu0 %v3032
          %3061 = vmatprep.subr.bf16.mxu0 0
          %3062 = vmatpush1.bf16.msra.mxu0 %v3031
          %3063 = vmatprep.subr.bf16.mxu0 0
          %3064 = vmatpush2.bf16.msra.mxu0 0
          %3065 = vmatprep.subr.bf16.mxu0 0
          %3066 = vmatpush2.bf16.msra.mxu0 0
          %3067 = vmatprep.subr.bf16.mxu0 0
          %3068 = vmatpush2.bf16.msra.mxu0 0
          %3069 = vmatprep.subr.bf16.mxu0 0
          %3070 = vmatpush2.bf16.msra.mxu0 0
          %3071 = vmatprep.subr.bf16.mxu0 0
          %3072 = vmatpush2.bf16.msra.mxu0 0
          %3073 = vmatprep.subr.bf16.mxu0 0
          %3074 = vmatpush2.bf16.msra.mxu0 0
          %3075 = vmatprep.subr.bf16.mxu0 0
          %3076 = vmatpush2.bf16.msra.mxu0 0
          %3077 = vmatprep.subr.bf16.mxu0 0
          %3078 = vmatpush2.bf16.msra.mxu0 0
          %3079 = vmatprep.mubr.bf16.mxu0 0
          %3080 = vmatmul.mubr.bf16.gmra.mxu0 %v2997
          %v3081 = vpop.f32.mrf.mxu0
          %v3082 = vadd.f32 0.0, %v3081
          %v3083 = vpop.f32.mrf.mxu0
          %v3084 = vpop.f32.mrf.mxu0
          %v3085 = vpop.f32.mrf.mxu0
          %3086 = vdwg.mxu0
          %3087 = vst [vmem:[#allocation18] sm:$0x1] %v3082
        $region124: #{opt_forward.1} parent=83 // pred_fallthru
          _
        // Predicated region
        $region125: #{opt_forward.1} parent=83 // pred_check
          %p3088 = pneg %p453
        $region126: #{opt_forward.1} parent=83 // pred_check_branch
          %3090 = sbr.rel (%p3088) target = $region128
        $region127: #{opt_forward.1} parent=83 // pred_region
          %s3092 = ssub.s32 512, 512
          %3093 = vsyncadd [#allocation5], %s3092
          %s3094 = sshll.u32 [#allocation17], 4
          %s3095 = int_to_ptr.vmem [resolvable:$true] %s3094
          %3100 = dma.vmem_to_hbm [thread:$0]  %s3095, 512, %s16, [#allocation5], 128, 128, 8
        $region128: #{opt_forward.1} parent=83 // pred_fallthru
          _
        // Predicated region
        $region129: #{opt_forward.1} parent=83 // pred_check
          %p3101 = pneg %p474
        $region130: #{opt_forward.1} parent=83 // pred_check_branch
          %3103 = sbr.rel (%p3101) target = $region132
        $region131: #{opt_forward.1} parent=83 // pred_region
          %s3105 = ssub.s32 16, 16
          %3106 = vsyncadd [#allocation19], %s3105
          %s3108 = sshll.u32 [#allocation18], 4
          %s3109 = int_to_ptr.vmem [resolvable:$true] %s3108
          %3111 = dma.vmem_to_hbm [thread:$0]  %s3109, 16, %s17, [#allocation19]
        $region132: #{opt_forward.1} parent=83 // pred_fallthru
          _
        // Predicated region
        $region133: #{opt_forward.1} parent=83 // pred_check
          %p3112 = pneg %p453
        $region134: #{opt_forward.1} parent=83 // pred_check_branch
          %3114 = sbr.rel (%p3112) target = $region136
        $region135: #{opt_forward.1} parent=83 // pred_region
          %3115 = dma.done [#allocation5], 512
        $region136: #{opt_forward.1} parent=83 // pred_fallthru
          _
        // Predicated region
        $region137: #{opt_forward.1} parent=83 // pred_check
          %p3116 = pneg %p474
        $region138: #{opt_forward.1} parent=83 // pred_check_branch
          %3118 = sbr.rel (%p3116) target = $region140
        $region139: #{opt_forward.1} parent=83 // pred_region
          %3119 = dma.done [#allocation19], 16
        $region140: #{opt_forward.1} parent=83 // pred_fallthru
          _
      $region84: #{opt_forward.1} parent=5 // pred_fallthru
        _
      %p3120 = scmp.le.s32.totalorder 2, %s39
      // Predicated region
      $region141: #{opt_forward.1} parent=5 // pred_check
        %p3121 = pneg %p3120
      $region142: #{opt_forward.1} parent=5 // pred_check_branch
        %3123 = sbr.rel (%p3121) target = $region144
      $region143: #{opt_forward.1} parent=5 // pred_region
        %s3124 = ssub.s32 %s39, 2
      $region144: #{opt_forward.1} parent=5 // pred_fallthru
        _
    $region6: #{opt_forward.1} parent=1 // loop_footer
      %s43 = sadd.s32 1, %s39
    $region7: #{opt_forward.1} parent=1 // loop_footer_branch
      %38 = sbr.rel target = $region3
    $region8: #{opt_forward.1} parent=1 // loop_exit
      _
    %3125 = vsyncpa [#allocation4], 1
    %s3126 = scalar_lea.sflag [#allocation4], 1
    %3127 = vsyncpa %s3126, 1
    %3128 = vsyncpa [#allocation7], 1
    %s3129 = scalar_lea.sflag [#allocation7], 1
    %3130 = vsyncpa %s3129, 1
    %3131 = vsyncpa [#allocation10], 1
    %s3132 = scalar_lea.sflag [#allocation10], 1
    %3133 = vsyncpa %s3132, 1
    %3134 = vsyncpa [#allocation13], 1
    %s3135 = scalar_lea.sflag [#allocation13], 1
    %3136 = vsyncpa %s3135, 1
    %3137 = vsyncpa [#allocation16], 1
    %3138 = vsyncpa [#allocation5], 1
    %s3139 = scalar_lea.sflag [#allocation5], 1
    %3140 = vsyncpa %s3139, 1
    %3141 = vsyncpa [#allocation19], 1

</llo_original>
